<compile_context>
chip_gen: v5e
topology: v5e:2x2
jax: 0.10.0
libtpu: 0.0.40
codegen_flags: <defaults>
</compile_context>

<pallas_src>
import jax
import jax.numpy as jnp
from jax import lax
from jax.experimental import pallas as pl
from jax.experimental.pallas import tpu as pltpu


def _embed_onehot_kernel(r_ref, wp_ref, out_ref):
    # r_ref:   (1, 1, TSU) int32   expanded ids: r[p] = token_id[p//U]*U + p%U
    # wp_ref:  (E, V*U)    float32 permuted table: Wp[e, v*U+u] = W[v, u*E+e]
    # out_ref: (1, E, TSU) float32 channel-first output tile (lane-dense)
    r = r_ref[0]                                          # (1, TSU)
    vu = wp_ref.shape[1]
    tsu = r.shape[1]
    q = lax.broadcasted_iota(jnp.int32, (vu, tsu), 0)     # [q, p] = q
    # NOTE: out-of-range ids give an all-zero column (silent zeros), whereas
    # torch.nn.Embedding would raise; clamp upstream if that matters.
    onehot = (q == r).astype(jnp.float32)                 # (V*U, TSU)
    # MXU gather directly in the final layout: (E, V*U) @ (V*U, TSU).
    out_ref[0] = jnp.dot(
        wp_ref[...], onehot,
        precision=lax.Precision.HIGHEST,                  # bit-exact fp32 gather
        preferred_element_type=jnp.float32)


def embed_forward(x, table, embedding_dim, num_upsample, x_len=None, *,
                  row_tile=256):
    """Pallas implementation of Embed.forward.

    x:     (B, S) integer token ids
    table: (V, E*U) float32 embedding weight (padding_idx row, if any, is
           simply a zero row -- forward semantics need no special handling)
    returns (y, y_len) with y: (B, E, U*S) float32
    """
    B, S = x.shape
    V, D = table.shape
    E, U = embedding_dim, num_upsample
    assert D == E * U

    # One-time layout plumbing outside the kernel (tiny vs. the table DMA):
    #   Wp[e, v*U + u] = W[v, u*E + e]
    wp = table.reshape(V, U, E).transpose(2, 0, 1).reshape(E, V * U)

    # Tile the token axis.  (row_tile=128 is a better fit on v5e.)
    if S <= row_tile:
        ts, s_pad = S, S
    else:
        ts = row_tile
        s_pad = pl.cdiv(S, ts) * ts

    x_i = x.astype(jnp.int32)
    if s_pad != S:
        x_i = jnp.pad(x_i, ((0, 0), (0, s_pad - S)))

    # Expanded ids: r[b, s*U + u] = x[b, s]*U + u  (selects a column of Wp).
    r = (x_i * U)[:, :, None] + jnp.arange(U, dtype=jnp.int32)[None, None, :]
    r = r.reshape(B, 1, s_pad * U)

    tsu = ts * U
    grid = (B, s_pad // ts)

    out = pl.pallas_call(
        _embed_onehot_kernel,
        out_shape=jax.ShapeDtypeStruct((B, E, s_pad * U), jnp.float32),
        grid_spec=pltpu.PrefetchScalarGridSpec(
            num_scalar_prefetch=0,
            grid=grid,
            in_specs=[
                # expanded token ids for this (batch, seq-tile)
                pl.BlockSpec((1, 1, tsu), lambda b, si: (b, 0, si)),
                # permuted table: constant index_map -> fetched once, resident
                pl.BlockSpec((E, V * U), lambda b, si: (0, 0)),
            ],
            out_specs=pl.BlockSpec((1, E, tsu), lambda b, si: (b, 0, si)),
        ),
        compiler_params=pltpu.CompilerParams(
            dimension_semantics=("parallel", "parallel")),
    )(r, wp)

    y = out if s_pad == S else out[:, :, : S * U]
    y_len = None if x_len is None else x_len * U
    return y, y_len


if __name__ == "__main__":
    num_symbols = 512
    embedding_dim = 32
    num_upsample = 2
    B, S = 2, 8

    key = jax.random.PRNGKey(0)
    k_tab, k_idx = jax.random.split(key)
    # nn.Embedding default init: N(0, 1)
    table = jax.random.normal(
        k_tab, (num_symbols, embedding_dim * num_upsample), dtype=jnp.float32)
    x = jax.random.randint(k_idx, (B, S), 0, num_symbols, dtype=jnp.int32)
    x_len = jnp.array([S, S - 2], dtype=jnp.int32)

    y, y_len = embed_forward(x, table, embedding_dim, num_upsample, x_len)
    y = jax.block_until_ready(y)

    # Pure-JAX reference of the full forward semantics.
    emb_ref = jnp.take(table, x, axis=0)                       # (B, S, E*U)
    y_ref = (emb_ref.reshape(B, S, num_upsample, embedding_dim)
             .transpose(0, 3, 1, 2)
             .reshape(B, embedding_dim, num_upsample * S))
    assert y.shape == (B, embedding_dim, num_upsample * S)
    assert y.dtype == jnp.float32
    assert jnp.allclose(y, y_ref, atol=1e-6)
    assert jnp.array_equal(y_len, x_len * num_upsample)

    print("KERNEL_OK")
</pallas_src>

<mosaic_0001>
module attributes {stable_mosaic.version = 11 : i64} {
  func.func @_embed_onehot_kernel(%arg0: i32, %arg1: i32, %arg2: memref<1x1x16xi32, #tpu.memory_space<vmem>>, %arg3: memref<32x1024xf32, #tpu.memory_space<vmem>>, %arg4: memref<1x32x16xf32, #tpu.memory_space<vmem>>) attributes {dimension_semantics = [#tpu.dimension_semantics<parallel>, #tpu.dimension_semantics<parallel>], iteration_bounds = array<i64: 2, 1>, scalar_prefetch = 0 : i64, scratch_operands = 0 : i64, tpu.core_type = #tpu.core_type<tc>, window_params = [{transform_indices = @transform_0, window_bounds = array<i64: 1, 1, 16>}, {pipeline_mode = #tpu.pipeline_mode<synchronous>, transform_indices = @transform_1, window_bounds = array<i64: 32, 1024>}, {transform_indices = @transform_2, window_bounds = array<i64: 1, 32, 16>}]} {
    %c0 = arith.constant 0 : index
    %c0_0 = arith.constant 0 : index
    %c0_1 = arith.constant 0 : index
    %0 = vector.load %arg2[%c0, %c0_0, %c0_1] : memref<1x1x16xi32, #tpu.memory_space<vmem>>, vector<1x1x16xi32>
    %1 = vector.shape_cast %0 : vector<1x1x16xi32> to vector<1x16xi32>
    %2 = tpu.iota {dimensions = array<i32: 0>} : vector<1024x16xi32>
    %3 = vector.broadcast %1 : vector<1x16xi32> to vector<1024x16xi32>
    %4 = arith.cmpi eq, %2, %3 : vector<1024x16xi32>
    %5 = arith.extui %4 : vector<1024x16xi1> to vector<1024x16xi32>
    %6 = arith.sitofp %5 : vector<1024x16xi32> to vector<1024x16xf32>
    %c0_2 = arith.constant 0 : index
    %c0_3 = arith.constant 0 : index
    %7 = vector.load %arg3[%c0_2, %c0_3] : memref<32x1024xf32, #tpu.memory_space<vmem>>, vector<32x1024xf32>
    %cst = arith.constant dense<0.000000e+00> : vector<32x16xf32>
    %8 = tpu.matmul %7, %6, %cst {dimension_numbers = #tpu.dot_dimension_numbers<[1], [0], [0], [1], [0, 0, 1, 1], [], []>, precision = #tpu.contract_precision<fp32>} : vector<32x1024xf32>, vector<1024x16xf32>, vector<32x16xf32> -> vector<32x16xf32>
    %c0_4 = arith.constant 0 : index
    %c0_5 = arith.constant 0 : index
    %c0_6 = arith.constant 0 : index
    %9 = vector.load %arg4[%c0_4, %c0_5, %c0_6] : memref<1x32x16xf32, #tpu.memory_space<vmem>>, vector<1x32x16xf32>
    %10 = vector.shape_cast %9 : vector<1x32x16xf32> to vector<32x16xf32>
    %11 = vector.shape_cast %8 : vector<32x16xf32> to vector<1x32x16xf32>
    tpu.vector_store %arg4[%c0_4, %c0_5, %c0_6], %11 {strides = array<i32>} : memref<1x32x16xf32, #tpu.memory_space<vmem>>, vector<1x32x16xf32>,
    return
  }
  func.func @transform_0(%arg0: i32, %arg1: i32) -> (i32, i32, i32) {
    %c0_i32 = arith.constant 0 : i32
    %c0_i32_0 = arith.constant 0 : i32
    return %arg0, %c0_i32, %arg1 : i32, i32, i32
  }
  func.func @transform_1(%arg0: i32, %arg1: i32) -> (i32, i32) {
    %c0_i32 = arith.constant 0 : i32
    %c0_i32_0 = arith.constant 0 : i32
    %c0_i32_1 = arith.constant 0 : i32
    return %c0_i32, %c0_i32_0 : i32, i32
  }
  func.func @transform_2(%arg0: i32, %arg1: i32) -> (i32, i32, i32) {
    %c0_i32 = arith.constant 0 : i32
    %c0_i32_0 = arith.constant 0 : i32
    return %arg0, %c0_i32, %arg1 : i32, i32, i32
  }
}

</mosaic_0001>

<llo_original>
// kernel: tpu_custom_call.1
$region0: #{tpu_custom_call.1}
  #allocation0 [shape = 'u32[]', space=smem, size = 0x4, offset = 0x4, fixed_abs, tag = 'smem constant byte address 0x4 - core index']
  #allocation1 [shape = 'u32[72,128]{1,0:T(1,128)}', space=vmem, size = 0x9000, scoped, tag = 'internal scratch']
  %s0 = inlined_call_operand.hbm [shape: s32[2,1,16], index: 0, kind: input, shape index: {}]
  %s1 = inlined_call_operand.hbm [shape: f32[32,1024], index: 1, kind: input, shape index: {}]
  %s2 = inlined_call_operand.vmem [shape: f32[2,32,16], index: 2, kind: output, shape index: {}]
  %s3 = sld [smem:[#allocation0]]
  $region49: #{tpu_custom_call.1} parent=0
    _
  %s5 = ssub.s32 1, %s3
  %s6 = scalar_select 0, %s5, %s3
  $region1: #{tpu_custom_call.1} parent=0
    #allocation2 [shape = 'u8[1024]{0}', space=vmem, size = 0x400, scoped, tag = 'input window, operand 0']
    #allocation3 [shape = 's32[2]{0}', space=sflag, size = 0x8, scoped, tag = 'scoped memory for tpu_custom_call.1']
    #allocation4 [shape = 'u8[131072]{0}', space=vmem, size = 0x20000, scoped, tag = 'input window, operand 1, single buffered']
    #allocation5 [shape = 's32[1]{0}', space=sflag, size = 0x4, scoped, tag = 'scoped memory for tpu_custom_call.1']
    %7 = vsyncpa [#allocation3], 0
    %s8 = scalar_lea.sflag [#allocation3], 1
    %9 = vsyncpa %s8, 0
    %10 = vsyncpa [#allocation5], 0
    loop: start=0, step=1, limit=4
    $region2: #{tpu_custom_call.1} parent=1 // loop_pre_header
      _
    $region3: #{tpu_custom_call.1} parent=1 // loop_header
      %s12 = sphi 0, %s16
      %p13 = scmp.ge.s32.totalorder %s12, 4
      %s19 = sphi 0, %s31
      %s20 = sphi 0, %s27
      %s21 = sphi 0, %s19
      %s22 = sphi 0, %s20
      %s23 = sphi 0, %s21
      %s24 = sphi 0, %s22
      %s36 = sphi 0, %s38
      %s39 = sphi 0, %s36
      %s40 = sphi 0, %s39
      %s56 = sphi 0, %s40
      %s60 = sphi 0, %s60
      %s62 = sphi 0, %s60
      %s63 = sphi 0, %s62
      %s77 = sphi 0, %s63
      %s85 = sphi 0, %s87
      %s88 = sphi 0, %s85
      %s89 = sphi 0, %s88
      %s105 = sphi 0, %s89
    $region4: #{tpu_custom_call.1} parent=1 // loop_header_branch
      %15 = sbr.rel (%p13) target = $region8
    $region5: #{tpu_custom_call.1} parent=1 // loop_body
      %s17 = ssub.s32 %s12, 1
      %s18 = ssub.s32 %s12, 2
      %s25 = sadd.s32 1, %s20
      %p26 = scmp.ge.s32.totalorder %s25, 1
      %s27 = scalar_select %p26, 0, %s25
      %s28 = sadd.s32 1, %s19
      %s29 = scalar_select %p26, %s28, %s19
      %p30 = scmp.ge.s32.totalorder %s29, 2
      %s31 = scalar_select %p30, 0, %s29
      %s32 = ssub.s32 %s19, %s31
      %s33 = ssub.s32 %s20, %s27
      %s34 = sor.u32 %s32, %s33
      %p35 = scmp.eq.s32.totalorder %s34, 0
      %s37 = sadd.s32 %s36, 1
      %s38 = scalar_select %p35, %s36, %s37
      %p41 = pneg %p35
      %p42 = scmp.eq.s32.totalorder %s12, 1
      %p43 = por %p41, %p42
      %p44 = scmp.ne.s32.totalorder %s36, %s39
      %p45 = scmp.eq.s32.totalorder %s12, 0
      %p46 = por %p44, %p45
      %p47 = scmp.ne.s32.totalorder %s36, %s39
      %p48 = scmp.eq.s32.totalorder %s17, 1
      %p49 = por %p47, %p48
      %p50 = scmp.ne.s32.totalorder %s39, %s40
      %p51 = scmp.eq.s32.totalorder %s17, 0
      %p52 = por %p50, %p51
      %p53 = scmp.ne.s32.totalorder %s39, %s40
      %p54 = scmp.eq.s32.totalorder %s18, 1
      %p55 = por %p53, %p54
      %p57 = scmp.ne.s32.totalorder %s40, %s56
      %p58 = scmp.eq.s32.totalorder %s18, 0
      %p59 = por %p57, %p58
      %s61 = sadd.s32 %s60, 1
      %p64 = scmp.eq.s32.totalorder %s12, 1
      %p65 = scmp.ne.s32.totalorder %s60, %s62
      %p66 = scmp.eq.s32.totalorder %s12, 0
      %p67 = por %p65, %p66
      %p68 = scmp.ne.s32.totalorder %s60, %s62
      %p69 = scmp.eq.s32.totalorder %s17, 1
      %p70 = por %p68, %p69
      %p71 = scmp.ne.s32.totalorder %s62, %s63
      %p72 = scmp.eq.s32.totalorder %s17, 0
      %p73 = por %p71, %p72
      %p74 = scmp.ne.s32.totalorder %s62, %s63
      %p75 = scmp.eq.s32.totalorder %s18, 1
      %p76 = por %p74, %p75
      %p78 = scmp.ne.s32.totalorder %s63, %s77
      %p79 = scmp.eq.s32.totalorder %s18, 0
      %p80 = por %p78, %p79
      %s81 = ssub.s32 %s19, %s31
      %s82 = ssub.s32 %s20, %s27
      %s83 = sor.u32 %s81, %s82
      %p84 = scmp.eq.s32.totalorder %s83, 0
      %s86 = sadd.s32 %s85, 1
      %s87 = scalar_select %p84, %s85, %s86
      %p90 = pneg %p84
      %p91 = scmp.eq.s32.totalorder %s12, 1
      %p92 = por %p90, %p91
      %p93 = scmp.ne.s32.totalorder %s85, %s88
      %p94 = scmp.eq.s32.totalorder %s12, 0
      %p95 = por %p93, %p94
      %p96 = scmp.ne.s32.totalorder %s85, %s88
      %p97 = scmp.eq.s32.totalorder %s17, 1
      %p98 = por %p96, %p97
      %p99 = scmp.ne.s32.totalorder %s88, %s89
      %p100 = scmp.eq.s32.totalorder %s17, 0
      %p101 = por %p99, %p100
      %p102 = scmp.ne.s32.totalorder %s88, %s89
      %p103 = scmp.eq.s32.totalorder %s18, 1
      %p104 = por %p102, %p103
      %p106 = scmp.ne.s32.totalorder %s89, %s105
      %p107 = scmp.eq.s32.totalorder %s18, 0
      %p108 = por %p106, %p107
      %p109 = scmp.le.s32.totalorder 1, %s12
      %p110 = scmp.lt.s32.totalorder %s12, 3
      %p111 = pnand %p109, %p110
      %p112 = pneg %p111
      // Predicated region
      $region9: #{tpu_custom_call.1} parent=5 // pred_check
        _
      $region10: #{tpu_custom_call.1} parent=5 // pred_check_branch
        %114 = sbr.rel (%p111) target = $region12
      $region11: #{tpu_custom_call.1} parent=5 // pred_region
        %s115 = ssub.s32 %s12, 1
        // Predicated region
        $region13: #{tpu_custom_call.1} parent=11 // pred_check
          %p116 = pneg %p73
        $region14: #{tpu_custom_call.1} parent=11 // pred_check_branch
          %118 = sbr.rel (%p116) target = $region16
        $region15: #{tpu_custom_call.1} parent=11 // pred_region
          %120 = vsyncadd [#allocation5], 0
          %s121 = sshll.u32 %s1, 4
          %s122 = int_to_ptr.hbm [resolvable:$true] %s121
          %s123 = sshll.u32 [#allocation4], 4
          %s124 = int_to_ptr.vmem [resolvable:$true] %s123
          %129 = dma.hbm_to_vmem [thread:$0]  %s122, 4096, %s124, [#allocation5], 1024, 1024, 64
        $region16: #{tpu_custom_call.1} parent=11 // pred_fallthru
          _
      $region12: #{tpu_custom_call.1} parent=5 // pred_fallthru
        _
      %p130 = scmp.lt.s32.totalorder %s12, 2
      // Predicated region
      $region17: #{tpu_custom_call.1} parent=5 // pred_check
        %p131 = pneg %p130
      $region18: #{tpu_custom_call.1} parent=5 // pred_check_branch
        %133 = sbr.rel (%p131) target = $region20
      $region19: #{tpu_custom_call.1} parent=5 // pred_region
        // Predicated region
        $region21: #{tpu_custom_call.1} parent=19 // pred_check
          %p134 = pneg %p46
        $region22: #{tpu_custom_call.1} parent=19 // pred_check_branch
          %136 = sbr.rel (%p134) target = $region24
        $region23: #{tpu_custom_call.1} parent=19 // pred_region
          %s137 = sand.u32 %s36, 1
          %s138 = scalar_lea.sflag [#allocation3], %s137
          %s139 = sand.u32 %s36, 1
          %s140 = scalar_lea.vmem [#allocation2], %s139
          %142 = vsyncadd %s138, 0
          %s143 = sadd.s32 %s20, %s19
          %s144 = scalar_lea.hbm %s0, %s143
          %s146 = sshll.u32 %s144, 4
          %s147 = int_to_ptr.hbm [resolvable:$true] %s146
          %s148 = sshll.u32 %s140, 4
          %s149 = int_to_ptr.vmem [resolvable:$true] %s148
          %151 = dma.hbm_to_vmem [thread:$0]  %s147, 16, %s149, %s138
        $region24: #{tpu_custom_call.1} parent=19 // pred_fallthru
          _
      $region20: #{tpu_custom_call.1} parent=5 // pred_fallthru
        _
      %p152 = scmp.le.s32.totalorder 1, %s12
      %p153 = scmp.lt.s32.totalorder %s12, 3
      %p154 = pnand %p152, %p153
      %p155 = pneg %p154
      // Predicated region
      $region25: #{tpu_custom_call.1} parent=5 // pred_check
        _
      $region26: #{tpu_custom_call.1} parent=5 // pred_check_branch
        %157 = sbr.rel (%p154) target = $region28
      $region27: #{tpu_custom_call.1} parent=5 // pred_region
        %s158 = ssub.s32 %s12, 1
        %s159 = sand.u32 %s39, 1
        %s160 = scalar_lea.sflag [#allocation3], %s159
        %s161 = sand.u32 %s39, 1
        %s162 = scalar_lea.vmem [#allocation2], %s161
        // Predicated region
        $region29: #{tpu_custom_call.1} parent=27 // pred_check
          %p163 = pneg %p52
        $region30: #{tpu_custom_call.1} parent=27 // pred_check_branch
          %165 = sbr.rel (%p163) target = $region32
        $region31: #{tpu_custom_call.1} parent=27 // pred_region
          %167 = dma.done %s160, 16
        $region32: #{tpu_custom_call.1} parent=27 // pred_fallthru
          _
        // Predicated region
        $region33: #{tpu_custom_call.1} parent=27 // pred_check
          %p168 = pneg %p73
        $region34: #{tpu_custom_call.1} parent=27 // pred_check_branch
          %170 = sbr.rel (%p168) target = $region36
        $region35: #{tpu_custom_call.1} parent=27 // pred_region
          %172 = dma.done [#allocation5], 4096
        $region36: #{tpu_custom_call.1} parent=27 // pred_fallthru
          _
        %s173 = sand.u32 %s39, 1
        %s174 = scalar_lea.sflag [#allocation3], %s173
        %s175 = sand.u32 %s39, 1
        %s176 = scalar_lea.vmem [#allocation2], %s175
        %p177 = pneg %p52
        %p178 = pneg %p49
        %p179 = pneg %p73
        %p180 = pneg %p70
        %p181 = pneg %p101
        %p182 = pneg %p98
        %p183 = scmp.lt.s32.totalorder %s21, 1
        %s184 = scalar_select %p183, %s21, 1
        %p185 = scmp.lt.s32.totalorder %s22, 0
        %s186 = scalar_select %p185, %s22, 0
        %s187 = smul.addr %s184, 4
        %s188 = sadd.s32 %s186, %s187
        %s189 = smul.addr %s188, 8
        %s190 = scalar_lea.vmem %s2, %s189
        %p191 = scmp.lt.s32.totalorder %s21, 1
        %s192 = scalar_select %p191, %s21, 1
        %p193 = scmp.lt.s32.totalorder %s22, 0
        %s194 = scalar_select %p193, %s22, 0
        %s195 = smul.addr %s192, 4
        %s196 = sadd.s32 %s194, %s195
        %s197 = smul.addr %s196, 8
        %s198 = scalar_lea.vmem %s2, %s197
        %v199 = vld [vmem:[%s162] sm:$0x1]
        %v200 = vlaneseq
        %v201 = vshrl.u32 %v200, 7
        %v202 = vadd.s32 %v201, 8
        %v203 = vadd.s32 %v201, 16
        %v204 = vadd.s32 %v201, 24
        %v205 = vadd.s32 %v201, 32
        %v206 = vadd.s32 %v201, 40
        %v207 = vadd.s32 %v201, 48
        %v208 = vadd.s32 %v201, 56
        %v209 = vadd.s32 %v201, 64
        %v210 = vadd.s32 %v201, 72
        %v211 = vadd.s32 %v201, 80
        %v212 = vadd.s32 %v201, 88
        %v213 = vadd.s32 %v201, 96
        %v214 = vadd.s32 %v201, 104
        %v215 = vadd.s32 %v201, 112
        %v216 = vadd.s32 %v201, 120
        %v217 = vadd.s32 %v201, 128
        %v218 = vadd.s32 %v201, 136
        %v219 = vadd.s32 %v201, 144
        %v220 = vadd.s32 %v201, 152
        %v221 = vadd.s32 %v201, 160
        %v222 = vadd.s32 %v201, 168
        %v223 = vadd.s32 %v201, 176
        %v224 = vadd.s32 %v201, 184
        %v225 = vadd.s32 %v201, 192
        %v226 = vadd.s32 %v201, 200
        %v227 = vadd.s32 %v201, 208
        %v228 = vadd.s32 %v201, 216
        %v229 = vadd.s32 %v201, 224
        %v230 = vadd.s32 %v201, 232
        %v231 = vadd.s32 %v201, 240
        %v232 = vadd.s32 %v201, 248
        %v233 = vadd.s32 %v201, 256
        %v234 = vadd.s32 %v201, 264
        %v235 = vadd.s32 %v201, 272
        %v236 = vadd.s32 %v201, 280
        %v237 = vadd.s32 %v201, 288
        %v238 = vadd.s32 %v201, 296
        %v239 = vadd.s32 %v201, 304
        %v240 = vadd.s32 %v201, 312
        %v241 = vadd.s32 %v201, 320
        %v242 = vadd.s32 %v201, 328
        %v243 = vadd.s32 %v201, 336
        %v244 = vadd.s32 %v201, 344
        %v245 = vadd.s32 %v201, 352
        %v246 = vadd.s32 %v201, 360
        %v247 = vadd.s32 %v201, 368
        %v248 = vadd.s32 %v201, 376
        %v249 = vadd.s32 %v201, 384
        %v250 = vadd.s32 %v201, 392
        %v251 = vadd.s32 %v201, 400
        %v252 = vadd.s32 %v201, 408
        %v253 = vadd.s32 %v201, 416
        %v254 = vadd.s32 %v201, 424
        %v255 = vadd.s32 %v201, 432
        %v256 = vadd.s32 %v201, 440
        %v257 = vadd.s32 %v201, 448
        %v258 = vadd.s32 %v201, 456
        %v259 = vadd.s32 %v201, 464
        %v260 = vadd.s32 %v201, 472
        %v261 = vadd.s32 %v201, 480
        %v262 = vadd.s32 %v201, 488
        %v263 = vadd.s32 %v201, 496
        %v264 = vadd.s32 %v201, 504
        %v265 = vadd.s32 %v201, 512
        %v266 = vadd.s32 %v201, 520
        %v267 = vadd.s32 %v201, 528
        %v268 = vadd.s32 %v201, 536
        %v269 = vadd.s32 %v201, 544
        %v270 = vadd.s32 %v201, 552
        %v271 = vadd.s32 %v201, 560
        %v272 = vadd.s32 %v201, 568
        %v273 = vadd.s32 %v201, 576
        %v274 = vadd.s32 %v201, 584
        %v275 = vadd.s32 %v201, 592
        %v276 = vadd.s32 %v201, 600
        %v277 = vadd.s32 %v201, 608
        %v278 = vadd.s32 %v201, 616
        %v279 = vadd.s32 %v201, 624
        %v280 = vadd.s32 %v201, 632
        %v281 = vadd.s32 %v201, 640
        %v282 = vadd.s32 %v201, 648
        %v283 = vadd.s32 %v201, 656
        %v284 = vadd.s32 %v201, 664
        %v285 = vadd.s32 %v201, 672
        %v286 = vadd.s32 %v201, 680
        %v287 = vadd.s32 %v201, 688
        %v288 = vadd.s32 %v201, 696
        %v289 = vadd.s32 %v201, 704
        %v290 = vadd.s32 %v201, 712
        %v291 = vadd.s32 %v201, 720
        %v292 = vadd.s32 %v201, 728
        %v293 = vadd.s32 %v201, 736
        %v294 = vadd.s32 %v201, 744
        %v295 = vadd.s32 %v201, 752
        %v296 = vadd.s32 %v201, 760
        %v297 = vadd.s32 %v201, 768
        %v298 = vadd.s32 %v201, 776
        %v299 = vadd.s32 %v201, 784
        %v300 = vadd.s32 %v201, 792
        %v301 = vadd.s32 %v201, 800
        %v302 = vadd.s32 %v201, 808
        %v303 = vadd.s32 %v201, 816
        %v304 = vadd.s32 %v201, 824
        %v305 = vadd.s32 %v201, 832
        %v306 = vadd.s32 %v201, 840
        %v307 = vadd.s32 %v201, 848
        %v308 = vadd.s32 %v201, 856
        %v309 = vadd.s32 %v201, 864
        %v310 = vadd.s32 %v201, 872
        %v311 = vadd.s32 %v201, 880
        %v312 = vadd.s32 %v201, 888
        %v313 = vadd.s32 %v201, 896
        %v314 = vadd.s32 %v201, 904
        %v315 = vadd.s32 %v201, 912
        %v316 = vadd.s32 %v201, 920
        %v317 = vadd.s32 %v201, 928
        %v318 = vadd.s32 %v201, 936
        %v319 = vadd.s32 %v201, 944
        %v320 = vadd.s32 %v201, 952
        %v321 = vadd.s32 %v201, 960
        %v322 = vadd.s32 %v201, 968
        %v323 = vadd.s32 %v201, 976
        %v324 = vadd.s32 %v201, 984
        %v325 = vadd.s32 %v201, 992
        %v326 = vadd.s32 %v201, 1000
        %v327 = vadd.s32 %v201, 1008
        %v328 = vadd.s32 %v201, 1016
        %v329 = vperm.slane %v199, 0
        %vm330 = vcmp.eq.s32.totalorder %v201, %v329
        %vm331 = vcmp.eq.s32.totalorder %v202, %v329
        %vm332 = vcmp.eq.s32.totalorder %v203, %v329
        %vm333 = vcmp.eq.s32.totalorder %v204, %v329
        %vm334 = vcmp.eq.s32.totalorder %v205, %v329
        %vm335 = vcmp.eq.s32.totalorder %v206, %v329
        %vm336 = vcmp.eq.s32.totalorder %v207, %v329
        %vm337 = vcmp.eq.s32.totalorder %v208, %v329
        %vm338 = vcmp.eq.s32.totalorder %v209, %v329
        %vm339 = vcmp.eq.s32.totalorder %v210, %v329
        %vm340 = vcmp.eq.s32.totalorder %v211, %v329
        %vm341 = vcmp.eq.s32.totalorder %v212, %v329
        %vm342 = vcmp.eq.s32.totalorder %v213, %v329
        %vm343 = vcmp.eq.s32.totalorder %v214, %v329
        %vm344 = vcmp.eq.s32.totalorder %v215, %v329
        %vm345 = vcmp.eq.s32.totalorder %v216, %v329
        %vm346 = vcmp.eq.s32.totalorder %v217, %v329
        %vm347 = vcmp.eq.s32.totalorder %v218, %v329
        %vm348 = vcmp.eq.s32.totalorder %v219, %v329
        %vm349 = vcmp.eq.s32.totalorder %v220, %v329
        %vm350 = vcmp.eq.s32.totalorder %v221, %v329
        %vm351 = vcmp.eq.s32.totalorder %v222, %v329
        %vm352 = vcmp.eq.s32.totalorder %v223, %v329
        %vm353 = vcmp.eq.s32.totalorder %v224, %v329
        %vm354 = vcmp.eq.s32.totalorder %v225, %v329
        %vm355 = vcmp.eq.s32.totalorder %v226, %v329
        %vm356 = vcmp.eq.s32.totalorder %v227, %v329
        %vm357 = vcmp.eq.s32.totalorder %v228, %v329
        %vm358 = vcmp.eq.s32.totalorder %v229, %v329
        %vm359 = vcmp.eq.s32.totalorder %v230, %v329
        %vm360 = vcmp.eq.s32.totalorder %v231, %v329
        %vm361 = vcmp.eq.s32.totalorder %v232, %v329
        %vm362 = vcmp.eq.s32.totalorder %v233, %v329
        %vm363 = vcmp.eq.s32.totalorder %v234, %v329
        %vm364 = vcmp.eq.s32.totalorder %v235, %v329
        %vm365 = vcmp.eq.s32.totalorder %v236, %v329
        %vm366 = vcmp.eq.s32.totalorder %v237, %v329
        %vm367 = vcmp.eq.s32.totalorder %v238, %v329
        %vm368 = vcmp.eq.s32.totalorder %v239, %v329
        %vm369 = vcmp.eq.s32.totalorder %v240, %v329
        %vm370 = vcmp.eq.s32.totalorder %v241, %v329
        %vm371 = vcmp.eq.s32.totalorder %v242, %v329
        %vm372 = vcmp.eq.s32.totalorder %v243, %v329
        %vm373 = vcmp.eq.s32.totalorder %v244, %v329
        %vm374 = vcmp.eq.s32.totalorder %v245, %v329
        %vm375 = vcmp.eq.s32.totalorder %v246, %v329
        %vm376 = vcmp.eq.s32.totalorder %v247, %v329
        %vm377 = vcmp.eq.s32.totalorder %v248, %v329
        %vm378 = vcmp.eq.s32.totalorder %v249, %v329
        %vm379 = vcmp.eq.s32.totalorder %v250, %v329
        %vm380 = vcmp.eq.s32.totalorder %v251, %v329
        %vm381 = vcmp.eq.s32.totalorder %v252, %v329
        %vm382 = vcmp.eq.s32.totalorder %v253, %v329
        %vm383 = vcmp.eq.s32.totalorder %v254, %v329
        %vm384 = vcmp.eq.s32.totalorder %v255, %v329
        %vm385 = vcmp.eq.s32.totalorder %v256, %v329
        %vm386 = vcmp.eq.s32.totalorder %v257, %v329
        %vm387 = vcmp.eq.s32.totalorder %v258, %v329
        %vm388 = vcmp.eq.s32.totalorder %v259, %v329
        %vm389 = vcmp.eq.s32.totalorder %v260, %v329
        %vm390 = vcmp.eq.s32.totalorder %v261, %v329
        %vm391 = vcmp.eq.s32.totalorder %v262, %v329
        %vm392 = vcmp.eq.s32.totalorder %v263, %v329
        %vm393 = vcmp.eq.s32.totalorder %v264, %v329
        %vm394 = vcmp.eq.s32.totalorder %v265, %v329
        %vm395 = vcmp.eq.s32.totalorder %v266, %v329
        %vm396 = vcmp.eq.s32.totalorder %v267, %v329
        %vm397 = vcmp.eq.s32.totalorder %v268, %v329
        %vm398 = vcmp.eq.s32.totalorder %v269, %v329
        %vm399 = vcmp.eq.s32.totalorder %v270, %v329
        %vm400 = vcmp.eq.s32.totalorder %v271, %v329
        %vm401 = vcmp.eq.s32.totalorder %v272, %v329
        %vm402 = vcmp.eq.s32.totalorder %v273, %v329
        %vm403 = vcmp.eq.s32.totalorder %v274, %v329
        %vm404 = vcmp.eq.s32.totalorder %v275, %v329
        %vm405 = vcmp.eq.s32.totalorder %v276, %v329
        %vm406 = vcmp.eq.s32.totalorder %v277, %v329
        %vm407 = vcmp.eq.s32.totalorder %v278, %v329
        %vm408 = vcmp.eq.s32.totalorder %v279, %v329
        %vm409 = vcmp.eq.s32.totalorder %v280, %v329
        %vm410 = vcmp.eq.s32.totalorder %v281, %v329
        %vm411 = vcmp.eq.s32.totalorder %v282, %v329
        %vm412 = vcmp.eq.s32.totalorder %v283, %v329
        %vm413 = vcmp.eq.s32.totalorder %v284, %v329
        %vm414 = vcmp.eq.s32.totalorder %v285, %v329
        %vm415 = vcmp.eq.s32.totalorder %v286, %v329
        %vm416 = vcmp.eq.s32.totalorder %v287, %v329
        %vm417 = vcmp.eq.s32.totalorder %v288, %v329
        %vm418 = vcmp.eq.s32.totalorder %v289, %v329
        %vm419 = vcmp.eq.s32.totalorder %v290, %v329
        %vm420 = vcmp.eq.s32.totalorder %v291, %v329
        %vm421 = vcmp.eq.s32.totalorder %v292, %v329
        %vm422 = vcmp.eq.s32.totalorder %v293, %v329
        %vm423 = vcmp.eq.s32.totalorder %v294, %v329
        %vm424 = vcmp.eq.s32.totalorder %v295, %v329
        %vm425 = vcmp.eq.s32.totalorder %v296, %v329
        %vm426 = vcmp.eq.s32.totalorder %v297, %v329
        %vm427 = vcmp.eq.s32.totalorder %v298, %v329
        %vm428 = vcmp.eq.s32.totalorder %v299, %v329
        %vm429 = vcmp.eq.s32.totalorder %v300, %v329
        %vm430 = vcmp.eq.s32.totalorder %v301, %v329
        %vm431 = vcmp.eq.s32.totalorder %v302, %v329
        %vm432 = vcmp.eq.s32.totalorder %v303, %v329
        %vm433 = vcmp.eq.s32.totalorder %v304, %v329
        %vm434 = vcmp.eq.s32.totalorder %v305, %v329
        %vm435 = vcmp.eq.s32.totalorder %v306, %v329
        %vm436 = vcmp.eq.s32.totalorder %v307, %v329
        %vm437 = vcmp.eq.s32.totalorder %v308, %v329
        %vm438 = vcmp.eq.s32.totalorder %v309, %v329
        %vm439 = vcmp.eq.s32.totalorder %v310, %v329
        %vm440 = vcmp.eq.s32.totalorder %v311, %v329
        %vm441 = vcmp.eq.s32.totalorder %v312, %v329
        %vm442 = vcmp.eq.s32.totalorder %v313, %v329
        %vm443 = vcmp.eq.s32.totalorder %v314, %v329
        %vm444 = vcmp.eq.s32.totalorder %v315, %v329
        %vm445 = vcmp.eq.s32.totalorder %v316, %v329
        %vm446 = vcmp.eq.s32.totalorder %v317, %v329
        %vm447 = vcmp.eq.s32.totalorder %v318, %v329
        %vm448 = vcmp.eq.s32.totalorder %v319, %v329
        %vm449 = vcmp.eq.s32.totalorder %v320, %v329
        %vm450 = vcmp.eq.s32.totalorder %v321, %v329
        %vm451 = vcmp.eq.s32.totalorder %v322, %v329
        %vm452 = vcmp.eq.s32.totalorder %v323, %v329
        %vm453 = vcmp.eq.s32.totalorder %v324, %v329
        %vm454 = vcmp.eq.s32.totalorder %v325, %v329
        %vm455 = vcmp.eq.s32.totalorder %v326, %v329
        %vm456 = vcmp.eq.s32.totalorder %v327, %v329
        %vm457 = vcmp.eq.s32.totalorder %v328, %v329
        %v458 = vsel %vm330, 1, 0
        %v459 = vsel %vm331, 1, 0
        %v460 = vsel %vm332, 1, 0
        %v461 = vsel %vm333, 1, 0
        %v462 = vsel %vm334, 1, 0
        %v463 = vsel %vm335, 1, 0
        %v464 = vsel %vm336, 1, 0
        %v465 = vsel %vm337, 1, 0
        %v466 = vsel %vm338, 1, 0
        %v467 = vsel %vm339, 1, 0
        %v468 = vsel %vm340, 1, 0
        %v469 = vsel %vm341, 1, 0
        %v470 = vsel %vm342, 1, 0
        %v471 = vsel %vm343, 1, 0
        %v472 = vsel %vm344, 1, 0
        %v473 = vsel %vm345, 1, 0
        %v474 = vsel %vm346, 1, 0
        %v475 = vsel %vm347, 1, 0
        %v476 = vsel %vm348, 1, 0
        %v477 = vsel %vm349, 1, 0
        %v478 = vsel %vm350, 1, 0
        %v479 = vsel %vm351, 1, 0
        %v480 = vsel %vm352, 1, 0
        %v481 = vsel %vm353, 1, 0
        %v482 = vsel %vm354, 1, 0
        %v483 = vsel %vm355, 1, 0
        %v484 = vsel %vm356, 1, 0
        %v485 = vsel %vm357, 1, 0
        %v486 = vsel %vm358, 1, 0
        %v487 = vsel %vm359, 1, 0
        %v488 = vsel %vm360, 1, 0
        %v489 = vsel %vm361, 1, 0
        %v490 = vsel %vm362, 1, 0
        %v491 = vsel %vm363, 1, 0
        %v492 = vsel %vm364, 1, 0
        %v493 = vsel %vm365, 1, 0
        %v494 = vsel %vm366, 1, 0
        %v495 = vsel %vm367, 1, 0
        %v496 = vsel %vm368, 1, 0
        %v497 = vsel %vm369, 1, 0
        %v498 = vsel %vm370, 1, 0
        %v499 = vsel %vm371, 1, 0
        %v500 = vsel %vm372, 1, 0
        %v501 = vsel %vm373, 1, 0
        %v502 = vsel %vm374, 1, 0
        %v503 = vsel %vm375, 1, 0
        %v504 = vsel %vm376, 1, 0
        %v505 = vsel %vm377, 1, 0
        %v506 = vsel %vm378, 1, 0
        %v507 = vsel %vm379, 1, 0
        %v508 = vsel %vm380, 1, 0
        %v509 = vsel %vm381, 1, 0
        %v510 = vsel %vm382, 1, 0
        %v511 = vsel %vm383, 1, 0
        %v512 = vsel %vm384, 1, 0
        %v513 = vsel %vm385, 1, 0
        %v514 = vsel %vm386, 1, 0
        %v515 = vsel %vm387, 1, 0
        %v516 = vsel %vm388, 1, 0
        %v517 = vsel %vm389, 1, 0
        %v518 = vsel %vm390, 1, 0
        %v519 = vsel %vm391, 1, 0
        %v520 = vsel %vm392, 1, 0
        %v521 = vsel %vm393, 1, 0
        %v522 = vsel %vm394, 1, 0
        %v523 = vsel %vm395, 1, 0
        %v524 = vsel %vm396, 1, 0
        %v525 = vsel %vm397, 1, 0
        %v526 = vsel %vm398, 1, 0
        %v527 = vsel %vm399, 1, 0
        %v528 = vsel %vm400, 1, 0
        %v529 = vsel %vm401, 1, 0
        %v530 = vsel %vm402, 1, 0
        %v531 = vsel %vm403, 1, 0
        %v532 = vsel %vm404, 1, 0
        %v533 = vsel %vm405, 1, 0
        %v534 = vsel %vm406, 1, 0
        %v535 = vsel %vm407, 1, 0
        %v536 = vsel %vm408, 1, 0
        %v537 = vsel %vm409, 1, 0
        %v538 = vsel %vm410, 1, 0
        %v539 = vsel %vm411, 1, 0
        %v540 = vsel %vm412, 1, 0
        %v541 = vsel %vm413, 1, 0
        %v542 = vsel %vm414, 1, 0
        %v543 = vsel %vm415, 1, 0
        %v544 = vsel %vm416, 1, 0
        %v545 = vsel %vm417, 1, 0
        %v546 = vsel %vm418, 1, 0
        %v547 = vsel %vm419, 1, 0
        %v548 = vsel %vm420, 1, 0
        %v549 = vsel %vm421, 1, 0
        %v550 = vsel %vm422, 1, 0
        %v551 = vsel %vm423, 1, 0
        %v552 = vsel %vm424, 1, 0
        %v553 = vsel %vm425, 1, 0
        %v554 = vsel %vm426, 1, 0
        %v555 = vsel %vm427, 1, 0
        %v556 = vsel %vm428, 1, 0
        %v557 = vsel %vm429, 1, 0
        %v558 = vsel %vm430, 1, 0
        %v559 = vsel %vm431, 1, 0
        %v560 = vsel %vm432, 1, 0
        %v561 = vsel %vm433, 1, 0
        %v562 = vsel %vm434, 1, 0
        %v563 = vsel %vm435, 1, 0
        %v564 = vsel %vm436, 1, 0
        %v565 = vsel %vm437, 1, 0
        %v566 = vsel %vm438, 1, 0
        %v567 = vsel %vm439, 1, 0
        %v568 = vsel %vm440, 1, 0
        %v569 = vsel %vm441, 1, 0
        %v570 = vsel %vm442, 1, 0
        %v571 = vsel %vm443, 1, 0
        %v572 = vsel %vm444, 1, 0
        %v573 = vsel %vm445, 1, 0
        %v574 = vsel %vm446, 1, 0
        %v575 = vsel %vm447, 1, 0
        %v576 = vsel %vm448, 1, 0
        %v577 = vsel %vm449, 1, 0
        %v578 = vsel %vm450, 1, 0
        %v579 = vsel %vm451, 1, 0
        %v580 = vsel %vm452, 1, 0
        %v581 = vsel %vm453, 1, 0
        %v582 = vsel %vm454, 1, 0
        %v583 = vsel %vm455, 1, 0
        %v584 = vsel %vm456, 1, 0
        %v585 = vsel %vm457, 1, 0
        %v586 = vcvt.s32.f32 %v458
        %v587 = vcvt.s32.f32 %v459
        %v588 = vcvt.s32.f32 %v460
        %v589 = vcvt.s32.f32 %v461
        %v590 = vcvt.s32.f32 %v462
        %v591 = vcvt.s32.f32 %v463
        %v592 = vcvt.s32.f32 %v464
        %v593 = vcvt.s32.f32 %v465
        %v594 = vcvt.s32.f32 %v466
        %v595 = vcvt.s32.f32 %v467
        %v596 = vcvt.s32.f32 %v468
        %v597 = vcvt.s32.f32 %v469
        %v598 = vcvt.s32.f32 %v470
        %v599 = vcvt.s32.f32 %v471
        %v600 = vcvt.s32.f32 %v472
        %v601 = vcvt.s32.f32 %v473
        %v602 = vcvt.s32.f32 %v474
        %v603 = vcvt.s32.f32 %v475
        %v604 = vcvt.s32.f32 %v476
        %v605 = vcvt.s32.f32 %v477
        %v606 = vcvt.s32.f32 %v478
        %v607 = vcvt.s32.f32 %v479
        %v608 = vcvt.s32.f32 %v480
        %v609 = vcvt.s32.f32 %v481
        %v610 = vcvt.s32.f32 %v482
        %v611 = vcvt.s32.f32 %v483
        %v612 = vcvt.s32.f32 %v484
        %v613 = vcvt.s32.f32 %v485
        %v614 = vcvt.s32.f32 %v486
        %v615 = vcvt.s32.f32 %v487
        %v616 = vcvt.s32.f32 %v488
        %v617 = vcvt.s32.f32 %v489
        %v618 = vcvt.s32.f32 %v490
        %v619 = vcvt.s32.f32 %v491
        %v620 = vcvt.s32.f32 %v492
        %v621 = vcvt.s32.f32 %v493
        %v622 = vcvt.s32.f32 %v494
        %v623 = vcvt.s32.f32 %v495
        %v624 = vcvt.s32.f32 %v496
        %v625 = vcvt.s32.f32 %v497
        %v626 = vcvt.s32.f32 %v498
        %v627 = vcvt.s32.f32 %v499
        %v628 = vcvt.s32.f32 %v500
        %v629 = vcvt.s32.f32 %v501
        %v630 = vcvt.s32.f32 %v502
        %v631 = vcvt.s32.f32 %v503
        %v632 = vcvt.s32.f32 %v504
        %v633 = vcvt.s32.f32 %v505
        %v634 = vcvt.s32.f32 %v506
        %v635 = vcvt.s32.f32 %v507
        %v636 = vcvt.s32.f32 %v508
        %v637 = vcvt.s32.f32 %v509
        %v638 = vcvt.s32.f32 %v510
        %v639 = vcvt.s32.f32 %v511
        %v640 = vcvt.s32.f32 %v512
        %v641 = vcvt.s32.f32 %v513
        %v642 = vcvt.s32.f32 %v514
        %v643 = vcvt.s32.f32 %v515
        %v644 = vcvt.s32.f32 %v516
        %v645 = vcvt.s32.f32 %v517
        %v646 = vcvt.s32.f32 %v518
        %v647 = vcvt.s32.f32 %v519
        %v648 = vcvt.s32.f32 %v520
        %v649 = vcvt.s32.f32 %v521
        %v650 = vcvt.s32.f32 %v522
        %v651 = vcvt.s32.f32 %v523
        %v652 = vcvt.s32.f32 %v524
        %v653 = vcvt.s32.f32 %v525
        %v654 = vcvt.s32.f32 %v526
        %v655 = vcvt.s32.f32 %v527
        %v656 = vcvt.s32.f32 %v528
        %v657 = vcvt.s32.f32 %v529
        %v658 = vcvt.s32.f32 %v530
        %v659 = vcvt.s32.f32 %v531
        %v660 = vcvt.s32.f32 %v532
        %v661 = vcvt.s32.f32 %v533
        %v662 = vcvt.s32.f32 %v534
        %v663 = vcvt.s32.f32 %v535
        %v664 = vcvt.s32.f32 %v536
        %v665 = vcvt.s32.f32 %v537
        %v666 = vcvt.s32.f32 %v538
        %v667 = vcvt.s32.f32 %v539
        %v668 = vcvt.s32.f32 %v540
        %v669 = vcvt.s32.f32 %v541
        %v670 = vcvt.s32.f32 %v542
        %v671 = vcvt.s32.f32 %v543
        %v672 = vcvt.s32.f32 %v544
        %v673 = vcvt.s32.f32 %v545
        %v674 = vcvt.s32.f32 %v546
        %v675 = vcvt.s32.f32 %v547
        %v676 = vcvt.s32.f32 %v548
        %v677 = vcvt.s32.f32 %v549
        %v678 = vcvt.s32.f32 %v550
        %v679 = vcvt.s32.f32 %v551
        %v680 = vcvt.s32.f32 %v552
        %v681 = vcvt.s32.f32 %v553
        %v682 = vcvt.s32.f32 %v554
        %v683 = vcvt.s32.f32 %v555
        %v684 = vcvt.s32.f32 %v556
        %v685 = vcvt.s32.f32 %v557
        %v686 = vcvt.s32.f32 %v558
        %v687 = vcvt.s32.f32 %v559
        %v688 = vcvt.s32.f32 %v560
        %v689 = vcvt.s32.f32 %v561
        %v690 = vcvt.s32.f32 %v562
        %v691 = vcvt.s32.f32 %v563
        %v692 = vcvt.s32.f32 %v564
        %v693 = vcvt.s32.f32 %v565
        %v694 = vcvt.s32.f32 %v566
        %v695 = vcvt.s32.f32 %v567
        %v696 = vcvt.s32.f32 %v568
        %v697 = vcvt.s32.f32 %v569
        %v698 = vcvt.s32.f32 %v570
        %v699 = vcvt.s32.f32 %v571
        %v700 = vcvt.s32.f32 %v572
        %v701 = vcvt.s32.f32 %v573
        %v702 = vcvt.s32.f32 %v574
        %v703 = vcvt.s32.f32 %v575
        %v704 = vcvt.s32.f32 %v576
        %v705 = vcvt.s32.f32 %v577
        %v706 = vcvt.s32.f32 %v578
        %v707 = vcvt.s32.f32 %v579
        %v708 = vcvt.s32.f32 %v580
        %v709 = vcvt.s32.f32 %v581
        %v710 = vcvt.s32.f32 %v582
        %v711 = vcvt.s32.f32 %v583
        %v712 = vcvt.s32.f32 %v584
        %v713 = vcvt.s32.f32 %v585
        %v714 = vld [vmem:[#allocation4] sm:$0xff]
        %v715 = vld [vmem:[#allocation4 + $0x8] sm:$0xff]
        %v716 = vld [vmem:[#allocation4 + $0x10] sm:$0xff]
        %v717 = vld [vmem:[#allocation4 + $0x18] sm:$0xff]
        %v718 = vld [vmem:[#allocation4 + $0x20] sm:$0xff]
        %v719 = vld [vmem:[#allocation4 + $0x28] sm:$0xff]
        %v720 = vld [vmem:[#allocation4 + $0x30] sm:$0xff]
        %v721 = vld [vmem:[#allocation4 + $0x38] sm:$0xff]
        %v722 = vld [vmem:[#allocation4 + $0x40] sm:$0xff]
        %v723 = vld [vmem:[#allocation4 + $0x48] sm:$0xff]
        %v724 = vld [vmem:[#allocation4 + $0x50] sm:$0xff]
        %v725 = vld [vmem:[#allocation4 + $0x58] sm:$0xff]
        %v726 = vld [vmem:[#allocation4 + $0x60] sm:$0xff]
        %v727 = vld [vmem:[#allocation4 + $0x68] sm:$0xff]
        %v728 = vld [vmem:[#allocation4 + $0x70] sm:$0xff]
        %v729 = vld [vmem:[#allocation4 + $0x78] sm:$0xff]
        %v730 = vld [vmem:[#allocation4 + $0x80] sm:$0xff]
        %v731 = vld [vmem:[#allocation4 + $0x88] sm:$0xff]
        %v732 = vld [vmem:[#allocation4 + $0x90] sm:$0xff]
        %v733 = vld [vmem:[#allocation4 + $0x98] sm:$0xff]
        %v734 = vld [vmem:[#allocation4 + $0xa0] sm:$0xff]
        %v735 = vld [vmem:[#allocation4 + $0xa8] sm:$0xff]
        %v736 = vld [vmem:[#allocation4 + $0xb0] sm:$0xff]
        %v737 = vld [vmem:[#allocation4 + $0xb8] sm:$0xff]
        %v738 = vld [vmem:[#allocation4 + $0xc0] sm:$0xff]
        %v739 = vld [vmem:[#allocation4 + $0xc8] sm:$0xff]
        %v740 = vld [vmem:[#allocation4 + $0xd0] sm:$0xff]
        %v741 = vld [vmem:[#allocation4 + $0xd8] sm:$0xff]
        %v742 = vld [vmem:[#allocation4 + $0xe0] sm:$0xff]
        %v743 = vld [vmem:[#allocation4 + $0xe8] sm:$0xff]
        %v744 = vld [vmem:[#allocation4 + $0xf0] sm:$0xff]
        %v745 = vld [vmem:[#allocation4 + $0xf8] sm:$0xff]
        %v746 = vand.u32 %v601, 4294901760
        %747 = vmatpush.msra.mxu0 %v746
        %v748 = vand.u32 %v600, 4294901760
        %749 = vmatpush.msra.mxu0 %v748
        %v750 = vand.u32 %v599, 4294901760
        %751 = vmatpush.msra.mxu0 %v750
        %v752 = vand.u32 %v598, 4294901760
        %753 = vmatpush.msra.mxu0 %v752
        %v754 = vand.u32 %v597, 4294901760
        %755 = vmatpush.msra.mxu0 %v754
        %v756 = vand.u32 %v596, 4294901760
        %757 = vmatpush.msra.mxu0 %v756
        %v758 = vand.u32 %v595, 4294901760
        %759 = vmatpush.msra.mxu0 %v758
        %v760 = vand.u32 %v594, 4294901760
        %761 = vmatpush.msra.mxu0 %v760
        %v762 = vand.u32 %v593, 4294901760
        %763 = vmatpush.msra.mxu0 %v762
        %v764 = vand.u32 %v592, 4294901760
        %765 = vmatpush.msra.mxu0 %v764
        %v766 = vand.u32 %v591, 4294901760
        %767 = vmatpush.msra.mxu0 %v766
        %v768 = vand.u32 %v590, 4294901760
        %769 = vmatpush.msra.mxu0 %v768
        %v770 = vand.u32 %v589, 4294901760
        %771 = vmatpush.msra.mxu0 %v770
        %v772 = vand.u32 %v588, 4294901760
        %773 = vmatpush.msra.mxu0 %v772
        %v774 = vand.u32 %v587, 4294901760
        %775 = vmatpush.msra.mxu0 %v774
        %v776 = vand.u32 %v586, 4294901760
        %777 = vmatpush.msra.mxu0 %v776
        %v778 = vand.u32 %v714, 4294901760
        %v779 = vsub.f32 %v714, %v778
        %v780 = vand.u32 %v779, 4294901760
        %v781 = vsub.f32 %v779, %v780
        %v782 = vand.u32 %v781, 4294901760
        %783 = vmatmul.f32.gmra.mxu0 %v782
        %v784 = vpop.f32.mrf.mxu0
        %v785 = vadd.f32 0.0, %v784
        %v786 = vand.u32 %v722, 4294901760
        %v787 = vsub.f32 %v722, %v786
        %v788 = vand.u32 %v787, 4294901760
        %v789 = vsub.f32 %v787, %v788
        %v790 = vand.u32 %v789, 4294901760
        %791 = vmatmul.f32.gmra.mxu0 %v790
        %v792 = vpop.f32.mrf.mxu0
        %v793 = vadd.f32 0.0, %v792
        %v794 = vand.u32 %v730, 4294901760
        %v795 = vsub.f32 %v730, %v794
        %v796 = vand.u32 %v795, 4294901760
        %v797 = vsub.f32 %v795, %v796
        %v798 = vand.u32 %v797, 4294901760
        %799 = vmatmul.f32.gmra.mxu0 %v798
        %v800 = vpop.f32.mrf.mxu0
        %v801 = vadd.f32 0.0, %v800
        %v802 = vand.u32 %v738, 4294901760
        %v803 = vsub.f32 %v738, %v802
        %v804 = vand.u32 %v803, 4294901760
        %v805 = vsub.f32 %v803, %v804
        %v806 = vand.u32 %v805, 4294901760
        %807 = vmatmul.f32.gmra.mxu0 %v806
        %v808 = vpop.f32.mrf.mxu0
        %v809 = vadd.f32 0.0, %v808
        %810 = vdwg.mxu0
        %v811 = vand.u32 %v601, 4294901760
        %v812 = vsub.f32 %v601, %v811
        %v813 = vand.u32 %v812, 4294901760
        %v814 = vsub.f32 %v812, %v813
        %v815 = vand.u32 %v814, 4294901760
        %816 = vmatpush.msra.mxu0 %v815
        %v817 = vand.u32 %v600, 4294901760
        %v818 = vsub.f32 %v600, %v817
        %v819 = vand.u32 %v818, 4294901760
        %v820 = vsub.f32 %v818, %v819
        %v821 = vand.u32 %v820, 4294901760
        %822 = vmatpush.msra.mxu0 %v821
        %v823 = vand.u32 %v599, 4294901760
        %v824 = vsub.f32 %v599, %v823
        %v825 = vand.u32 %v824, 4294901760
        %v826 = vsub.f32 %v824, %v825
        %v827 = vand.u32 %v826, 4294901760
        %828 = vmatpush.msra.mxu0 %v827
        %v829 = vand.u32 %v598, 4294901760
        %v830 = vsub.f32 %v598, %v829
        %v831 = vand.u32 %v830, 4294901760
        %v832 = vsub.f32 %v830, %v831
        %v833 = vand.u32 %v832, 4294901760
        %834 = vmatpush.msra.mxu0 %v833
        %v835 = vand.u32 %v597, 4294901760
        %v836 = vsub.f32 %v597, %v835
        %v837 = vand.u32 %v836, 4294901760
        %v838 = vsub.f32 %v836, %v837
        %v839 = vand.u32 %v838, 4294901760
        %840 = vmatpush.msra.mxu0 %v839
        %v841 = vand.u32 %v596, 4294901760
        %v842 = vsub.f32 %v596, %v841
        %v843 = vand.u32 %v842, 4294901760
        %v844 = vsub.f32 %v842, %v843
        %v845 = vand.u32 %v844, 4294901760
        %846 = vmatpush.msra.mxu0 %v845
        %v847 = vand.u32 %v595, 4294901760
        %v848 = vsub.f32 %v595, %v847
        %v849 = vand.u32 %v848, 4294901760
        %v850 = vsub.f32 %v848, %v849
        %v851 = vand.u32 %v850, 4294901760
        %852 = vmatpush.msra.mxu0 %v851
        %v853 = vand.u32 %v594, 4294901760
        %v854 = vsub.f32 %v594, %v853
        %v855 = vand.u32 %v854, 4294901760
        %v856 = vsub.f32 %v854, %v855
        %v857 = vand.u32 %v856, 4294901760
        %858 = vmatpush.msra.mxu0 %v857
        %v859 = vand.u32 %v593, 4294901760
        %v860 = vsub.f32 %v593, %v859
        %v861 = vand.u32 %v860, 4294901760
        %v862 = vsub.f32 %v860, %v861
        %v863 = vand.u32 %v862, 4294901760
        %864 = vmatpush.msra.mxu0 %v863
        %v865 = vand.u32 %v592, 4294901760
        %v866 = vsub.f32 %v592, %v865
        %v867 = vand.u32 %v866, 4294901760
        %v868 = vsub.f32 %v866, %v867
        %v869 = vand.u32 %v868, 4294901760
        %870 = vmatpush.msra.mxu0 %v869
        %v871 = vand.u32 %v591, 4294901760
        %v872 = vsub.f32 %v591, %v871
        %v873 = vand.u32 %v872, 4294901760
        %v874 = vsub.f32 %v872, %v873
        %v875 = vand.u32 %v874, 4294901760
        %876 = vmatpush.msra.mxu0 %v875
        %v877 = vand.u32 %v590, 4294901760
        %v878 = vsub.f32 %v590, %v877
        %v879 = vand.u32 %v878, 4294901760
        %v880 = vsub.f32 %v878, %v879
        %v881 = vand.u32 %v880, 4294901760
        %882 = vmatpush.msra.mxu0 %v881
        %v883 = vand.u32 %v589, 4294901760
        %v884 = vsub.f32 %v589, %v883
        %v885 = vand.u32 %v884, 4294901760
        %v886 = vsub.f32 %v884, %v885
        %v887 = vand.u32 %v886, 4294901760
        %888 = vmatpush.msra.mxu0 %v887
        %v889 = vand.u32 %v588, 4294901760
        %v890 = vsub.f32 %v588, %v889
        %v891 = vand.u32 %v890, 4294901760
        %v892 = vsub.f32 %v890, %v891
        %v893 = vand.u32 %v892, 4294901760
        %894 = vmatpush.msra.mxu0 %v893
        %v895 = vand.u32 %v587, 4294901760
        %v896 = vsub.f32 %v587, %v895
        %v897 = vand.u32 %v896, 4294901760
        %v898 = vsub.f32 %v896, %v897
        %v899 = vand.u32 %v898, 4294901760
        %900 = vmatpush.msra.mxu0 %v899
        %v901 = vand.u32 %v586, 4294901760
        %v902 = vsub.f32 %v586, %v901
        %v903 = vand.u32 %v902, 4294901760
        %v904 = vsub.f32 %v902, %v903
        %v905 = vand.u32 %v904, 4294901760
        %906 = vmatpush.msra.mxu0 %v905
        %v907 = vand.u32 %v714, 4294901760
        %908 = vmatmul.f32.gmra.mxu0 %v907
        %v909 = vpop.f32.mrf.mxu0
        %v910 = vadd.f32 %v785, %v909
        %v911 = vand.u32 %v722, 4294901760
        %912 = vmatmul.f32.gmra.mxu0 %v911
        %v913 = vpop.f32.mrf.mxu0
        %v914 = vadd.f32 %v793, %v913
        %v915 = vand.u32 %v730, 4294901760
        %916 = vmatmul.f32.gmra.mxu0 %v915
        %v917 = vpop.f32.mrf.mxu0
        %v918 = vadd.f32 %v801, %v917
        %v919 = vand.u32 %v738, 4294901760
        %920 = vmatmul.f32.gmra.mxu0 %v919
        %v921 = vpop.f32.mrf.mxu0
        %v922 = vadd.f32 %v809, %v921
        %923 = vdwg.mxu0
        %v924 = vand.u32 %v601, 4294901760
        %v925 = vsub.f32 %v601, %v924
        %926 = vmatpush.msra.mxu0 %v925
        %v927 = vand.u32 %v600, 4294901760
        %v928 = vsub.f32 %v600, %v927
        %929 = vmatpush.msra.mxu0 %v928
        %v930 = vand.u32 %v599, 4294901760
        %v931 = vsub.f32 %v599, %v930
        %932 = vmatpush.msra.mxu0 %v931
        %v933 = vand.u32 %v598, 4294901760
        %v934 = vsub.f32 %v598, %v933
        %935 = vmatpush.msra.mxu0 %v934
        %v936 = vand.u32 %v597, 4294901760
        %v937 = vsub.f32 %v597, %v936
        %938 = vmatpush.msra.mxu0 %v937
        %v939 = vand.u32 %v596, 4294901760
        %v940 = vsub.f32 %v596, %v939
        %941 = vmatpush.msra.mxu0 %v940
        %v942 = vand.u32 %v595, 4294901760
        %v943 = vsub.f32 %v595, %v942
        %944 = vmatpush.msra.mxu0 %v943
        %v945 = vand.u32 %v594, 4294901760
        %v946 = vsub.f32 %v594, %v945
        %947 = vmatpush.msra.mxu0 %v946
        %v948 = vand.u32 %v593, 4294901760
        %v949 = vsub.f32 %v593, %v948
        %950 = vmatpush.msra.mxu0 %v949
        %v951 = vand.u32 %v592, 4294901760
        %v952 = vsub.f32 %v592, %v951
        %953 = vmatpush.msra.mxu0 %v952
        %v954 = vand.u32 %v591, 4294901760
        %v955 = vsub.f32 %v591, %v954
        %956 = vmatpush.msra.mxu0 %v955
        %v957 = vand.u32 %v590, 4294901760
        %v958 = vsub.f32 %v590, %v957
        %959 = vmatpush.msra.mxu0 %v958
        %v960 = vand.u32 %v589, 4294901760
        %v961 = vsub.f32 %v589, %v960
        %962 = vmatpush.msra.mxu0 %v961
        %v963 = vand.u32 %v588, 4294901760
        %v964 = vsub.f32 %v588, %v963
        %965 = vmatpush.msra.mxu0 %v964
        %v966 = vand.u32 %v587, 4294901760
        %v967 = vsub.f32 %v587, %v966
        %968 = vmatpush.msra.mxu0 %v967
        %v969 = vand.u32 %v586, 4294901760
        %v970 = vsub.f32 %v586, %v969
        %971 = vmatpush.msra.mxu0 %v970
        %v972 = vand.u32 %v714, 4294901760
        %v973 = vsub.f32 %v714, %v972
        %974 = vmatmul.f32.gmra.mxu0 %v973
        %v975 = vpop.f32.mrf.mxu0
        %v976 = vadd.f32 %v910, %v975
        %v977 = vand.u32 %v722, 4294901760
        %v978 = vsub.f32 %v722, %v977
        %979 = vmatmul.f32.gmra.mxu0 %v978
        %v980 = vpop.f32.mrf.mxu0
        %v981 = vadd.f32 %v914, %v980
        %v982 = vand.u32 %v730, 4294901760
        %v983 = vsub.f32 %v730, %v982
        %984 = vmatmul.f32.gmra.mxu0 %v983
        %v985 = vpop.f32.mrf.mxu0
        %v986 = vadd.f32 %v918, %v985
        %v987 = vand.u32 %v738, 4294901760
        %v988 = vsub.f32 %v738, %v987
        %989 = vmatmul.f32.gmra.mxu0 %v988
        %v990 = vpop.f32.mrf.mxu0
        %v991 = vadd.f32 %v922, %v990
        %992 = vdwg.mxu0
        %v993 = vand.u32 %v601, 4294901760
        %994 = vmatpush.msra.mxu0 %v993
        %v995 = vand.u32 %v600, 4294901760
        %996 = vmatpush.msra.mxu0 %v995
        %v997 = vand.u32 %v599, 4294901760
        %998 = vmatpush.msra.mxu0 %v997
        %v999 = vand.u32 %v598, 4294901760
        %1000 = vmatpush.msra.mxu0 %v999
        %v1001 = vand.u32 %v597, 4294901760
        %1002 = vmatpush.msra.mxu0 %v1001
        %v1003 = vand.u32 %v596, 4294901760
        %1004 = vmatpush.msra.mxu0 %v1003
        %v1005 = vand.u32 %v595, 4294901760
        %1006 = vmatpush.msra.mxu0 %v1005
        %v1007 = vand.u32 %v594, 4294901760
        %1008 = vmatpush.msra.mxu0 %v1007
        %v1009 = vand.u32 %v593, 4294901760
        %1010 = vmatpush.msra.mxu0 %v1009
        %v1011 = vand.u32 %v592, 4294901760
        %1012 = vmatpush.msra.mxu0 %v1011
        %v1013 = vand.u32 %v591, 4294901760
        %1014 = vmatpush.msra.mxu0 %v1013
        %v1015 = vand.u32 %v590, 4294901760
        %1016 = vmatpush.msra.mxu0 %v1015
        %v1017 = vand.u32 %v589, 4294901760
        %1018 = vmatpush.msra.mxu0 %v1017
        %v1019 = vand.u32 %v588, 4294901760
        %1020 = vmatpush.msra.mxu0 %v1019
        %v1021 = vand.u32 %v587, 4294901760
        %1022 = vmatpush.msra.mxu0 %v1021
        %v1023 = vand.u32 %v586, 4294901760
        %1024 = vmatpush.msra.mxu0 %v1023
        %v1025 = vand.u32 %v714, 4294901760
        %v1026 = vsub.f32 %v714, %v1025
        %v1027 = vand.u32 %v1026, 4294901760
        %1028 = vmatmul.f32.gmra.mxu0 %v1027
        %v1029 = vpop.f32.mrf.mxu0
        %v1030 = vadd.f32 %v976, %v1029
        %v1031 = vand.u32 %v722, 4294901760
        %v1032 = vsub.f32 %v722, %v1031
        %v1033 = vand.u32 %v1032, 4294901760
        %1034 = vmatmul.f32.gmra.mxu0 %v1033
        %v1035 = vpop.f32.mrf.mxu0
        %v1036 = vadd.f32 %v981, %v1035
        %v1037 = vand.u32 %v730, 4294901760
        %v1038 = vsub.f32 %v730, %v1037
        %v1039 = vand.u32 %v1038, 4294901760
        %1040 = vmatmul.f32.gmra.mxu0 %v1039
        %v1041 = vpop.f32.mrf.mxu0
        %v1042 = vadd.f32 %v986, %v1041
        %v1043 = vand.u32 %v738, 4294901760
        %v1044 = vsub.f32 %v738, %v1043
        %v1045 = vand.u32 %v1044, 4294901760
        %1046 = vmatmul.f32.gmra.mxu0 %v1045
        %v1047 = vpop.f32.mrf.mxu0
        %v1048 = vadd.f32 %v991, %v1047
        %1049 = vdwg.mxu0
        %v1050 = vand.u32 %v601, 4294901760
        %v1051 = vsub.f32 %v601, %v1050
        %v1052 = vand.u32 %v1051, 4294901760
        %1053 = vmatpush.msra.mxu0 %v1052
        %v1054 = vand.u32 %v600, 4294901760
        %v1055 = vsub.f32 %v600, %v1054
        %v1056 = vand.u32 %v1055, 4294901760
        %1057 = vmatpush.msra.mxu0 %v1056
        %v1058 = vand.u32 %v599, 4294901760
        %v1059 = vsub.f32 %v599, %v1058
        %v1060 = vand.u32 %v1059, 4294901760
        %1061 = vmatpush.msra.mxu0 %v1060
        %v1062 = vand.u32 %v598, 4294901760
        %v1063 = vsub.f32 %v598, %v1062
        %v1064 = vand.u32 %v1063, 4294901760
        %1065 = vmatpush.msra.mxu0 %v1064
        %v1066 = vand.u32 %v597, 4294901760
        %v1067 = vsub.f32 %v597, %v1066
        %v1068 = vand.u32 %v1067, 4294901760
        %1069 = vmatpush.msra.mxu0 %v1068
        %v1070 = vand.u32 %v596, 4294901760
        %v1071 = vsub.f32 %v596, %v1070
        %v1072 = vand.u32 %v1071, 4294901760
        %1073 = vmatpush.msra.mxu0 %v1072
        %v1074 = vand.u32 %v595, 4294901760
        %v1075 = vsub.f32 %v595, %v1074
        %v1076 = vand.u32 %v1075, 4294901760
        %1077 = vmatpush.msra.mxu0 %v1076
        %v1078 = vand.u32 %v594, 4294901760
        %v1079 = vsub.f32 %v594, %v1078
        %v1080 = vand.u32 %v1079, 4294901760
        %1081 = vmatpush.msra.mxu0 %v1080
        %v1082 = vand.u32 %v593, 4294901760
        %v1083 = vsub.f32 %v593, %v1082
        %v1084 = vand.u32 %v1083, 4294901760
        %1085 = vmatpush.msra.mxu0 %v1084
        %v1086 = vand.u32 %v592, 4294901760
        %v1087 = vsub.f32 %v592, %v1086
        %v1088 = vand.u32 %v1087, 4294901760
        %1089 = vmatpush.msra.mxu0 %v1088
        %v1090 = vand.u32 %v591, 4294901760
        %v1091 = vsub.f32 %v591, %v1090
        %v1092 = vand.u32 %v1091, 4294901760
        %1093 = vmatpush.msra.mxu0 %v1092
        %v1094 = vand.u32 %v590, 4294901760
        %v1095 = vsub.f32 %v590, %v1094
        %v1096 = vand.u32 %v1095, 4294901760
        %1097 = vmatpush.msra.mxu0 %v1096
        %v1098 = vand.u32 %v589, 4294901760
        %v1099 = vsub.f32 %v589, %v1098
        %v1100 = vand.u32 %v1099, 4294901760
        %1101 = vmatpush.msra.mxu0 %v1100
        %v1102 = vand.u32 %v588, 4294901760
        %v1103 = vsub.f32 %v588, %v1102
        %v1104 = vand.u32 %v1103, 4294901760
        %1105 = vmatpush.msra.mxu0 %v1104
        %v1106 = vand.u32 %v587, 4294901760
        %v1107 = vsub.f32 %v587, %v1106
        %v1108 = vand.u32 %v1107, 4294901760
        %1109 = vmatpush.msra.mxu0 %v1108
        %v1110 = vand.u32 %v586, 4294901760
        %v1111 = vsub.f32 %v586, %v1110
        %v1112 = vand.u32 %v1111, 4294901760
        %1113 = vmatpush.msra.mxu0 %v1112
        %v1114 = vand.u32 %v714, 4294901760
        %1115 = vmatmul.f32.gmra.mxu0 %v1114
        %v1116 = vpop.f32.mrf.mxu0
        %v1117 = vadd.f32 %v1030, %v1116
        %v1118 = vand.u32 %v722, 4294901760
        %1119 = vmatmul.f32.gmra.mxu0 %v1118
        %v1120 = vpop.f32.mrf.mxu0
        %v1121 = vadd.f32 %v1036, %v1120
        %v1122 = vand.u32 %v730, 4294901760
        %1123 = vmatmul.f32.gmra.mxu0 %v1122
        %v1124 = vpop.f32.mrf.mxu0
        %v1125 = vadd.f32 %v1042, %v1124
        %v1126 = vand.u32 %v738, 4294901760
        %1127 = vmatmul.f32.gmra.mxu0 %v1126
        %v1128 = vpop.f32.mrf.mxu0
        %v1129 = vadd.f32 %v1048, %v1128
        %1130 = vdwg.mxu0
        %v1131 = vand.u32 %v601, 4294901760
        %1132 = vmatpush.msra.mxu0 %v1131
        %v1133 = vand.u32 %v600, 4294901760
        %1134 = vmatpush.msra.mxu0 %v1133
        %v1135 = vand.u32 %v599, 4294901760
        %1136 = vmatpush.msra.mxu0 %v1135
        %v1137 = vand.u32 %v598, 4294901760
        %1138 = vmatpush.msra.mxu0 %v1137
        %v1139 = vand.u32 %v597, 4294901760
        %1140 = vmatpush.msra.mxu0 %v1139
        %v1141 = vand.u32 %v596, 4294901760
        %1142 = vmatpush.msra.mxu0 %v1141
        %v1143 = vand.u32 %v595, 4294901760
        %1144 = vmatpush.msra.mxu0 %v1143
        %v1145 = vand.u32 %v594, 4294901760
        %1146 = vmatpush.msra.mxu0 %v1145
        %v1147 = vand.u32 %v593, 4294901760
        %1148 = vmatpush.msra.mxu0 %v1147
        %v1149 = vand.u32 %v592, 4294901760
        %1150 = vmatpush.msra.mxu0 %v1149
        %v1151 = vand.u32 %v591, 4294901760
        %1152 = vmatpush.msra.mxu0 %v1151
        %v1153 = vand.u32 %v590, 4294901760
        %1154 = vmatpush.msra.mxu0 %v1153
        %v1155 = vand.u32 %v589, 4294901760
        %1156 = vmatpush.msra.mxu0 %v1155
        %v1157 = vand.u32 %v588, 4294901760
        %1158 = vmatpush.msra.mxu0 %v1157
        %v1159 = vand.u32 %v587, 4294901760
        %1160 = vmatpush.msra.mxu0 %v1159
        %v1161 = vand.u32 %v586, 4294901760
        %1162 = vmatpush.msra.mxu0 %v1161
        %v1163 = vand.u32 %v714, 4294901760
        %1164 = vmatmul.f32.gmra.mxu0 %v1163
        %v1165 = vpop.f32.mrf.mxu0
        %v1166 = vadd.f32 %v1117, %v1165
        %v1167 = vand.u32 %v722, 4294901760
        %1168 = vmatmul.f32.gmra.mxu0 %v1167
        %v1169 = vpop.f32.mrf.mxu0
        %v1170 = vadd.f32 %v1121, %v1169
        %v1171 = vand.u32 %v730, 4294901760
        %1172 = vmatmul.f32.gmra.mxu0 %v1171
        %v1173 = vpop.f32.mrf.mxu0
        %v1174 = vadd.f32 %v1125, %v1173
        %v1175 = vand.u32 %v738, 4294901760
        %1176 = vmatmul.f32.gmra.mxu0 %v1175
        %v1177 = vpop.f32.mrf.mxu0
        %v1178 = vadd.f32 %v1129, %v1177
        %1179 = vdwg.mxu0
        %v1180 = vand.u32 %v617, 4294901760
        %1181 = vmatpush.msra.mxu0 %v1180
        %v1182 = vand.u32 %v616, 4294901760
        %1183 = vmatpush.msra.mxu0 %v1182
        %v1184 = vand.u32 %v615, 4294901760
        %1185 = vmatpush.msra.mxu0 %v1184
        %v1186 = vand.u32 %v614, 4294901760
        %1187 = vmatpush.msra.mxu0 %v1186
        %v1188 = vand.u32 %v613, 4294901760
        %1189 = vmatpush.msra.mxu0 %v1188
        %v1190 = vand.u32 %v612, 4294901760
        %1191 = vmatpush.msra.mxu0 %v1190
        %v1192 = vand.u32 %v611, 4294901760
        %1193 = vmatpush.msra.mxu0 %v1192
        %v1194 = vand.u32 %v610, 4294901760
        %1195 = vmatpush.msra.mxu0 %v1194
        %v1196 = vand.u32 %v609, 4294901760
        %1197 = vmatpush.msra.mxu0 %v1196
        %v1198 = vand.u32 %v608, 4294901760
        %1199 = vmatpush.msra.mxu0 %v1198
        %v1200 = vand.u32 %v607, 4294901760
        %1201 = vmatpush.msra.mxu0 %v1200
        %v1202 = vand.u32 %v606, 4294901760
        %1203 = vmatpush.msra.mxu0 %v1202
        %v1204 = vand.u32 %v605, 4294901760
        %1205 = vmatpush.msra.mxu0 %v1204
        %v1206 = vand.u32 %v604, 4294901760
        %1207 = vmatpush.msra.mxu0 %v1206
        %v1208 = vand.u32 %v603, 4294901760
        %1209 = vmatpush.msra.mxu0 %v1208
        %v1210 = vand.u32 %v602, 4294901760
        %1211 = vmatpush.msra.mxu0 %v1210
        %v1212 = vand.u32 %v715, 4294901760
        %v1213 = vsub.f32 %v715, %v1212
        %v1214 = vand.u32 %v1213, 4294901760
        %v1215 = vsub.f32 %v1213, %v1214
        %v1216 = vand.u32 %v1215, 4294901760
        %1217 = vmatmul.f32.gmra.mxu0 %v1216
        %v1218 = vpop.f32.mrf.mxu0
        %v1219 = vadd.f32 %v1166, %v1218
        %v1220 = vand.u32 %v723, 4294901760
        %v1221 = vsub.f32 %v723, %v1220
        %v1222 = vand.u32 %v1221, 4294901760
        %v1223 = vsub.f32 %v1221, %v1222
        %v1224 = vand.u32 %v1223, 4294901760
        %1225 = vmatmul.f32.gmra.mxu0 %v1224
        %v1226 = vpop.f32.mrf.mxu0
        %v1227 = vadd.f32 %v1170, %v1226
        %v1228 = vand.u32 %v731, 4294901760
        %v1229 = vsub.f32 %v731, %v1228
        %v1230 = vand.u32 %v1229, 4294901760
        %v1231 = vsub.f32 %v1229, %v1230
        %v1232 = vand.u32 %v1231, 4294901760
        %1233 = vmatmul.f32.gmra.mxu0 %v1232
        %v1234 = vpop.f32.mrf.mxu0
        %v1235 = vadd.f32 %v1174, %v1234
        %v1236 = vand.u32 %v739, 4294901760
        %v1237 = vsub.f32 %v739, %v1236
        %v1238 = vand.u32 %v1237, 4294901760
        %v1239 = vsub.f32 %v1237, %v1238
        %v1240 = vand.u32 %v1239, 4294901760
        %1241 = vmatmul.f32.gmra.mxu0 %v1240
        %v1242 = vpop.f32.mrf.mxu0
        %v1243 = vadd.f32 %v1178, %v1242
        %1244 = vdwg.mxu0
        %v1245 = vand.u32 %v617, 4294901760
        %v1246 = vsub.f32 %v617, %v1245
        %v1247 = vand.u32 %v1246, 4294901760
        %v1248 = vsub.f32 %v1246, %v1247
        %v1249 = vand.u32 %v1248, 4294901760
        %1250 = vmatpush.msra.mxu0 %v1249
        %v1251 = vand.u32 %v616, 4294901760
        %v1252 = vsub.f32 %v616, %v1251
        %v1253 = vand.u32 %v1252, 4294901760
        %v1254 = vsub.f32 %v1252, %v1253
        %v1255 = vand.u32 %v1254, 4294901760
        %1256 = vmatpush.msra.mxu0 %v1255
        %v1257 = vand.u32 %v615, 4294901760
        %v1258 = vsub.f32 %v615, %v1257
        %v1259 = vand.u32 %v1258, 4294901760
        %v1260 = vsub.f32 %v1258, %v1259
        %v1261 = vand.u32 %v1260, 4294901760
        %1262 = vmatpush.msra.mxu0 %v1261
        %v1263 = vand.u32 %v614, 4294901760
        %v1264 = vsub.f32 %v614, %v1263
        %v1265 = vand.u32 %v1264, 4294901760
        %v1266 = vsub.f32 %v1264, %v1265
        %v1267 = vand.u32 %v1266, 4294901760
        %1268 = vmatpush.msra.mxu0 %v1267
        %v1269 = vand.u32 %v613, 4294901760
        %v1270 = vsub.f32 %v613, %v1269
        %v1271 = vand.u32 %v1270, 4294901760
        %v1272 = vsub.f32 %v1270, %v1271
        %v1273 = vand.u32 %v1272, 4294901760
        %1274 = vmatpush.msra.mxu0 %v1273
        %v1275 = vand.u32 %v612, 4294901760
        %v1276 = vsub.f32 %v612, %v1275
        %v1277 = vand.u32 %v1276, 4294901760
        %v1278 = vsub.f32 %v1276, %v1277
        %v1279 = vand.u32 %v1278, 4294901760
        %1280 = vmatpush.msra.mxu0 %v1279
        %v1281 = vand.u32 %v611, 4294901760
        %v1282 = vsub.f32 %v611, %v1281
        %v1283 = vand.u32 %v1282, 4294901760
        %v1284 = vsub.f32 %v1282, %v1283
        %v1285 = vand.u32 %v1284, 4294901760
        %1286 = vmatpush.msra.mxu0 %v1285
        %v1287 = vand.u32 %v610, 4294901760
        %v1288 = vsub.f32 %v610, %v1287
        %v1289 = vand.u32 %v1288, 4294901760
        %v1290 = vsub.f32 %v1288, %v1289
        %v1291 = vand.u32 %v1290, 4294901760
        %1292 = vmatpush.msra.mxu0 %v1291
        %v1293 = vand.u32 %v609, 4294901760
        %v1294 = vsub.f32 %v609, %v1293
        %v1295 = vand.u32 %v1294, 4294901760
        %v1296 = vsub.f32 %v1294, %v1295
        %v1297 = vand.u32 %v1296, 4294901760
        %1298 = vmatpush.msra.mxu0 %v1297
        %v1299 = vand.u32 %v608, 4294901760
        %v1300 = vsub.f32 %v608, %v1299
        %v1301 = vand.u32 %v1300, 4294901760
        %v1302 = vsub.f32 %v1300, %v1301
        %v1303 = vand.u32 %v1302, 4294901760
        %1304 = vmatpush.msra.mxu0 %v1303
        %v1305 = vand.u32 %v607, 4294901760
        %v1306 = vsub.f32 %v607, %v1305
        %v1307 = vand.u32 %v1306, 4294901760
        %v1308 = vsub.f32 %v1306, %v1307
        %v1309 = vand.u32 %v1308, 4294901760
        %1310 = vmatpush.msra.mxu0 %v1309
        %v1311 = vand.u32 %v606, 4294901760
        %v1312 = vsub.f32 %v606, %v1311
        %v1313 = vand.u32 %v1312, 4294901760
        %v1314 = vsub.f32 %v1312, %v1313
        %v1315 = vand.u32 %v1314, 4294901760
        %1316 = vmatpush.msra.mxu0 %v1315
        %v1317 = vand.u32 %v605, 4294901760
        %v1318 = vsub.f32 %v605, %v1317
        %v1319 = vand.u32 %v1318, 4294901760
        %v1320 = vsub.f32 %v1318, %v1319
        %v1321 = vand.u32 %v1320, 4294901760
        %1322 = vmatpush.msra.mxu0 %v1321
        %v1323 = vand.u32 %v604, 4294901760
        %v1324 = vsub.f32 %v604, %v1323
        %v1325 = vand.u32 %v1324, 4294901760
        %v1326 = vsub.f32 %v1324, %v1325
        %v1327 = vand.u32 %v1326, 4294901760
        %1328 = vmatpush.msra.mxu0 %v1327
        %v1329 = vand.u32 %v603, 4294901760
        %v1330 = vsub.f32 %v603, %v1329
        %v1331 = vand.u32 %v1330, 4294901760
        %v1332 = vsub.f32 %v1330, %v1331
        %v1333 = vand.u32 %v1332, 4294901760
        %1334 = vmatpush.msra.mxu0 %v1333
        %v1335 = vand.u32 %v602, 4294901760
        %v1336 = vsub.f32 %v602, %v1335
        %v1337 = vand.u32 %v1336, 4294901760
        %v1338 = vsub.f32 %v1336, %v1337
        %v1339 = vand.u32 %v1338, 4294901760
        %1340 = vmatpush.msra.mxu0 %v1339
        %v1341 = vand.u32 %v715, 4294901760
        %1342 = vmatmul.f32.gmra.mxu0 %v1341
        %v1343 = vpop.f32.mrf.mxu0
        %v1344 = vadd.f32 %v1219, %v1343
        %v1345 = vand.u32 %v723, 4294901760
        %1346 = vmatmul.f32.gmra.mxu0 %v1345
        %v1347 = vpop.f32.mrf.mxu0
        %v1348 = vadd.f32 %v1227, %v1347
        %v1349 = vand.u32 %v731, 4294901760
        %1350 = vmatmul.f32.gmra.mxu0 %v1349
        %v1351 = vpop.f32.mrf.mxu0
        %v1352 = vadd.f32 %v1235, %v1351
        %v1353 = vand.u32 %v739, 4294901760
        %1354 = vmatmul.f32.gmra.mxu0 %v1353
        %v1355 = vpop.f32.mrf.mxu0
        %v1356 = vadd.f32 %v1243, %v1355
        %1357 = vdwg.mxu0
        %v1358 = vand.u32 %v617, 4294901760
        %v1359 = vsub.f32 %v617, %v1358
        %1360 = vmatpush.msra.mxu0 %v1359
        %v1361 = vand.u32 %v616, 4294901760
        %v1362 = vsub.f32 %v616, %v1361
        %1363 = vmatpush.msra.mxu0 %v1362
        %v1364 = vand.u32 %v615, 4294901760
        %v1365 = vsub.f32 %v615, %v1364
        %1366 = vmatpush.msra.mxu0 %v1365
        %v1367 = vand.u32 %v614, 4294901760
        %v1368 = vsub.f32 %v614, %v1367
        %1369 = vmatpush.msra.mxu0 %v1368
        %v1370 = vand.u32 %v613, 4294901760
        %v1371 = vsub.f32 %v613, %v1370
        %1372 = vmatpush.msra.mxu0 %v1371
        %v1373 = vand.u32 %v612, 4294901760
        %v1374 = vsub.f32 %v612, %v1373
        %1375 = vmatpush.msra.mxu0 %v1374
        %v1376 = vand.u32 %v611, 4294901760
        %v1377 = vsub.f32 %v611, %v1376
        %1378 = vmatpush.msra.mxu0 %v1377
        %v1379 = vand.u32 %v610, 4294901760
        %v1380 = vsub.f32 %v610, %v1379
        %1381 = vmatpush.msra.mxu0 %v1380
        %v1382 = vand.u32 %v609, 4294901760
        %v1383 = vsub.f32 %v609, %v1382
        %1384 = vmatpush.msra.mxu0 %v1383
        %v1385 = vand.u32 %v608, 4294901760
        %v1386 = vsub.f32 %v608, %v1385
        %1387 = vmatpush.msra.mxu0 %v1386
        %v1388 = vand.u32 %v607, 4294901760
        %v1389 = vsub.f32 %v607, %v1388
        %1390 = vmatpush.msra.mxu0 %v1389
        %v1391 = vand.u32 %v606, 4294901760
        %v1392 = vsub.f32 %v606, %v1391
        %1393 = vmatpush.msra.mxu0 %v1392
        %v1394 = vand.u32 %v605, 4294901760
        %v1395 = vsub.f32 %v605, %v1394
        %1396 = vmatpush.msra.mxu0 %v1395
        %v1397 = vand.u32 %v604, 4294901760
        %v1398 = vsub.f32 %v604, %v1397
        %1399 = vmatpush.msra.mxu0 %v1398
        %v1400 = vand.u32 %v603, 4294901760
        %v1401 = vsub.f32 %v603, %v1400
        %1402 = vmatpush.msra.mxu0 %v1401
        %v1403 = vand.u32 %v602, 4294901760
        %v1404 = vsub.f32 %v602, %v1403
        %1405 = vmatpush.msra.mxu0 %v1404
        %v1406 = vand.u32 %v715, 4294901760
        %v1407 = vsub.f32 %v715, %v1406
        %1408 = vmatmul.f32.gmra.mxu0 %v1407
        %v1409 = vpop.f32.mrf.mxu0
        %v1410 = vadd.f32 %v1344, %v1409
        %v1411 = vand.u32 %v723, 4294901760
        %v1412 = vsub.f32 %v723, %v1411
        %1413 = vmatmul.f32.gmra.mxu0 %v1412
        %v1414 = vpop.f32.mrf.mxu0
        %v1415 = vadd.f32 %v1348, %v1414
        %v1416 = vand.u32 %v731, 4294901760
        %v1417 = vsub.f32 %v731, %v1416
        %1418 = vmatmul.f32.gmra.mxu0 %v1417
        %v1419 = vpop.f32.mrf.mxu0
        %v1420 = vadd.f32 %v1352, %v1419
        %v1421 = vand.u32 %v739, 4294901760
        %v1422 = vsub.f32 %v739, %v1421
        %1423 = vmatmul.f32.gmra.mxu0 %v1422
        %v1424 = vpop.f32.mrf.mxu0
        %v1425 = vadd.f32 %v1356, %v1424
        %1426 = vdwg.mxu0
        %v1427 = vand.u32 %v617, 4294901760
        %1428 = vmatpush.msra.mxu0 %v1427
        %v1429 = vand.u32 %v616, 4294901760
        %1430 = vmatpush.msra.mxu0 %v1429
        %v1431 = vand.u32 %v615, 4294901760
        %1432 = vmatpush.msra.mxu0 %v1431
        %v1433 = vand.u32 %v614, 4294901760
        %1434 = vmatpush.msra.mxu0 %v1433
        %v1435 = vand.u32 %v613, 4294901760
        %1436 = vmatpush.msra.mxu0 %v1435
        %v1437 = vand.u32 %v612, 4294901760
        %1438 = vmatpush.msra.mxu0 %v1437
        %v1439 = vand.u32 %v611, 4294901760
        %1440 = vmatpush.msra.mxu0 %v1439
        %v1441 = vand.u32 %v610, 4294901760
        %1442 = vmatpush.msra.mxu0 %v1441
        %v1443 = vand.u32 %v609, 4294901760
        %1444 = vmatpush.msra.mxu0 %v1443
        %v1445 = vand.u32 %v608, 4294901760
        %1446 = vmatpush.msra.mxu0 %v1445
        %v1447 = vand.u32 %v607, 4294901760
        %1448 = vmatpush.msra.mxu0 %v1447
        %v1449 = vand.u32 %v606, 4294901760
        %1450 = vmatpush.msra.mxu0 %v1449
        %v1451 = vand.u32 %v605, 4294901760
        %1452 = vmatpush.msra.mxu0 %v1451
        %v1453 = vand.u32 %v604, 4294901760
        %1454 = vmatpush.msra.mxu0 %v1453
        %v1455 = vand.u32 %v603, 4294901760
        %1456 = vmatpush.msra.mxu0 %v1455
        %v1457 = vand.u32 %v602, 4294901760
        %1458 = vmatpush.msra.mxu0 %v1457
        %v1459 = vand.u32 %v715, 4294901760
        %v1460 = vsub.f32 %v715, %v1459
        %v1461 = vand.u32 %v1460, 4294901760
        %1462 = vmatmul.f32.gmra.mxu0 %v1461
        %v1463 = vpop.f32.mrf.mxu0
        %v1464 = vadd.f32 %v1410, %v1463
        %v1465 = vand.u32 %v723, 4294901760
        %v1466 = vsub.f32 %v723, %v1465
        %v1467 = vand.u32 %v1466, 4294901760
        %1468 = vmatmul.f32.gmra.mxu0 %v1467
        %v1469 = vpop.f32.mrf.mxu0
        %v1470 = vadd.f32 %v1415, %v1469
        %v1471 = vand.u32 %v731, 4294901760
        %v1472 = vsub.f32 %v731, %v1471
        %v1473 = vand.u32 %v1472, 4294901760
        %1474 = vmatmul.f32.gmra.mxu0 %v1473
        %v1475 = vpop.f32.mrf.mxu0
        %v1476 = vadd.f32 %v1420, %v1475
        %v1477 = vand.u32 %v739, 4294901760
        %v1478 = vsub.f32 %v739, %v1477
        %v1479 = vand.u32 %v1478, 4294901760
        %1480 = vmatmul.f32.gmra.mxu0 %v1479
        %v1481 = vpop.f32.mrf.mxu0
        %v1482 = vadd.f32 %v1425, %v1481
        %1483 = vdwg.mxu0
        %v1484 = vand.u32 %v617, 4294901760
        %v1485 = vsub.f32 %v617, %v1484
        %v1486 = vand.u32 %v1485, 4294901760
        %1487 = vmatpush.msra.mxu0 %v1486
        %v1488 = vand.u32 %v616, 4294901760
        %v1489 = vsub.f32 %v616, %v1488
        %v1490 = vand.u32 %v1489, 4294901760
        %1491 = vmatpush.msra.mxu0 %v1490
        %v1492 = vand.u32 %v615, 4294901760
        %v1493 = vsub.f32 %v615, %v1492
        %v1494 = vand.u32 %v1493, 4294901760
        %1495 = vmatpush.msra.mxu0 %v1494
        %v1496 = vand.u32 %v614, 4294901760
        %v1497 = vsub.f32 %v614, %v1496
        %v1498 = vand.u32 %v1497, 4294901760
        %1499 = vmatpush.msra.mxu0 %v1498
        %v1500 = vand.u32 %v613, 4294901760
        %v1501 = vsub.f32 %v613, %v1500
        %v1502 = vand.u32 %v1501, 4294901760
        %1503 = vmatpush.msra.mxu0 %v1502
        %v1504 = vand.u32 %v612, 4294901760
        %v1505 = vsub.f32 %v612, %v1504
        %v1506 = vand.u32 %v1505, 4294901760
        %1507 = vmatpush.msra.mxu0 %v1506
        %v1508 = vand.u32 %v611, 4294901760
        %v1509 = vsub.f32 %v611, %v1508
        %v1510 = vand.u32 %v1509, 4294901760
        %1511 = vmatpush.msra.mxu0 %v1510
        %v1512 = vand.u32 %v610, 4294901760
        %v1513 = vsub.f32 %v610, %v1512
        %v1514 = vand.u32 %v1513, 4294901760
        %1515 = vmatpush.msra.mxu0 %v1514
        %v1516 = vand.u32 %v609, 4294901760
        %v1517 = vsub.f32 %v609, %v1516
        %v1518 = vand.u32 %v1517, 4294901760
        %1519 = vmatpush.msra.mxu0 %v1518
        %v1520 = vand.u32 %v608, 4294901760
        %v1521 = vsub.f32 %v608, %v1520
        %v1522 = vand.u32 %v1521, 4294901760
        %1523 = vmatpush.msra.mxu0 %v1522
        %v1524 = vand.u32 %v607, 4294901760
        %v1525 = vsub.f32 %v607, %v1524
        %v1526 = vand.u32 %v1525, 4294901760
        %1527 = vmatpush.msra.mxu0 %v1526
        %v1528 = vand.u32 %v606, 4294901760
        %v1529 = vsub.f32 %v606, %v1528
        %v1530 = vand.u32 %v1529, 4294901760
        %1531 = vmatpush.msra.mxu0 %v1530
        %v1532 = vand.u32 %v605, 4294901760
        %v1533 = vsub.f32 %v605, %v1532
        %v1534 = vand.u32 %v1533, 4294901760
        %1535 = vmatpush.msra.mxu0 %v1534
        %v1536 = vand.u32 %v604, 4294901760
        %v1537 = vsub.f32 %v604, %v1536
        %v1538 = vand.u32 %v1537, 4294901760
        %1539 = vmatpush.msra.mxu0 %v1538
        %v1540 = vand.u32 %v603, 4294901760
        %v1541 = vsub.f32 %v603, %v1540
        %v1542 = vand.u32 %v1541, 4294901760
        %1543 = vmatpush.msra.mxu0 %v1542
        %v1544 = vand.u32 %v602, 4294901760
        %v1545 = vsub.f32 %v602, %v1544
        %v1546 = vand.u32 %v1545, 4294901760
        %1547 = vmatpush.msra.mxu0 %v1546
        %v1548 = vand.u32 %v715, 4294901760
        %1549 = vmatmul.f32.gmra.mxu0 %v1548
        %v1550 = vpop.f32.mrf.mxu0
        %v1551 = vadd.f32 %v1464, %v1550
        %v1552 = vand.u32 %v723, 4294901760
        %1553 = vmatmul.f32.gmra.mxu0 %v1552
        %v1554 = vpop.f32.mrf.mxu0
        %v1555 = vadd.f32 %v1470, %v1554
        %v1556 = vand.u32 %v731, 4294901760
        %1557 = vmatmul.f32.gmra.mxu0 %v1556
        %v1558 = vpop.f32.mrf.mxu0
        %v1559 = vadd.f32 %v1476, %v1558
        %v1560 = vand.u32 %v739, 4294901760
        %1561 = vmatmul.f32.gmra.mxu0 %v1560
        %v1562 = vpop.f32.mrf.mxu0
        %v1563 = vadd.f32 %v1482, %v1562
        %1564 = vdwg.mxu0
        %v1565 = vand.u32 %v617, 4294901760
        %1566 = vmatpush.msra.mxu0 %v1565
        %v1567 = vand.u32 %v616, 4294901760
        %1568 = vmatpush.msra.mxu0 %v1567
        %v1569 = vand.u32 %v615, 4294901760
        %1570 = vmatpush.msra.mxu0 %v1569
        %v1571 = vand.u32 %v614, 4294901760
        %1572 = vmatpush.msra.mxu0 %v1571
        %v1573 = vand.u32 %v613, 4294901760
        %1574 = vmatpush.msra.mxu0 %v1573
        %v1575 = vand.u32 %v612, 4294901760
        %1576 = vmatpush.msra.mxu0 %v1575
        %v1577 = vand.u32 %v611, 4294901760
        %1578 = vmatpush.msra.mxu0 %v1577
        %v1579 = vand.u32 %v610, 4294901760
        %1580 = vmatpush.msra.mxu0 %v1579
        %v1581 = vand.u32 %v609, 4294901760
        %1582 = vmatpush.msra.mxu0 %v1581
        %v1583 = vand.u32 %v608, 4294901760
        %1584 = vmatpush.msra.mxu0 %v1583
        %v1585 = vand.u32 %v607, 4294901760
        %1586 = vmatpush.msra.mxu0 %v1585
        %v1587 = vand.u32 %v606, 4294901760
        %1588 = vmatpush.msra.mxu0 %v1587
        %v1589 = vand.u32 %v605, 4294901760
        %1590 = vmatpush.msra.mxu0 %v1589
        %v1591 = vand.u32 %v604, 4294901760
        %1592 = vmatpush.msra.mxu0 %v1591
        %v1593 = vand.u32 %v603, 4294901760
        %1594 = vmatpush.msra.mxu0 %v1593
        %v1595 = vand.u32 %v602, 4294901760
        %1596 = vmatpush.msra.mxu0 %v1595
        %v1597 = vand.u32 %v715, 4294901760
        %1598 = vmatmul.f32.gmra.mxu0 %v1597
        %v1599 = vpop.f32.mrf.mxu0
        %v1600 = vadd.f32 %v1551, %v1599
        %v1601 = vand.u32 %v723, 4294901760
        %1602 = vmatmul.f32.gmra.mxu0 %v1601
        %v1603 = vpop.f32.mrf.mxu0
        %v1604 = vadd.f32 %v1555, %v1603
        %v1605 = vand.u32 %v731, 4294901760
        %1606 = vmatmul.f32.gmra.mxu0 %v1605
        %v1607 = vpop.f32.mrf.mxu0
        %v1608 = vadd.f32 %v1559, %v1607
        %v1609 = vand.u32 %v739, 4294901760
        %1610 = vmatmul.f32.gmra.mxu0 %v1609
        %v1611 = vpop.f32.mrf.mxu0
        %v1612 = vadd.f32 %v1563, %v1611
        %1613 = vdwg.mxu0
        %v1614 = vand.u32 %v633, 4294901760
        %1615 = vmatpush.msra.mxu0 %v1614
        %v1616 = vand.u32 %v632, 4294901760
        %1617 = vmatpush.msra.mxu0 %v1616
        %v1618 = vand.u32 %v631, 4294901760
        %1619 = vmatpush.msra.mxu0 %v1618
        %v1620 = vand.u32 %v630, 4294901760
        %1621 = vmatpush.msra.mxu0 %v1620
        %v1622 = vand.u32 %v629, 4294901760
        %1623 = vmatpush.msra.mxu0 %v1622
        %v1624 = vand.u32 %v628, 4294901760
        %1625 = vmatpush.msra.mxu0 %v1624
        %v1626 = vand.u32 %v627, 4294901760
        %1627 = vmatpush.msra.mxu0 %v1626
        %v1628 = vand.u32 %v626, 4294901760
        %1629 = vmatpush.msra.mxu0 %v1628
        %v1630 = vand.u32 %v625, 4294901760
        %1631 = vmatpush.msra.mxu0 %v1630
        %v1632 = vand.u32 %v624, 4294901760
        %1633 = vmatpush.msra.mxu0 %v1632
        %v1634 = vand.u32 %v623, 4294901760
        %1635 = vmatpush.msra.mxu0 %v1634
        %v1636 = vand.u32 %v622, 4294901760
        %1637 = vmatpush.msra.mxu0 %v1636
        %v1638 = vand.u32 %v621, 4294901760
        %1639 = vmatpush.msra.mxu0 %v1638
        %v1640 = vand.u32 %v620, 4294901760
        %1641 = vmatpush.msra.mxu0 %v1640
        %v1642 = vand.u32 %v619, 4294901760
        %1643 = vmatpush.msra.mxu0 %v1642
        %v1644 = vand.u32 %v618, 4294901760
        %1645 = vmatpush.msra.mxu0 %v1644
        %v1646 = vand.u32 %v716, 4294901760
        %v1647 = vsub.f32 %v716, %v1646
        %v1648 = vand.u32 %v1647, 4294901760
        %v1649 = vsub.f32 %v1647, %v1648
        %v1650 = vand.u32 %v1649, 4294901760
        %1651 = vmatmul.f32.gmra.mxu0 %v1650
        %v1652 = vpop.f32.mrf.mxu0
        %v1653 = vadd.f32 %v1600, %v1652
        %v1654 = vand.u32 %v724, 4294901760
        %v1655 = vsub.f32 %v724, %v1654
        %v1656 = vand.u32 %v1655, 4294901760
        %v1657 = vsub.f32 %v1655, %v1656
        %v1658 = vand.u32 %v1657, 4294901760
        %1659 = vmatmul.f32.gmra.mxu0 %v1658
        %v1660 = vpop.f32.mrf.mxu0
        %v1661 = vadd.f32 %v1604, %v1660
        %v1662 = vand.u32 %v732, 4294901760
        %v1663 = vsub.f32 %v732, %v1662
        %v1664 = vand.u32 %v1663, 4294901760
        %v1665 = vsub.f32 %v1663, %v1664
        %v1666 = vand.u32 %v1665, 4294901760
        %1667 = vmatmul.f32.gmra.mxu0 %v1666
        %v1668 = vpop.f32.mrf.mxu0
        %v1669 = vadd.f32 %v1608, %v1668
        %v1670 = vand.u32 %v740, 4294901760
        %v1671 = vsub.f32 %v740, %v1670
        %v1672 = vand.u32 %v1671, 4294901760
        %v1673 = vsub.f32 %v1671, %v1672
        %v1674 = vand.u32 %v1673, 4294901760
        %1675 = vmatmul.f32.gmra.mxu0 %v1674
        %v1676 = vpop.f32.mrf.mxu0
        %v1677 = vadd.f32 %v1612, %v1676
        %1678 = vdwg.mxu0
        %v1679 = vand.u32 %v633, 4294901760
        %v1680 = vsub.f32 %v633, %v1679
        %v1681 = vand.u32 %v1680, 4294901760
        %v1682 = vsub.f32 %v1680, %v1681
        %v1683 = vand.u32 %v1682, 4294901760
        %1684 = vmatpush.msra.mxu0 %v1683
        %v1685 = vand.u32 %v632, 4294901760
        %v1686 = vsub.f32 %v632, %v1685
        %v1687 = vand.u32 %v1686, 4294901760
        %v1688 = vsub.f32 %v1686, %v1687
        %v1689 = vand.u32 %v1688, 4294901760
        %1690 = vmatpush.msra.mxu0 %v1689
        %v1691 = vand.u32 %v631, 4294901760
        %v1692 = vsub.f32 %v631, %v1691
        %v1693 = vand.u32 %v1692, 4294901760
        %v1694 = vsub.f32 %v1692, %v1693
        %v1695 = vand.u32 %v1694, 4294901760
        %1696 = vmatpush.msra.mxu0 %v1695
        %v1697 = vand.u32 %v630, 4294901760
        %v1698 = vsub.f32 %v630, %v1697
        %v1699 = vand.u32 %v1698, 4294901760
        %v1700 = vsub.f32 %v1698, %v1699
        %v1701 = vand.u32 %v1700, 4294901760
        %1702 = vmatpush.msra.mxu0 %v1701
        %v1703 = vand.u32 %v629, 4294901760
        %v1704 = vsub.f32 %v629, %v1703
        %v1705 = vand.u32 %v1704, 4294901760
        %v1706 = vsub.f32 %v1704, %v1705
        %v1707 = vand.u32 %v1706, 4294901760
        %1708 = vmatpush.msra.mxu0 %v1707
        %v1709 = vand.u32 %v628, 4294901760
        %v1710 = vsub.f32 %v628, %v1709
        %v1711 = vand.u32 %v1710, 4294901760
        %v1712 = vsub.f32 %v1710, %v1711
        %v1713 = vand.u32 %v1712, 4294901760
        %1714 = vmatpush.msra.mxu0 %v1713
        %v1715 = vand.u32 %v627, 4294901760
        %v1716 = vsub.f32 %v627, %v1715
        %v1717 = vand.u32 %v1716, 4294901760
        %v1718 = vsub.f32 %v1716, %v1717
        %v1719 = vand.u32 %v1718, 4294901760
        %1720 = vmatpush.msra.mxu0 %v1719
        %v1721 = vand.u32 %v626, 4294901760
        %v1722 = vsub.f32 %v626, %v1721
        %v1723 = vand.u32 %v1722, 4294901760
        %v1724 = vsub.f32 %v1722, %v1723
        %v1725 = vand.u32 %v1724, 4294901760
        %1726 = vmatpush.msra.mxu0 %v1725
        %v1727 = vand.u32 %v625, 4294901760
        %v1728 = vsub.f32 %v625, %v1727
        %v1729 = vand.u32 %v1728, 4294901760
        %v1730 = vsub.f32 %v1728, %v1729
        %v1731 = vand.u32 %v1730, 4294901760
        %1732 = vmatpush.msra.mxu0 %v1731
        %v1733 = vand.u32 %v624, 4294901760
        %v1734 = vsub.f32 %v624, %v1733
        %v1735 = vand.u32 %v1734, 4294901760
        %v1736 = vsub.f32 %v1734, %v1735
        %v1737 = vand.u32 %v1736, 4294901760
        %1738 = vmatpush.msra.mxu0 %v1737
        %v1739 = vand.u32 %v623, 4294901760
        %v1740 = vsub.f32 %v623, %v1739
        %v1741 = vand.u32 %v1740, 4294901760
        %v1742 = vsub.f32 %v1740, %v1741
        %v1743 = vand.u32 %v1742, 4294901760
        %1744 = vmatpush.msra.mxu0 %v1743
        %v1745 = vand.u32 %v622, 4294901760
        %v1746 = vsub.f32 %v622, %v1745
        %v1747 = vand.u32 %v1746, 4294901760
        %v1748 = vsub.f32 %v1746, %v1747
        %v1749 = vand.u32 %v1748, 4294901760
        %1750 = vmatpush.msra.mxu0 %v1749
        %v1751 = vand.u32 %v621, 4294901760
        %v1752 = vsub.f32 %v621, %v1751
        %v1753 = vand.u32 %v1752, 4294901760
        %v1754 = vsub.f32 %v1752, %v1753
        %v1755 = vand.u32 %v1754, 4294901760
        %1756 = vmatpush.msra.mxu0 %v1755
        %v1757 = vand.u32 %v620, 4294901760
        %v1758 = vsub.f32 %v620, %v1757
        %v1759 = vand.u32 %v1758, 4294901760
        %v1760 = vsub.f32 %v1758, %v1759
        %v1761 = vand.u32 %v1760, 4294901760
        %1762 = vmatpush.msra.mxu0 %v1761
        %v1763 = vand.u32 %v619, 4294901760
        %v1764 = vsub.f32 %v619, %v1763
        %v1765 = vand.u32 %v1764, 4294901760
        %v1766 = vsub.f32 %v1764, %v1765
        %v1767 = vand.u32 %v1766, 4294901760
        %1768 = vmatpush.msra.mxu0 %v1767
        %v1769 = vand.u32 %v618, 4294901760
        %v1770 = vsub.f32 %v618, %v1769
        %v1771 = vand.u32 %v1770, 4294901760
        %v1772 = vsub.f32 %v1770, %v1771
        %v1773 = vand.u32 %v1772, 4294901760
        %1774 = vmatpush.msra.mxu0 %v1773
        %v1775 = vand.u32 %v716, 4294901760
        %1776 = vmatmul.f32.gmra.mxu0 %v1775
        %v1777 = vpop.f32.mrf.mxu0
        %v1778 = vadd.f32 %v1653, %v1777
        %v1779 = vand.u32 %v724, 4294901760
        %1780 = vmatmul.f32.gmra.mxu0 %v1779
        %v1781 = vpop.f32.mrf.mxu0
        %v1782 = vadd.f32 %v1661, %v1781
        %v1783 = vand.u32 %v732, 4294901760
        %1784 = vmatmul.f32.gmra.mxu0 %v1783
        %v1785 = vpop.f32.mrf.mxu0
        %v1786 = vadd.f32 %v1669, %v1785
        %v1787 = vand.u32 %v740, 4294901760
        %1788 = vmatmul.f32.gmra.mxu0 %v1787
        %v1789 = vpop.f32.mrf.mxu0
        %v1790 = vadd.f32 %v1677, %v1789
        %1791 = vdwg.mxu0
        %v1792 = vand.u32 %v633, 4294901760
        %v1793 = vsub.f32 %v633, %v1792
        %1794 = vmatpush.msra.mxu0 %v1793
        %v1795 = vand.u32 %v632, 4294901760
        %v1796 = vsub.f32 %v632, %v1795
        %1797 = vmatpush.msra.mxu0 %v1796
        %v1798 = vand.u32 %v631, 4294901760
        %v1799 = vsub.f32 %v631, %v1798
        %1800 = vmatpush.msra.mxu0 %v1799
        %v1801 = vand.u32 %v630, 4294901760
        %v1802 = vsub.f32 %v630, %v1801
        %1803 = vmatpush.msra.mxu0 %v1802
        %v1804 = vand.u32 %v629, 4294901760
        %v1805 = vsub.f32 %v629, %v1804
        %1806 = vmatpush.msra.mxu0 %v1805
        %v1807 = vand.u32 %v628, 4294901760
        %v1808 = vsub.f32 %v628, %v1807
        %1809 = vmatpush.msra.mxu0 %v1808
        %v1810 = vand.u32 %v627, 4294901760
        %v1811 = vsub.f32 %v627, %v1810
        %1812 = vmatpush.msra.mxu0 %v1811
        %v1813 = vand.u32 %v626, 4294901760
        %v1814 = vsub.f32 %v626, %v1813
        %1815 = vmatpush.msra.mxu0 %v1814
        %v1816 = vand.u32 %v625, 4294901760
        %v1817 = vsub.f32 %v625, %v1816
        %1818 = vmatpush.msra.mxu0 %v1817
        %v1819 = vand.u32 %v624, 4294901760
        %v1820 = vsub.f32 %v624, %v1819
        %1821 = vmatpush.msra.mxu0 %v1820
        %v1822 = vand.u32 %v623, 4294901760
        %v1823 = vsub.f32 %v623, %v1822
        %1824 = vmatpush.msra.mxu0 %v1823
        %v1825 = vand.u32 %v622, 4294901760
        %v1826 = vsub.f32 %v622, %v1825
        %1827 = vmatpush.msra.mxu0 %v1826
        %v1828 = vand.u32 %v621, 4294901760
        %v1829 = vsub.f32 %v621, %v1828
        %1830 = vmatpush.msra.mxu0 %v1829
        %v1831 = vand.u32 %v620, 4294901760
        %v1832 = vsub.f32 %v620, %v1831
        %1833 = vmatpush.msra.mxu0 %v1832
        %v1834 = vand.u32 %v619, 4294901760
        %v1835 = vsub.f32 %v619, %v1834
        %1836 = vmatpush.msra.mxu0 %v1835
        %v1837 = vand.u32 %v618, 4294901760
        %v1838 = vsub.f32 %v618, %v1837
        %1839 = vmatpush.msra.mxu0 %v1838
        %v1840 = vand.u32 %v716, 4294901760
        %v1841 = vsub.f32 %v716, %v1840
        %1842 = vmatmul.f32.gmra.mxu0 %v1841
        %v1843 = vpop.f32.mrf.mxu0
        %v1844 = vadd.f32 %v1778, %v1843
        %v1845 = vand.u32 %v724, 4294901760
        %v1846 = vsub.f32 %v724, %v1845
        %1847 = vmatmul.f32.gmra.mxu0 %v1846
        %v1848 = vpop.f32.mrf.mxu0
        %v1849 = vadd.f32 %v1782, %v1848
        %v1850 = vand.u32 %v732, 4294901760
        %v1851 = vsub.f32 %v732, %v1850
        %1852 = vmatmul.f32.gmra.mxu0 %v1851
        %v1853 = vpop.f32.mrf.mxu0
        %v1854 = vadd.f32 %v1786, %v1853
        %v1855 = vand.u32 %v740, 4294901760
        %v1856 = vsub.f32 %v740, %v1855
        %1857 = vmatmul.f32.gmra.mxu0 %v1856
        %v1858 = vpop.f32.mrf.mxu0
        %v1859 = vadd.f32 %v1790, %v1858
        %1860 = vdwg.mxu0
        %v1861 = vand.u32 %v633, 4294901760
        %1862 = vmatpush.msra.mxu0 %v1861
        %v1863 = vand.u32 %v632, 4294901760
        %1864 = vmatpush.msra.mxu0 %v1863
        %v1865 = vand.u32 %v631, 4294901760
        %1866 = vmatpush.msra.mxu0 %v1865
        %v1867 = vand.u32 %v630, 4294901760
        %1868 = vmatpush.msra.mxu0 %v1867
        %v1869 = vand.u32 %v629, 4294901760
        %1870 = vmatpush.msra.mxu0 %v1869
        %v1871 = vand.u32 %v628, 4294901760
        %1872 = vmatpush.msra.mxu0 %v1871
        %v1873 = vand.u32 %v627, 4294901760
        %1874 = vmatpush.msra.mxu0 %v1873
        %v1875 = vand.u32 %v626, 4294901760
        %1876 = vmatpush.msra.mxu0 %v1875
        %v1877 = vand.u32 %v625, 4294901760
        %1878 = vmatpush.msra.mxu0 %v1877
        %v1879 = vand.u32 %v624, 4294901760
        %1880 = vmatpush.msra.mxu0 %v1879
        %v1881 = vand.u32 %v623, 4294901760
        %1882 = vmatpush.msra.mxu0 %v1881
        %v1883 = vand.u32 %v622, 4294901760
        %1884 = vmatpush.msra.mxu0 %v1883
        %v1885 = vand.u32 %v621, 4294901760
        %1886 = vmatpush.msra.mxu0 %v1885
        %v1887 = vand.u32 %v620, 4294901760
        %1888 = vmatpush.msra.mxu0 %v1887
        %v1889 = vand.u32 %v619, 4294901760
        %1890 = vmatpush.msra.mxu0 %v1889
        %v1891 = vand.u32 %v618, 4294901760
        %1892 = vmatpush.msra.mxu0 %v1891
        %v1893 = vand.u32 %v716, 4294901760
        %v1894 = vsub.f32 %v716, %v1893
        %v1895 = vand.u32 %v1894, 4294901760
        %1896 = vmatmul.f32.gmra.mxu0 %v1895
        %v1897 = vpop.f32.mrf.mxu0
        %v1898 = vadd.f32 %v1844, %v1897
        %v1899 = vand.u32 %v724, 4294901760
        %v1900 = vsub.f32 %v724, %v1899
        %v1901 = vand.u32 %v1900, 4294901760
        %1902 = vmatmul.f32.gmra.mxu0 %v1901
        %v1903 = vpop.f32.mrf.mxu0
        %v1904 = vadd.f32 %v1849, %v1903
        %v1905 = vand.u32 %v732, 4294901760
        %v1906 = vsub.f32 %v732, %v1905
        %v1907 = vand.u32 %v1906, 4294901760
        %1908 = vmatmul.f32.gmra.mxu0 %v1907
        %v1909 = vpop.f32.mrf.mxu0
        %v1910 = vadd.f32 %v1854, %v1909
        %v1911 = vand.u32 %v740, 4294901760
        %v1912 = vsub.f32 %v740, %v1911
        %v1913 = vand.u32 %v1912, 4294901760
        %1914 = vmatmul.f32.gmra.mxu0 %v1913
        %v1915 = vpop.f32.mrf.mxu0
        %v1916 = vadd.f32 %v1859, %v1915
        %1917 = vdwg.mxu0
        %v1918 = vand.u32 %v633, 4294901760
        %v1919 = vsub.f32 %v633, %v1918
        %v1920 = vand.u32 %v1919, 4294901760
        %1921 = vmatpush.msra.mxu0 %v1920
        %v1922 = vand.u32 %v632, 4294901760
        %v1923 = vsub.f32 %v632, %v1922
        %v1924 = vand.u32 %v1923, 4294901760
        %1925 = vmatpush.msra.mxu0 %v1924
        %v1926 = vand.u32 %v631, 4294901760
        %v1927 = vsub.f32 %v631, %v1926
        %v1928 = vand.u32 %v1927, 4294901760
        %1929 = vmatpush.msra.mxu0 %v1928
        %v1930 = vand.u32 %v630, 4294901760
        %v1931 = vsub.f32 %v630, %v1930
        %v1932 = vand.u32 %v1931, 4294901760
        %1933 = vmatpush.msra.mxu0 %v1932
        %v1934 = vand.u32 %v629, 4294901760
        %v1935 = vsub.f32 %v629, %v1934
        %v1936 = vand.u32 %v1935, 4294901760
        %1937 = vmatpush.msra.mxu0 %v1936
        %v1938 = vand.u32 %v628, 4294901760
        %v1939 = vsub.f32 %v628, %v1938
        %v1940 = vand.u32 %v1939, 4294901760
        %1941 = vmatpush.msra.mxu0 %v1940
        %v1942 = vand.u32 %v627, 4294901760
        %v1943 = vsub.f32 %v627, %v1942
        %v1944 = vand.u32 %v1943, 4294901760
        %1945 = vmatpush.msra.mxu0 %v1944
        %v1946 = vand.u32 %v626, 4294901760
        %v1947 = vsub.f32 %v626, %v1946
        %v1948 = vand.u32 %v1947, 4294901760
        %1949 = vmatpush.msra.mxu0 %v1948
        %v1950 = vand.u32 %v625, 4294901760
        %v1951 = vsub.f32 %v625, %v1950
        %v1952 = vand.u32 %v1951, 4294901760
        %1953 = vmatpush.msra.mxu0 %v1952
        %v1954 = vand.u32 %v624, 4294901760
        %v1955 = vsub.f32 %v624, %v1954
        %v1956 = vand.u32 %v1955, 4294901760
        %1957 = vmatpush.msra.mxu0 %v1956
        %v1958 = vand.u32 %v623, 4294901760
        %v1959 = vsub.f32 %v623, %v1958
        %v1960 = vand.u32 %v1959, 4294901760
        %1961 = vmatpush.msra.mxu0 %v1960
        %v1962 = vand.u32 %v622, 4294901760
        %v1963 = vsub.f32 %v622, %v1962
        %v1964 = vand.u32 %v1963, 4294901760
        %1965 = vmatpush.msra.mxu0 %v1964
        %v1966 = vand.u32 %v621, 4294901760
        %v1967 = vsub.f32 %v621, %v1966
        %v1968 = vand.u32 %v1967, 4294901760
        %1969 = vmatpush.msra.mxu0 %v1968
        %v1970 = vand.u32 %v620, 4294901760
        %v1971 = vsub.f32 %v620, %v1970
        %v1972 = vand.u32 %v1971, 4294901760
        %1973 = vmatpush.msra.mxu0 %v1972
        %v1974 = vand.u32 %v619, 4294901760
        %v1975 = vsub.f32 %v619, %v1974
        %v1976 = vand.u32 %v1975, 4294901760
        %1977 = vmatpush.msra.mxu0 %v1976
        %v1978 = vand.u32 %v618, 4294901760
        %v1979 = vsub.f32 %v618, %v1978
        %v1980 = vand.u32 %v1979, 4294901760
        %1981 = vmatpush.msra.mxu0 %v1980
        %v1982 = vand.u32 %v716, 4294901760
        %1983 = vmatmul.f32.gmra.mxu0 %v1982
        %v1984 = vpop.f32.mrf.mxu0
        %v1985 = vadd.f32 %v1898, %v1984
        %v1986 = vand.u32 %v724, 4294901760
        %1987 = vmatmul.f32.gmra.mxu0 %v1986
        %v1988 = vpop.f32.mrf.mxu0
        %v1989 = vadd.f32 %v1904, %v1988
        %v1990 = vand.u32 %v732, 4294901760
        %1991 = vmatmul.f32.gmra.mxu0 %v1990
        %v1992 = vpop.f32.mrf.mxu0
        %v1993 = vadd.f32 %v1910, %v1992
        %v1994 = vand.u32 %v740, 4294901760
        %1995 = vmatmul.f32.gmra.mxu0 %v1994
        %v1996 = vpop.f32.mrf.mxu0
        %v1997 = vadd.f32 %v1916, %v1996
        %1998 = vdwg.mxu0
        %v1999 = vand.u32 %v633, 4294901760
        %2000 = vmatpush.msra.mxu0 %v1999
        %v2001 = vand.u32 %v632, 4294901760
        %2002 = vmatpush.msra.mxu0 %v2001
        %v2003 = vand.u32 %v631, 4294901760
        %2004 = vmatpush.msra.mxu0 %v2003
        %v2005 = vand.u32 %v630, 4294901760
        %2006 = vmatpush.msra.mxu0 %v2005
        %v2007 = vand.u32 %v629, 4294901760
        %2008 = vmatpush.msra.mxu0 %v2007
        %v2009 = vand.u32 %v628, 4294901760
        %2010 = vmatpush.msra.mxu0 %v2009
        %v2011 = vand.u32 %v627, 4294901760
        %2012 = vmatpush.msra.mxu0 %v2011
        %v2013 = vand.u32 %v626, 4294901760
        %2014 = vmatpush.msra.mxu0 %v2013
        %v2015 = vand.u32 %v625, 4294901760
        %2016 = vmatpush.msra.mxu0 %v2015
        %v2017 = vand.u32 %v624, 4294901760
        %2018 = vmatpush.msra.mxu0 %v2017
        %v2019 = vand.u32 %v623, 4294901760
        %2020 = vmatpush.msra.mxu0 %v2019
        %v2021 = vand.u32 %v622, 4294901760
        %2022 = vmatpush.msra.mxu0 %v2021
        %v2023 = vand.u32 %v621, 4294901760
        %2024 = vmatpush.msra.mxu0 %v2023
        %v2025 = vand.u32 %v620, 4294901760
        %2026 = vmatpush.msra.mxu0 %v2025
        %v2027 = vand.u32 %v619, 4294901760
        %2028 = vmatpush.msra.mxu0 %v2027
        %v2029 = vand.u32 %v618, 4294901760
        %2030 = vmatpush.msra.mxu0 %v2029
        %v2031 = vand.u32 %v716, 4294901760
        %2032 = vmatmul.f32.gmra.mxu0 %v2031
        %v2033 = vpop.f32.mrf.mxu0
        %v2034 = vadd.f32 %v1985, %v2033
        %v2035 = vand.u32 %v724, 4294901760
        %2036 = vmatmul.f32.gmra.mxu0 %v2035
        %v2037 = vpop.f32.mrf.mxu0
        %v2038 = vadd.f32 %v1989, %v2037
        %v2039 = vand.u32 %v732, 4294901760
        %2040 = vmatmul.f32.gmra.mxu0 %v2039
        %v2041 = vpop.f32.mrf.mxu0
        %v2042 = vadd.f32 %v1993, %v2041
        %v2043 = vand.u32 %v740, 4294901760
        %2044 = vmatmul.f32.gmra.mxu0 %v2043
        %v2045 = vpop.f32.mrf.mxu0
        %v2046 = vadd.f32 %v1997, %v2045
        %2047 = vdwg.mxu0
        %v2048 = vand.u32 %v649, 4294901760
        %2049 = vmatpush.msra.mxu0 %v2048
        %v2050 = vand.u32 %v648, 4294901760
        %2051 = vmatpush.msra.mxu0 %v2050
        %v2052 = vand.u32 %v647, 4294901760
        %2053 = vmatpush.msra.mxu0 %v2052
        %v2054 = vand.u32 %v646, 4294901760
        %2055 = vmatpush.msra.mxu0 %v2054
        %v2056 = vand.u32 %v645, 4294901760
        %2057 = vmatpush.msra.mxu0 %v2056
        %v2058 = vand.u32 %v644, 4294901760
        %2059 = vmatpush.msra.mxu0 %v2058
        %v2060 = vand.u32 %v643, 4294901760
        %2061 = vmatpush.msra.mxu0 %v2060
        %v2062 = vand.u32 %v642, 4294901760
        %2063 = vmatpush.msra.mxu0 %v2062
        %v2064 = vand.u32 %v641, 4294901760
        %2065 = vmatpush.msra.mxu0 %v2064
        %v2066 = vand.u32 %v640, 4294901760
        %2067 = vmatpush.msra.mxu0 %v2066
        %v2068 = vand.u32 %v639, 4294901760
        %2069 = vmatpush.msra.mxu0 %v2068
        %v2070 = vand.u32 %v638, 4294901760
        %2071 = vmatpush.msra.mxu0 %v2070
        %v2072 = vand.u32 %v637, 4294901760
        %2073 = vmatpush.msra.mxu0 %v2072
        %v2074 = vand.u32 %v636, 4294901760
        %2075 = vmatpush.msra.mxu0 %v2074
        %v2076 = vand.u32 %v635, 4294901760
        %2077 = vmatpush.msra.mxu0 %v2076
        %v2078 = vand.u32 %v634, 4294901760
        %2079 = vmatpush.msra.mxu0 %v2078
        %v2080 = vand.u32 %v717, 4294901760
        %v2081 = vsub.f32 %v717, %v2080
        %v2082 = vand.u32 %v2081, 4294901760
        %v2083 = vsub.f32 %v2081, %v2082
        %v2084 = vand.u32 %v2083, 4294901760
        %2085 = vmatmul.f32.gmra.mxu0 %v2084
        %v2086 = vpop.f32.mrf.mxu0
        %v2087 = vadd.f32 %v2034, %v2086
        %v2088 = vand.u32 %v725, 4294901760
        %v2089 = vsub.f32 %v725, %v2088
        %v2090 = vand.u32 %v2089, 4294901760
        %v2091 = vsub.f32 %v2089, %v2090
        %v2092 = vand.u32 %v2091, 4294901760
        %2093 = vmatmul.f32.gmra.mxu0 %v2092
        %v2094 = vpop.f32.mrf.mxu0
        %v2095 = vadd.f32 %v2038, %v2094
        %v2096 = vand.u32 %v733, 4294901760
        %v2097 = vsub.f32 %v733, %v2096
        %v2098 = vand.u32 %v2097, 4294901760
        %v2099 = vsub.f32 %v2097, %v2098
        %v2100 = vand.u32 %v2099, 4294901760
        %2101 = vmatmul.f32.gmra.mxu0 %v2100
        %v2102 = vpop.f32.mrf.mxu0
        %v2103 = vadd.f32 %v2042, %v2102
        %v2104 = vand.u32 %v741, 4294901760
        %v2105 = vsub.f32 %v741, %v2104
        %v2106 = vand.u32 %v2105, 4294901760
        %v2107 = vsub.f32 %v2105, %v2106
        %v2108 = vand.u32 %v2107, 4294901760
        %2109 = vmatmul.f32.gmra.mxu0 %v2108
        %v2110 = vpop.f32.mrf.mxu0
        %v2111 = vadd.f32 %v2046, %v2110
        %2112 = vdwg.mxu0
        %v2113 = vand.u32 %v649, 4294901760
        %v2114 = vsub.f32 %v649, %v2113
        %v2115 = vand.u32 %v2114, 4294901760
        %v2116 = vsub.f32 %v2114, %v2115
        %v2117 = vand.u32 %v2116, 4294901760
        %2118 = vmatpush.msra.mxu0 %v2117
        %v2119 = vand.u32 %v648, 4294901760
        %v2120 = vsub.f32 %v648, %v2119
        %v2121 = vand.u32 %v2120, 4294901760
        %v2122 = vsub.f32 %v2120, %v2121
        %v2123 = vand.u32 %v2122, 4294901760
        %2124 = vmatpush.msra.mxu0 %v2123
        %v2125 = vand.u32 %v647, 4294901760
        %v2126 = vsub.f32 %v647, %v2125
        %v2127 = vand.u32 %v2126, 4294901760
        %v2128 = vsub.f32 %v2126, %v2127
        %v2129 = vand.u32 %v2128, 4294901760
        %2130 = vmatpush.msra.mxu0 %v2129
        %v2131 = vand.u32 %v646, 4294901760
        %v2132 = vsub.f32 %v646, %v2131
        %v2133 = vand.u32 %v2132, 4294901760
        %v2134 = vsub.f32 %v2132, %v2133
        %v2135 = vand.u32 %v2134, 4294901760
        %2136 = vmatpush.msra.mxu0 %v2135
        %v2137 = vand.u32 %v645, 4294901760
        %v2138 = vsub.f32 %v645, %v2137
        %v2139 = vand.u32 %v2138, 4294901760
        %v2140 = vsub.f32 %v2138, %v2139
        %v2141 = vand.u32 %v2140, 4294901760
        %2142 = vmatpush.msra.mxu0 %v2141
        %v2143 = vand.u32 %v644, 4294901760
        %v2144 = vsub.f32 %v644, %v2143
        %v2145 = vand.u32 %v2144, 4294901760
        %v2146 = vsub.f32 %v2144, %v2145
        %v2147 = vand.u32 %v2146, 4294901760
        %2148 = vmatpush.msra.mxu0 %v2147
        %v2149 = vand.u32 %v643, 4294901760
        %v2150 = vsub.f32 %v643, %v2149
        %v2151 = vand.u32 %v2150, 4294901760
        %v2152 = vsub.f32 %v2150, %v2151
        %v2153 = vand.u32 %v2152, 4294901760
        %2154 = vmatpush.msra.mxu0 %v2153
        %v2155 = vand.u32 %v642, 4294901760
        %v2156 = vsub.f32 %v642, %v2155
        %v2157 = vand.u32 %v2156, 4294901760
        %v2158 = vsub.f32 %v2156, %v2157
        %v2159 = vand.u32 %v2158, 4294901760
        %2160 = vmatpush.msra.mxu0 %v2159
        %v2161 = vand.u32 %v641, 4294901760
        %v2162 = vsub.f32 %v641, %v2161
        %v2163 = vand.u32 %v2162, 4294901760
        %v2164 = vsub.f32 %v2162, %v2163
        %v2165 = vand.u32 %v2164, 4294901760
        %2166 = vmatpush.msra.mxu0 %v2165
        %v2167 = vand.u32 %v640, 4294901760
        %v2168 = vsub.f32 %v640, %v2167
        %v2169 = vand.u32 %v2168, 4294901760
        %v2170 = vsub.f32 %v2168, %v2169
        %v2171 = vand.u32 %v2170, 4294901760
        %2172 = vmatpush.msra.mxu0 %v2171
        %v2173 = vand.u32 %v639, 4294901760
        %v2174 = vsub.f32 %v639, %v2173
        %v2175 = vand.u32 %v2174, 4294901760
        %v2176 = vsub.f32 %v2174, %v2175
        %v2177 = vand.u32 %v2176, 4294901760
        %2178 = vmatpush.msra.mxu0 %v2177
        %v2179 = vand.u32 %v638, 4294901760
        %v2180 = vsub.f32 %v638, %v2179
        %v2181 = vand.u32 %v2180, 4294901760
        %v2182 = vsub.f32 %v2180, %v2181
        %v2183 = vand.u32 %v2182, 4294901760
        %2184 = vmatpush.msra.mxu0 %v2183
        %v2185 = vand.u32 %v637, 4294901760
        %v2186 = vsub.f32 %v637, %v2185
        %v2187 = vand.u32 %v2186, 4294901760
        %v2188 = vsub.f32 %v2186, %v2187
        %v2189 = vand.u32 %v2188, 4294901760
        %2190 = vmatpush.msra.mxu0 %v2189
        %v2191 = vand.u32 %v636, 4294901760
        %v2192 = vsub.f32 %v636, %v2191
        %v2193 = vand.u32 %v2192, 4294901760
        %v2194 = vsub.f32 %v2192, %v2193
        %v2195 = vand.u32 %v2194, 4294901760
        %2196 = vmatpush.msra.mxu0 %v2195
        %v2197 = vand.u32 %v635, 4294901760
        %v2198 = vsub.f32 %v635, %v2197
        %v2199 = vand.u32 %v2198, 4294901760
        %v2200 = vsub.f32 %v2198, %v2199
        %v2201 = vand.u32 %v2200, 4294901760
        %2202 = vmatpush.msra.mxu0 %v2201
        %v2203 = vand.u32 %v634, 4294901760
        %v2204 = vsub.f32 %v634, %v2203
        %v2205 = vand.u32 %v2204, 4294901760
        %v2206 = vsub.f32 %v2204, %v2205
        %v2207 = vand.u32 %v2206, 4294901760
        %2208 = vmatpush.msra.mxu0 %v2207
        %v2209 = vand.u32 %v717, 4294901760
        %2210 = vmatmul.f32.gmra.mxu0 %v2209
        %v2211 = vpop.f32.mrf.mxu0
        %v2212 = vadd.f32 %v2087, %v2211
        %v2213 = vand.u32 %v725, 4294901760
        %2214 = vmatmul.f32.gmra.mxu0 %v2213
        %v2215 = vpop.f32.mrf.mxu0
        %v2216 = vadd.f32 %v2095, %v2215
        %v2217 = vand.u32 %v733, 4294901760
        %2218 = vmatmul.f32.gmra.mxu0 %v2217
        %v2219 = vpop.f32.mrf.mxu0
        %v2220 = vadd.f32 %v2103, %v2219
        %v2221 = vand.u32 %v741, 4294901760
        %2222 = vmatmul.f32.gmra.mxu0 %v2221
        %v2223 = vpop.f32.mrf.mxu0
        %v2224 = vadd.f32 %v2111, %v2223
        %2225 = vdwg.mxu0
        %v2226 = vand.u32 %v649, 4294901760
        %v2227 = vsub.f32 %v649, %v2226
        %2228 = vmatpush.msra.mxu0 %v2227
        %v2229 = vand.u32 %v648, 4294901760
        %v2230 = vsub.f32 %v648, %v2229
        %2231 = vmatpush.msra.mxu0 %v2230
        %v2232 = vand.u32 %v647, 4294901760
        %v2233 = vsub.f32 %v647, %v2232
        %2234 = vmatpush.msra.mxu0 %v2233
        %v2235 = vand.u32 %v646, 4294901760
        %v2236 = vsub.f32 %v646, %v2235
        %2237 = vmatpush.msra.mxu0 %v2236
        %v2238 = vand.u32 %v645, 4294901760
        %v2239 = vsub.f32 %v645, %v2238
        %2240 = vmatpush.msra.mxu0 %v2239
        %v2241 = vand.u32 %v644, 4294901760
        %v2242 = vsub.f32 %v644, %v2241
        %2243 = vmatpush.msra.mxu0 %v2242
        %v2244 = vand.u32 %v643, 4294901760
        %v2245 = vsub.f32 %v643, %v2244
        %2246 = vmatpush.msra.mxu0 %v2245
        %v2247 = vand.u32 %v642, 4294901760
        %v2248 = vsub.f32 %v642, %v2247
        %2249 = vmatpush.msra.mxu0 %v2248
        %v2250 = vand.u32 %v641, 4294901760
        %v2251 = vsub.f32 %v641, %v2250
        %2252 = vmatpush.msra.mxu0 %v2251
        %v2253 = vand.u32 %v640, 4294901760
        %v2254 = vsub.f32 %v640, %v2253
        %2255 = vmatpush.msra.mxu0 %v2254
        %v2256 = vand.u32 %v639, 4294901760
        %v2257 = vsub.f32 %v639, %v2256
        %2258 = vmatpush.msra.mxu0 %v2257
        %v2259 = vand.u32 %v638, 4294901760
        %v2260 = vsub.f32 %v638, %v2259
        %2261 = vmatpush.msra.mxu0 %v2260
        %v2262 = vand.u32 %v637, 4294901760
        %v2263 = vsub.f32 %v637, %v2262
        %2264 = vmatpush.msra.mxu0 %v2263
        %v2265 = vand.u32 %v636, 4294901760
        %v2266 = vsub.f32 %v636, %v2265
        %2267 = vmatpush.msra.mxu0 %v2266
        %v2268 = vand.u32 %v635, 4294901760
        %v2269 = vsub.f32 %v635, %v2268
        %2270 = vmatpush.msra.mxu0 %v2269
        %v2271 = vand.u32 %v634, 4294901760
        %v2272 = vsub.f32 %v634, %v2271
        %2273 = vmatpush.msra.mxu0 %v2272
        %v2274 = vand.u32 %v717, 4294901760
        %v2275 = vsub.f32 %v717, %v2274
        %2276 = vmatmul.f32.gmra.mxu0 %v2275
        %v2277 = vpop.f32.mrf.mxu0
        %v2278 = vadd.f32 %v2212, %v2277
        %v2279 = vand.u32 %v725, 4294901760
        %v2280 = vsub.f32 %v725, %v2279
        %2281 = vmatmul.f32.gmra.mxu0 %v2280
        %v2282 = vpop.f32.mrf.mxu0
        %v2283 = vadd.f32 %v2216, %v2282
        %v2284 = vand.u32 %v733, 4294901760
        %v2285 = vsub.f32 %v733, %v2284
        %2286 = vmatmul.f32.gmra.mxu0 %v2285
        %v2287 = vpop.f32.mrf.mxu0
        %v2288 = vadd.f32 %v2220, %v2287
        %v2289 = vand.u32 %v741, 4294901760
        %v2290 = vsub.f32 %v741, %v2289
        %2291 = vmatmul.f32.gmra.mxu0 %v2290
        %v2292 = vpop.f32.mrf.mxu0
        %v2293 = vadd.f32 %v2224, %v2292
        %2294 = vdwg.mxu0
        %v2295 = vand.u32 %v649, 4294901760
        %2296 = vmatpush.msra.mxu0 %v2295
        %v2297 = vand.u32 %v648, 4294901760
        %2298 = vmatpush.msra.mxu0 %v2297
        %v2299 = vand.u32 %v647, 4294901760
        %2300 = vmatpush.msra.mxu0 %v2299
        %v2301 = vand.u32 %v646, 4294901760
        %2302 = vmatpush.msra.mxu0 %v2301
        %v2303 = vand.u32 %v645, 4294901760
        %2304 = vmatpush.msra.mxu0 %v2303
        %v2305 = vand.u32 %v644, 4294901760
        %2306 = vmatpush.msra.mxu0 %v2305
        %v2307 = vand.u32 %v643, 4294901760
        %2308 = vmatpush.msra.mxu0 %v2307
        %v2309 = vand.u32 %v642, 4294901760
        %2310 = vmatpush.msra.mxu0 %v2309
        %v2311 = vand.u32 %v641, 4294901760
        %2312 = vmatpush.msra.mxu0 %v2311
        %v2313 = vand.u32 %v640, 4294901760
        %2314 = vmatpush.msra.mxu0 %v2313
        %v2315 = vand.u32 %v639, 4294901760
        %2316 = vmatpush.msra.mxu0 %v2315
        %v2317 = vand.u32 %v638, 4294901760
        %2318 = vmatpush.msra.mxu0 %v2317
        %v2319 = vand.u32 %v637, 4294901760
        %2320 = vmatpush.msra.mxu0 %v2319
        %v2321 = vand.u32 %v636, 4294901760
        %2322 = vmatpush.msra.mxu0 %v2321
        %v2323 = vand.u32 %v635, 4294901760
        %2324 = vmatpush.msra.mxu0 %v2323
        %v2325 = vand.u32 %v634, 4294901760
        %2326 = vmatpush.msra.mxu0 %v2325
        %v2327 = vand.u32 %v717, 4294901760
        %v2328 = vsub.f32 %v717, %v2327
        %v2329 = vand.u32 %v2328, 4294901760
        %2330 = vmatmul.f32.gmra.mxu0 %v2329
        %v2331 = vpop.f32.mrf.mxu0
        %v2332 = vadd.f32 %v2278, %v2331
        %v2333 = vand.u32 %v725, 4294901760
        %v2334 = vsub.f32 %v725, %v2333
        %v2335 = vand.u32 %v2334, 4294901760
        %2336 = vmatmul.f32.gmra.mxu0 %v2335
        %v2337 = vpop.f32.mrf.mxu0
        %v2338 = vadd.f32 %v2283, %v2337
        %v2339 = vand.u32 %v733, 4294901760
        %v2340 = vsub.f32 %v733, %v2339
        %v2341 = vand.u32 %v2340, 4294901760
        %2342 = vmatmul.f32.gmra.mxu0 %v2341
        %v2343 = vpop.f32.mrf.mxu0
        %v2344 = vadd.f32 %v2288, %v2343
        %v2345 = vand.u32 %v741, 4294901760
        %v2346 = vsub.f32 %v741, %v2345
        %v2347 = vand.u32 %v2346, 4294901760
        %2348 = vmatmul.f32.gmra.mxu0 %v2347
        %v2349 = vpop.f32.mrf.mxu0
        %v2350 = vadd.f32 %v2293, %v2349
        %2351 = vdwg.mxu0
        %v2352 = vand.u32 %v649, 4294901760
        %v2353 = vsub.f32 %v649, %v2352
        %v2354 = vand.u32 %v2353, 4294901760
        %2355 = vmatpush.msra.mxu0 %v2354
        %v2356 = vand.u32 %v648, 4294901760
        %v2357 = vsub.f32 %v648, %v2356
        %v2358 = vand.u32 %v2357, 4294901760
        %2359 = vmatpush.msra.mxu0 %v2358
        %v2360 = vand.u32 %v647, 4294901760
        %v2361 = vsub.f32 %v647, %v2360
        %v2362 = vand.u32 %v2361, 4294901760
        %2363 = vmatpush.msra.mxu0 %v2362
        %v2364 = vand.u32 %v646, 4294901760
        %v2365 = vsub.f32 %v646, %v2364
        %v2366 = vand.u32 %v2365, 4294901760
        %2367 = vmatpush.msra.mxu0 %v2366
        %v2368 = vand.u32 %v645, 4294901760
        %v2369 = vsub.f32 %v645, %v2368
        %v2370 = vand.u32 %v2369, 4294901760
        %2371 = vmatpush.msra.mxu0 %v2370
        %v2372 = vand.u32 %v644, 4294901760
        %v2373 = vsub.f32 %v644, %v2372
        %v2374 = vand.u32 %v2373, 4294901760
        %2375 = vmatpush.msra.mxu0 %v2374
        %v2376 = vand.u32 %v643, 4294901760
        %v2377 = vsub.f32 %v643, %v2376
        %v2378 = vand.u32 %v2377, 4294901760
        %2379 = vmatpush.msra.mxu0 %v2378
        %v2380 = vand.u32 %v642, 4294901760
        %v2381 = vsub.f32 %v642, %v2380
        %v2382 = vand.u32 %v2381, 4294901760
        %2383 = vmatpush.msra.mxu0 %v2382
        %v2384 = vand.u32 %v641, 4294901760
        %v2385 = vsub.f32 %v641, %v2384
        %v2386 = vand.u32 %v2385, 4294901760
        %2387 = vmatpush.msra.mxu0 %v2386
        %v2388 = vand.u32 %v640, 4294901760
        %v2389 = vsub.f32 %v640, %v2388
        %v2390 = vand.u32 %v2389, 4294901760
        %2391 = vmatpush.msra.mxu0 %v2390
        %v2392 = vand.u32 %v639, 4294901760
        %v2393 = vsub.f32 %v639, %v2392
        %v2394 = vand.u32 %v2393, 4294901760
        %2395 = vmatpush.msra.mxu0 %v2394
        %v2396 = vand.u32 %v638, 4294901760
        %v2397 = vsub.f32 %v638, %v2396
        %v2398 = vand.u32 %v2397, 4294901760
        %2399 = vmatpush.msra.mxu0 %v2398
        %v2400 = vand.u32 %v637, 4294901760
        %v2401 = vsub.f32 %v637, %v2400
        %v2402 = vand.u32 %v2401, 4294901760
        %2403 = vmatpush.msra.mxu0 %v2402
        %v2404 = vand.u32 %v636, 4294901760
        %v2405 = vsub.f32 %v636, %v2404
        %v2406 = vand.u32 %v2405, 4294901760
        %2407 = vmatpush.msra.mxu0 %v2406
        %v2408 = vand.u32 %v635, 4294901760
        %v2409 = vsub.f32 %v635, %v2408
        %v2410 = vand.u32 %v2409, 4294901760
        %2411 = vmatpush.msra.mxu0 %v2410
        %v2412 = vand.u32 %v634, 4294901760
        %v2413 = vsub.f32 %v634, %v2412
        %v2414 = vand.u32 %v2413, 4294901760
        %2415 = vmatpush.msra.mxu0 %v2414
        %v2416 = vand.u32 %v717, 4294901760
        %2417 = vmatmul.f32.gmra.mxu0 %v2416
        %v2418 = vpop.f32.mrf.mxu0
        %v2419 = vadd.f32 %v2332, %v2418
        %v2420 = vand.u32 %v725, 4294901760
        %2421 = vmatmul.f32.gmra.mxu0 %v2420
        %v2422 = vpop.f32.mrf.mxu0
        %v2423 = vadd.f32 %v2338, %v2422
        %v2424 = vand.u32 %v733, 4294901760
        %2425 = vmatmul.f32.gmra.mxu0 %v2424
        %v2426 = vpop.f32.mrf.mxu0
        %v2427 = vadd.f32 %v2344, %v2426
        %v2428 = vand.u32 %v741, 4294901760
        %2429 = vmatmul.f32.gmra.mxu0 %v2428
        %v2430 = vpop.f32.mrf.mxu0
        %v2431 = vadd.f32 %v2350, %v2430
        %2432 = vdwg.mxu0
        %v2433 = vand.u32 %v649, 4294901760
        %2434 = vmatpush.msra.mxu0 %v2433
        %v2435 = vand.u32 %v648, 4294901760
        %2436 = vmatpush.msra.mxu0 %v2435
        %v2437 = vand.u32 %v647, 4294901760
        %2438 = vmatpush.msra.mxu0 %v2437
        %v2439 = vand.u32 %v646, 4294901760
        %2440 = vmatpush.msra.mxu0 %v2439
        %v2441 = vand.u32 %v645, 4294901760
        %2442 = vmatpush.msra.mxu0 %v2441
        %v2443 = vand.u32 %v644, 4294901760
        %2444 = vmatpush.msra.mxu0 %v2443
        %v2445 = vand.u32 %v643, 4294901760
        %2446 = vmatpush.msra.mxu0 %v2445
        %v2447 = vand.u32 %v642, 4294901760
        %2448 = vmatpush.msra.mxu0 %v2447
        %v2449 = vand.u32 %v641, 4294901760
        %2450 = vmatpush.msra.mxu0 %v2449
        %v2451 = vand.u32 %v640, 4294901760
        %2452 = vmatpush.msra.mxu0 %v2451
        %v2453 = vand.u32 %v639, 4294901760
        %2454 = vmatpush.msra.mxu0 %v2453
        %v2455 = vand.u32 %v638, 4294901760
        %2456 = vmatpush.msra.mxu0 %v2455
        %v2457 = vand.u32 %v637, 4294901760
        %2458 = vmatpush.msra.mxu0 %v2457
        %v2459 = vand.u32 %v636, 4294901760
        %2460 = vmatpush.msra.mxu0 %v2459
        %v2461 = vand.u32 %v635, 4294901760
        %2462 = vmatpush.msra.mxu0 %v2461
        %v2463 = vand.u32 %v634, 4294901760
        %2464 = vmatpush.msra.mxu0 %v2463
        %v2465 = vand.u32 %v717, 4294901760
        %2466 = vmatmul.f32.gmra.mxu0 %v2465
        %v2467 = vpop.f32.mrf.mxu0
        %v2468 = vadd.f32 %v2419, %v2467
        %v2469 = vand.u32 %v725, 4294901760
        %2470 = vmatmul.f32.gmra.mxu0 %v2469
        %v2471 = vpop.f32.mrf.mxu0
        %v2472 = vadd.f32 %v2423, %v2471
        %v2473 = vand.u32 %v733, 4294901760
        %2474 = vmatmul.f32.gmra.mxu0 %v2473
        %v2475 = vpop.f32.mrf.mxu0
        %v2476 = vadd.f32 %v2427, %v2475
        %v2477 = vand.u32 %v741, 4294901760
        %2478 = vmatmul.f32.gmra.mxu0 %v2477
        %v2479 = vpop.f32.mrf.mxu0
        %v2480 = vadd.f32 %v2431, %v2479
        %2481 = vdwg.mxu0
        %v2482 = vand.u32 %v665, 4294901760
        %2483 = vmatpush.msra.mxu0 %v2482
        %v2484 = vand.u32 %v664, 4294901760
        %2485 = vmatpush.msra.mxu0 %v2484
        %v2486 = vand.u32 %v663, 4294901760
        %2487 = vmatpush.msra.mxu0 %v2486
        %v2488 = vand.u32 %v662, 4294901760
        %2489 = vmatpush.msra.mxu0 %v2488
        %v2490 = vand.u32 %v661, 4294901760
        %2491 = vmatpush.msra.mxu0 %v2490
        %v2492 = vand.u32 %v660, 4294901760
        %2493 = vmatpush.msra.mxu0 %v2492
        %v2494 = vand.u32 %v659, 4294901760
        %2495 = vmatpush.msra.mxu0 %v2494
        %v2496 = vand.u32 %v658, 4294901760
        %2497 = vmatpush.msra.mxu0 %v2496
        %v2498 = vand.u32 %v657, 4294901760
        %2499 = vmatpush.msra.mxu0 %v2498
        %v2500 = vand.u32 %v656, 4294901760
        %2501 = vmatpush.msra.mxu0 %v2500
        %v2502 = vand.u32 %v655, 4294901760
        %2503 = vmatpush.msra.mxu0 %v2502
        %v2504 = vand.u32 %v654, 4294901760
        %2505 = vmatpush.msra.mxu0 %v2504
        %v2506 = vand.u32 %v653, 4294901760
        %2507 = vmatpush.msra.mxu0 %v2506
        %v2508 = vand.u32 %v652, 4294901760
        %2509 = vmatpush.msra.mxu0 %v2508
        %v2510 = vand.u32 %v651, 4294901760
        %2511 = vmatpush.msra.mxu0 %v2510
        %v2512 = vand.u32 %v650, 4294901760
        %2513 = vmatpush.msra.mxu0 %v2512
        %v2514 = vand.u32 %v718, 4294901760
        %v2515 = vsub.f32 %v718, %v2514
        %v2516 = vand.u32 %v2515, 4294901760
        %v2517 = vsub.f32 %v2515, %v2516
        %v2518 = vand.u32 %v2517, 4294901760
        %2519 = vmatmul.f32.gmra.mxu0 %v2518
        %v2520 = vpop.f32.mrf.mxu0
        %v2521 = vadd.f32 %v2468, %v2520
        %v2522 = vand.u32 %v726, 4294901760
        %v2523 = vsub.f32 %v726, %v2522
        %v2524 = vand.u32 %v2523, 4294901760
        %v2525 = vsub.f32 %v2523, %v2524
        %v2526 = vand.u32 %v2525, 4294901760
        %2527 = vmatmul.f32.gmra.mxu0 %v2526
        %v2528 = vpop.f32.mrf.mxu0
        %v2529 = vadd.f32 %v2472, %v2528
        %v2530 = vand.u32 %v734, 4294901760
        %v2531 = vsub.f32 %v734, %v2530
        %v2532 = vand.u32 %v2531, 4294901760
        %v2533 = vsub.f32 %v2531, %v2532
        %v2534 = vand.u32 %v2533, 4294901760
        %2535 = vmatmul.f32.gmra.mxu0 %v2534
        %v2536 = vpop.f32.mrf.mxu0
        %v2537 = vadd.f32 %v2476, %v2536
        %v2538 = vand.u32 %v742, 4294901760
        %v2539 = vsub.f32 %v742, %v2538
        %v2540 = vand.u32 %v2539, 4294901760
        %v2541 = vsub.f32 %v2539, %v2540
        %v2542 = vand.u32 %v2541, 4294901760
        %2543 = vmatmul.f32.gmra.mxu0 %v2542
        %v2544 = vpop.f32.mrf.mxu0
        %v2545 = vadd.f32 %v2480, %v2544
        %2546 = vdwg.mxu0
        %v2547 = vand.u32 %v665, 4294901760
        %v2548 = vsub.f32 %v665, %v2547
        %v2549 = vand.u32 %v2548, 4294901760
        %v2550 = vsub.f32 %v2548, %v2549
        %v2551 = vand.u32 %v2550, 4294901760
        %2552 = vmatpush.msra.mxu0 %v2551
        %v2553 = vand.u32 %v664, 4294901760
        %v2554 = vsub.f32 %v664, %v2553
        %v2555 = vand.u32 %v2554, 4294901760
        %v2556 = vsub.f32 %v2554, %v2555
        %v2557 = vand.u32 %v2556, 4294901760
        %2558 = vmatpush.msra.mxu0 %v2557
        %v2559 = vand.u32 %v663, 4294901760
        %v2560 = vsub.f32 %v663, %v2559
        %v2561 = vand.u32 %v2560, 4294901760
        %v2562 = vsub.f32 %v2560, %v2561
        %v2563 = vand.u32 %v2562, 4294901760
        %2564 = vmatpush.msra.mxu0 %v2563
        %v2565 = vand.u32 %v662, 4294901760
        %v2566 = vsub.f32 %v662, %v2565
        %v2567 = vand.u32 %v2566, 4294901760
        %v2568 = vsub.f32 %v2566, %v2567
        %v2569 = vand.u32 %v2568, 4294901760
        %2570 = vmatpush.msra.mxu0 %v2569
        %v2571 = vand.u32 %v661, 4294901760
        %v2572 = vsub.f32 %v661, %v2571
        %v2573 = vand.u32 %v2572, 4294901760
        %v2574 = vsub.f32 %v2572, %v2573
        %v2575 = vand.u32 %v2574, 4294901760
        %2576 = vmatpush.msra.mxu0 %v2575
        %v2577 = vand.u32 %v660, 4294901760
        %v2578 = vsub.f32 %v660, %v2577
        %v2579 = vand.u32 %v2578, 4294901760
        %v2580 = vsub.f32 %v2578, %v2579
        %v2581 = vand.u32 %v2580, 4294901760
        %2582 = vmatpush.msra.mxu0 %v2581
        %v2583 = vand.u32 %v659, 4294901760
        %v2584 = vsub.f32 %v659, %v2583
        %v2585 = vand.u32 %v2584, 4294901760
        %v2586 = vsub.f32 %v2584, %v2585
        %v2587 = vand.u32 %v2586, 4294901760
        %2588 = vmatpush.msra.mxu0 %v2587
        %v2589 = vand.u32 %v658, 4294901760
        %v2590 = vsub.f32 %v658, %v2589
        %v2591 = vand.u32 %v2590, 4294901760
        %v2592 = vsub.f32 %v2590, %v2591
        %v2593 = vand.u32 %v2592, 4294901760
        %2594 = vmatpush.msra.mxu0 %v2593
        %v2595 = vand.u32 %v657, 4294901760
        %v2596 = vsub.f32 %v657, %v2595
        %v2597 = vand.u32 %v2596, 4294901760
        %v2598 = vsub.f32 %v2596, %v2597
        %v2599 = vand.u32 %v2598, 4294901760
        %2600 = vmatpush.msra.mxu0 %v2599
        %v2601 = vand.u32 %v656, 4294901760
        %v2602 = vsub.f32 %v656, %v2601
        %v2603 = vand.u32 %v2602, 4294901760
        %v2604 = vsub.f32 %v2602, %v2603
        %v2605 = vand.u32 %v2604, 4294901760
        %2606 = vmatpush.msra.mxu0 %v2605
        %v2607 = vand.u32 %v655, 4294901760
        %v2608 = vsub.f32 %v655, %v2607
        %v2609 = vand.u32 %v2608, 4294901760
        %v2610 = vsub.f32 %v2608, %v2609
        %v2611 = vand.u32 %v2610, 4294901760
        %2612 = vmatpush.msra.mxu0 %v2611
        %v2613 = vand.u32 %v654, 4294901760
        %v2614 = vsub.f32 %v654, %v2613
        %v2615 = vand.u32 %v2614, 4294901760
        %v2616 = vsub.f32 %v2614, %v2615
        %v2617 = vand.u32 %v2616, 4294901760
        %2618 = vmatpush.msra.mxu0 %v2617
        %v2619 = vand.u32 %v653, 4294901760
        %v2620 = vsub.f32 %v653, %v2619
        %v2621 = vand.u32 %v2620, 4294901760
        %v2622 = vsub.f32 %v2620, %v2621
        %v2623 = vand.u32 %v2622, 4294901760
        %2624 = vmatpush.msra.mxu0 %v2623
        %v2625 = vand.u32 %v652, 4294901760
        %v2626 = vsub.f32 %v652, %v2625
        %v2627 = vand.u32 %v2626, 4294901760
        %v2628 = vsub.f32 %v2626, %v2627
        %v2629 = vand.u32 %v2628, 4294901760
        %2630 = vmatpush.msra.mxu0 %v2629
        %v2631 = vand.u32 %v651, 4294901760
        %v2632 = vsub.f32 %v651, %v2631
        %v2633 = vand.u32 %v2632, 4294901760
        %v2634 = vsub.f32 %v2632, %v2633
        %v2635 = vand.u32 %v2634, 4294901760
        %2636 = vmatpush.msra.mxu0 %v2635
        %v2637 = vand.u32 %v650, 4294901760
        %v2638 = vsub.f32 %v650, %v2637
        %v2639 = vand.u32 %v2638, 4294901760
        %v2640 = vsub.f32 %v2638, %v2639
        %v2641 = vand.u32 %v2640, 4294901760
        %2642 = vmatpush.msra.mxu0 %v2641
        %v2643 = vand.u32 %v718, 4294901760
        %2644 = vmatmul.f32.gmra.mxu0 %v2643
        %v2645 = vpop.f32.mrf.mxu0
        %v2646 = vadd.f32 %v2521, %v2645
        %v2647 = vand.u32 %v726, 4294901760
        %2648 = vmatmul.f32.gmra.mxu0 %v2647
        %v2649 = vpop.f32.mrf.mxu0
        %v2650 = vadd.f32 %v2529, %v2649
        %v2651 = vand.u32 %v734, 4294901760
        %2652 = vmatmul.f32.gmra.mxu0 %v2651
        %v2653 = vpop.f32.mrf.mxu0
        %v2654 = vadd.f32 %v2537, %v2653
        %v2655 = vand.u32 %v742, 4294901760
        %2656 = vmatmul.f32.gmra.mxu0 %v2655
        %v2657 = vpop.f32.mrf.mxu0
        %v2658 = vadd.f32 %v2545, %v2657
        %2659 = vdwg.mxu0
        %v2660 = vand.u32 %v665, 4294901760
        %v2661 = vsub.f32 %v665, %v2660
        %2662 = vmatpush.msra.mxu0 %v2661
        %v2663 = vand.u32 %v664, 4294901760
        %v2664 = vsub.f32 %v664, %v2663
        %2665 = vmatpush.msra.mxu0 %v2664
        %v2666 = vand.u32 %v663, 4294901760
        %v2667 = vsub.f32 %v663, %v2666
        %2668 = vmatpush.msra.mxu0 %v2667
        %v2669 = vand.u32 %v662, 4294901760
        %v2670 = vsub.f32 %v662, %v2669
        %2671 = vmatpush.msra.mxu0 %v2670
        %v2672 = vand.u32 %v661, 4294901760
        %v2673 = vsub.f32 %v661, %v2672
        %2674 = vmatpush.msra.mxu0 %v2673
        %v2675 = vand.u32 %v660, 4294901760
        %v2676 = vsub.f32 %v660, %v2675
        %2677 = vmatpush.msra.mxu0 %v2676
        %v2678 = vand.u32 %v659, 4294901760
        %v2679 = vsub.f32 %v659, %v2678
        %2680 = vmatpush.msra.mxu0 %v2679
        %v2681 = vand.u32 %v658, 4294901760
        %v2682 = vsub.f32 %v658, %v2681
        %2683 = vmatpush.msra.mxu0 %v2682
        %v2684 = vand.u32 %v657, 4294901760
        %v2685 = vsub.f32 %v657, %v2684
        %2686 = vmatpush.msra.mxu0 %v2685
        %v2687 = vand.u32 %v656, 4294901760
        %v2688 = vsub.f32 %v656, %v2687
        %2689 = vmatpush.msra.mxu0 %v2688
        %v2690 = vand.u32 %v655, 4294901760
        %v2691 = vsub.f32 %v655, %v2690
        %2692 = vmatpush.msra.mxu0 %v2691
        %v2693 = vand.u32 %v654, 4294901760
        %v2694 = vsub.f32 %v654, %v2693
        %2695 = vmatpush.msra.mxu0 %v2694
        %v2696 = vand.u32 %v653, 4294901760
        %v2697 = vsub.f32 %v653, %v2696
        %2698 = vmatpush.msra.mxu0 %v2697
        %v2699 = vand.u32 %v652, 4294901760
        %v2700 = vsub.f32 %v652, %v2699
        %2701 = vmatpush.msra.mxu0 %v2700
        %v2702 = vand.u32 %v651, 4294901760
        %v2703 = vsub.f32 %v651, %v2702
        %2704 = vmatpush.msra.mxu0 %v2703
        %v2705 = vand.u32 %v650, 4294901760
        %v2706 = vsub.f32 %v650, %v2705
        %2707 = vmatpush.msra.mxu0 %v2706
        %v2708 = vand.u32 %v718, 4294901760
        %v2709 = vsub.f32 %v718, %v2708
        %2710 = vmatmul.f32.gmra.mxu0 %v2709
        %v2711 = vpop.f32.mrf.mxu0
        %v2712 = vadd.f32 %v2646, %v2711
        %v2713 = vand.u32 %v726, 4294901760
        %v2714 = vsub.f32 %v726, %v2713
        %2715 = vmatmul.f32.gmra.mxu0 %v2714
        %v2716 = vpop.f32.mrf.mxu0
        %v2717 = vadd.f32 %v2650, %v2716
        %v2718 = vand.u32 %v734, 4294901760
        %v2719 = vsub.f32 %v734, %v2718
        %2720 = vmatmul.f32.gmra.mxu0 %v2719
        %v2721 = vpop.f32.mrf.mxu0
        %v2722 = vadd.f32 %v2654, %v2721
        %v2723 = vand.u32 %v742, 4294901760
        %v2724 = vsub.f32 %v742, %v2723
        %2725 = vmatmul.f32.gmra.mxu0 %v2724
        %v2726 = vpop.f32.mrf.mxu0
        %v2727 = vadd.f32 %v2658, %v2726
        %2728 = vdwg.mxu0
        %v2729 = vand.u32 %v665, 4294901760
        %2730 = vmatpush.msra.mxu0 %v2729
        %v2731 = vand.u32 %v664, 4294901760
        %2732 = vmatpush.msra.mxu0 %v2731
        %v2733 = vand.u32 %v663, 4294901760
        %2734 = vmatpush.msra.mxu0 %v2733
        %v2735 = vand.u32 %v662, 4294901760
        %2736 = vmatpush.msra.mxu0 %v2735
        %v2737 = vand.u32 %v661, 4294901760
        %2738 = vmatpush.msra.mxu0 %v2737
        %v2739 = vand.u32 %v660, 4294901760
        %2740 = vmatpush.msra.mxu0 %v2739
        %v2741 = vand.u32 %v659, 4294901760
        %2742 = vmatpush.msra.mxu0 %v2741
        %v2743 = vand.u32 %v658, 4294901760
        %2744 = vmatpush.msra.mxu0 %v2743
        %v2745 = vand.u32 %v657, 4294901760
        %2746 = vmatpush.msra.mxu0 %v2745
        %v2747 = vand.u32 %v656, 4294901760
        %2748 = vmatpush.msra.mxu0 %v2747
        %v2749 = vand.u32 %v655, 4294901760
        %2750 = vmatpush.msra.mxu0 %v2749
        %v2751 = vand.u32 %v654, 4294901760
        %2752 = vmatpush.msra.mxu0 %v2751
        %v2753 = vand.u32 %v653, 4294901760
        %2754 = vmatpush.msra.mxu0 %v2753
        %v2755 = vand.u32 %v652, 4294901760
        %2756 = vmatpush.msra.mxu0 %v2755
        %v2757 = vand.u32 %v651, 4294901760
        %2758 = vmatpush.msra.mxu0 %v2757
        %v2759 = vand.u32 %v650, 4294901760
        %2760 = vmatpush.msra.mxu0 %v2759
        %v2761 = vand.u32 %v718, 4294901760
        %v2762 = vsub.f32 %v718, %v2761
        %v2763 = vand.u32 %v2762, 4294901760
        %2764 = vmatmul.f32.gmra.mxu0 %v2763
        %v2765 = vpop.f32.mrf.mxu0
        %v2766 = vadd.f32 %v2712, %v2765
        %v2767 = vand.u32 %v726, 4294901760
        %v2768 = vsub.f32 %v726, %v2767
        %v2769 = vand.u32 %v2768, 4294901760
        %2770 = vmatmul.f32.gmra.mxu0 %v2769
        %v2771 = vpop.f32.mrf.mxu0
        %v2772 = vadd.f32 %v2717, %v2771
        %v2773 = vand.u32 %v734, 4294901760
        %v2774 = vsub.f32 %v734, %v2773
        %v2775 = vand.u32 %v2774, 4294901760
        %2776 = vmatmul.f32.gmra.mxu0 %v2775
        %v2777 = vpop.f32.mrf.mxu0
        %v2778 = vadd.f32 %v2722, %v2777
        %v2779 = vand.u32 %v742, 4294901760
        %v2780 = vsub.f32 %v742, %v2779
        %v2781 = vand.u32 %v2780, 4294901760
        %2782 = vmatmul.f32.gmra.mxu0 %v2781
        %v2783 = vpop.f32.mrf.mxu0
        %v2784 = vadd.f32 %v2727, %v2783
        %2785 = vdwg.mxu0
        %v2786 = vand.u32 %v665, 4294901760
        %v2787 = vsub.f32 %v665, %v2786
        %v2788 = vand.u32 %v2787, 4294901760
        %2789 = vmatpush.msra.mxu0 %v2788
        %v2790 = vand.u32 %v664, 4294901760
        %v2791 = vsub.f32 %v664, %v2790
        %v2792 = vand.u32 %v2791, 4294901760
        %2793 = vmatpush.msra.mxu0 %v2792
        %v2794 = vand.u32 %v663, 4294901760
        %v2795 = vsub.f32 %v663, %v2794
        %v2796 = vand.u32 %v2795, 4294901760
        %2797 = vmatpush.msra.mxu0 %v2796
        %v2798 = vand.u32 %v662, 4294901760
        %v2799 = vsub.f32 %v662, %v2798
        %v2800 = vand.u32 %v2799, 4294901760
        %2801 = vmatpush.msra.mxu0 %v2800
        %v2802 = vand.u32 %v661, 4294901760
        %v2803 = vsub.f32 %v661, %v2802
        %v2804 = vand.u32 %v2803, 4294901760
        %2805 = vmatpush.msra.mxu0 %v2804
        %v2806 = vand.u32 %v660, 4294901760
        %v2807 = vsub.f32 %v660, %v2806
        %v2808 = vand.u32 %v2807, 4294901760
        %2809 = vmatpush.msra.mxu0 %v2808
        %v2810 = vand.u32 %v659, 4294901760
        %v2811 = vsub.f32 %v659, %v2810
        %v2812 = vand.u32 %v2811, 4294901760
        %2813 = vmatpush.msra.mxu0 %v2812
        %v2814 = vand.u32 %v658, 4294901760
        %v2815 = vsub.f32 %v658, %v2814
        %v2816 = vand.u32 %v2815, 4294901760
        %2817 = vmatpush.msra.mxu0 %v2816
        %v2818 = vand.u32 %v657, 4294901760
        %v2819 = vsub.f32 %v657, %v2818
        %v2820 = vand.u32 %v2819, 4294901760
        %2821 = vmatpush.msra.mxu0 %v2820
        %v2822 = vand.u32 %v656, 4294901760
        %v2823 = vsub.f32 %v656, %v2822
        %v2824 = vand.u32 %v2823, 4294901760
        %2825 = vmatpush.msra.mxu0 %v2824
        %v2826 = vand.u32 %v655, 4294901760
        %v2827 = vsub.f32 %v655, %v2826
        %v2828 = vand.u32 %v2827, 4294901760
        %2829 = vmatpush.msra.mxu0 %v2828
        %v2830 = vand.u32 %v654, 4294901760
        %v2831 = vsub.f32 %v654, %v2830
        %v2832 = vand.u32 %v2831, 4294901760
        %2833 = vmatpush.msra.mxu0 %v2832
        %v2834 = vand.u32 %v653, 4294901760
        %v2835 = vsub.f32 %v653, %v2834
        %v2836 = vand.u32 %v2835, 4294901760
        %2837 = vmatpush.msra.mxu0 %v2836
        %v2838 = vand.u32 %v652, 4294901760
        %v2839 = vsub.f32 %v652, %v2838
        %v2840 = vand.u32 %v2839, 4294901760
        %2841 = vmatpush.msra.mxu0 %v2840
        %v2842 = vand.u32 %v651, 4294901760
        %v2843 = vsub.f32 %v651, %v2842
        %v2844 = vand.u32 %v2843, 4294901760
        %2845 = vmatpush.msra.mxu0 %v2844
        %v2846 = vand.u32 %v650, 4294901760
        %v2847 = vsub.f32 %v650, %v2846
        %v2848 = vand.u32 %v2847, 4294901760
        %2849 = vmatpush.msra.mxu0 %v2848
        %v2850 = vand.u32 %v718, 4294901760
        %2851 = vmatmul.f32.gmra.mxu0 %v2850
        %v2852 = vpop.f32.mrf.mxu0
        %v2853 = vadd.f32 %v2766, %v2852
        %v2854 = vand.u32 %v726, 4294901760
        %2855 = vmatmul.f32.gmra.mxu0 %v2854
        %v2856 = vpop.f32.mrf.mxu0
        %v2857 = vadd.f32 %v2772, %v2856
        %v2858 = vand.u32 %v734, 4294901760
        %2859 = vmatmul.f32.gmra.mxu0 %v2858
        %v2860 = vpop.f32.mrf.mxu0
        %v2861 = vadd.f32 %v2778, %v2860
        %v2862 = vand.u32 %v742, 4294901760
        %2863 = vmatmul.f32.gmra.mxu0 %v2862
        %v2864 = vpop.f32.mrf.mxu0
        %v2865 = vadd.f32 %v2784, %v2864
        %2866 = vdwg.mxu0
        %v2867 = vand.u32 %v665, 4294901760
        %2868 = vmatpush.msra.mxu0 %v2867
        %v2869 = vand.u32 %v664, 4294901760
        %2870 = vmatpush.msra.mxu0 %v2869
        %v2871 = vand.u32 %v663, 4294901760
        %2872 = vmatpush.msra.mxu0 %v2871
        %v2873 = vand.u32 %v662, 4294901760
        %2874 = vmatpush.msra.mxu0 %v2873
        %v2875 = vand.u32 %v661, 4294901760
        %2876 = vmatpush.msra.mxu0 %v2875
        %v2877 = vand.u32 %v660, 4294901760
        %2878 = vmatpush.msra.mxu0 %v2877
        %v2879 = vand.u32 %v659, 4294901760
        %2880 = vmatpush.msra.mxu0 %v2879
        %v2881 = vand.u32 %v658, 4294901760
        %2882 = vmatpush.msra.mxu0 %v2881
        %v2883 = vand.u32 %v657, 4294901760
        %2884 = vmatpush.msra.mxu0 %v2883
        %v2885 = vand.u32 %v656, 4294901760
        %2886 = vmatpush.msra.mxu0 %v2885
        %v2887 = vand.u32 %v655, 4294901760
        %2888 = vmatpush.msra.mxu0 %v2887
        %v2889 = vand.u32 %v654, 4294901760
        %2890 = vmatpush.msra.mxu0 %v2889
        %v2891 = vand.u32 %v653, 4294901760
        %2892 = vmatpush.msra.mxu0 %v2891
        %v2893 = vand.u32 %v652, 4294901760
        %2894 = vmatpush.msra.mxu0 %v2893
        %v2895 = vand.u32 %v651, 4294901760
        %2896 = vmatpush.msra.mxu0 %v2895
        %v2897 = vand.u32 %v650, 4294901760
        %2898 = vmatpush.msra.mxu0 %v2897
        %v2899 = vand.u32 %v718, 4294901760
        %2900 = vmatmul.f32.gmra.mxu0 %v2899
        %v2901 = vpop.f32.mrf.mxu0
        %v2902 = vadd.f32 %v2853, %v2901
        %v2903 = vand.u32 %v726, 4294901760
        %2904 = vmatmul.f32.gmra.mxu0 %v2903
        %v2905 = vpop.f32.mrf.mxu0
        %v2906 = vadd.f32 %v2857, %v2905
        %v2907 = vand.u32 %v734, 4294901760
        %2908 = vmatmul.f32.gmra.mxu0 %v2907
        %v2909 = vpop.f32.mrf.mxu0
        %v2910 = vadd.f32 %v2861, %v2909
        %v2911 = vand.u32 %v742, 4294901760
        %2912 = vmatmul.f32.gmra.mxu0 %v2911
        %v2913 = vpop.f32.mrf.mxu0
        %v2914 = vadd.f32 %v2865, %v2913
        %2915 = vdwg.mxu0
        %v2916 = vand.u32 %v681, 4294901760
        %2917 = vmatpush.msra.mxu0 %v2916
        %v2918 = vand.u32 %v680, 4294901760
        %2919 = vmatpush.msra.mxu0 %v2918
        %v2920 = vand.u32 %v679, 4294901760
        %2921 = vmatpush.msra.mxu0 %v2920
        %v2922 = vand.u32 %v678, 4294901760
        %2923 = vmatpush.msra.mxu0 %v2922
        %v2924 = vand.u32 %v677, 4294901760
        %2925 = vmatpush.msra.mxu0 %v2924
        %v2926 = vand.u32 %v676, 4294901760
        %2927 = vmatpush.msra.mxu0 %v2926
        %v2928 = vand.u32 %v675, 4294901760
        %2929 = vmatpush.msra.mxu0 %v2928
        %v2930 = vand.u32 %v674, 4294901760
        %2931 = vmatpush.msra.mxu0 %v2930
        %v2932 = vand.u32 %v673, 4294901760
        %2933 = vmatpush.msra.mxu0 %v2932
        %v2934 = vand.u32 %v672, 4294901760
        %2935 = vmatpush.msra.mxu0 %v2934
        %v2936 = vand.u32 %v671, 4294901760
        %2937 = vmatpush.msra.mxu0 %v2936
        %v2938 = vand.u32 %v670, 4294901760
        %2939 = vmatpush.msra.mxu0 %v2938
        %v2940 = vand.u32 %v669, 4294901760
        %2941 = vmatpush.msra.mxu0 %v2940
        %v2942 = vand.u32 %v668, 4294901760
        %2943 = vmatpush.msra.mxu0 %v2942
        %v2944 = vand.u32 %v667, 4294901760
        %2945 = vmatpush.msra.mxu0 %v2944
        %v2946 = vand.u32 %v666, 4294901760
        %2947 = vmatpush.msra.mxu0 %v2946
        %v2948 = vand.u32 %v719, 4294901760
        %v2949 = vsub.f32 %v719, %v2948
        %v2950 = vand.u32 %v2949, 4294901760
        %v2951 = vsub.f32 %v2949, %v2950
        %v2952 = vand.u32 %v2951, 4294901760
        %2953 = vmatmul.f32.gmra.mxu0 %v2952
        %v2954 = vpop.f32.mrf.mxu0
        %v2955 = vadd.f32 %v2902, %v2954
        %v2956 = vand.u32 %v727, 4294901760
        %v2957 = vsub.f32 %v727, %v2956
        %v2958 = vand.u32 %v2957, 4294901760
        %v2959 = vsub.f32 %v2957, %v2958
        %v2960 = vand.u32 %v2959, 4294901760
        %2961 = vmatmul.f32.gmra.mxu0 %v2960
        %v2962 = vpop.f32.mrf.mxu0
        %v2963 = vadd.f32 %v2906, %v2962
        %v2964 = vand.u32 %v735, 4294901760
        %v2965 = vsub.f32 %v735, %v2964
        %v2966 = vand.u32 %v2965, 4294901760
        %v2967 = vsub.f32 %v2965, %v2966
        %v2968 = vand.u32 %v2967, 4294901760
        %2969 = vmatmul.f32.gmra.mxu0 %v2968
        %v2970 = vpop.f32.mrf.mxu0
        %v2971 = vadd.f32 %v2910, %v2970
        %v2972 = vand.u32 %v743, 4294901760
        %v2973 = vsub.f32 %v743, %v2972
        %v2974 = vand.u32 %v2973, 4294901760
        %v2975 = vsub.f32 %v2973, %v2974
        %v2976 = vand.u32 %v2975, 4294901760
        %2977 = vmatmul.f32.gmra.mxu0 %v2976
        %v2978 = vpop.f32.mrf.mxu0
        %v2979 = vadd.f32 %v2914, %v2978
        %2980 = vdwg.mxu0
        %v2981 = vand.u32 %v681, 4294901760
        %v2982 = vsub.f32 %v681, %v2981
        %v2983 = vand.u32 %v2982, 4294901760
        %v2984 = vsub.f32 %v2982, %v2983
        %v2985 = vand.u32 %v2984, 4294901760
        %2986 = vmatpush.msra.mxu0 %v2985
        %v2987 = vand.u32 %v680, 4294901760
        %v2988 = vsub.f32 %v680, %v2987
        %v2989 = vand.u32 %v2988, 4294901760
        %v2990 = vsub.f32 %v2988, %v2989
        %v2991 = vand.u32 %v2990, 4294901760
        %2992 = vmatpush.msra.mxu0 %v2991
        %v2993 = vand.u32 %v679, 4294901760
        %v2994 = vsub.f32 %v679, %v2993
        %v2995 = vand.u32 %v2994, 4294901760
        %v2996 = vsub.f32 %v2994, %v2995
        %v2997 = vand.u32 %v2996, 4294901760
        %2998 = vmatpush.msra.mxu0 %v2997
        %v2999 = vand.u32 %v678, 4294901760
        %v3000 = vsub.f32 %v678, %v2999
        %v3001 = vand.u32 %v3000, 4294901760
        %v3002 = vsub.f32 %v3000, %v3001
        %v3003 = vand.u32 %v3002, 4294901760
        %3004 = vmatpush.msra.mxu0 %v3003
        %v3005 = vand.u32 %v677, 4294901760
        %v3006 = vsub.f32 %v677, %v3005
        %v3007 = vand.u32 %v3006, 4294901760
        %v3008 = vsub.f32 %v3006, %v3007
        %v3009 = vand.u32 %v3008, 4294901760
        %3010 = vmatpush.msra.mxu0 %v3009
        %v3011 = vand.u32 %v676, 4294901760
        %v3012 = vsub.f32 %v676, %v3011
        %v3013 = vand.u32 %v3012, 4294901760
        %v3014 = vsub.f32 %v3012, %v3013
        %v3015 = vand.u32 %v3014, 4294901760
        %3016 = vmatpush.msra.mxu0 %v3015
        %v3017 = vand.u32 %v675, 4294901760
        %v3018 = vsub.f32 %v675, %v3017
        %v3019 = vand.u32 %v3018, 4294901760
        %v3020 = vsub.f32 %v3018, %v3019
        %v3021 = vand.u32 %v3020, 4294901760
        %3022 = vmatpush.msra.mxu0 %v3021
        %v3023 = vand.u32 %v674, 4294901760
        %v3024 = vsub.f32 %v674, %v3023
        %v3025 = vand.u32 %v3024, 4294901760
        %v3026 = vsub.f32 %v3024, %v3025
        %v3027 = vand.u32 %v3026, 4294901760
        %3028 = vmatpush.msra.mxu0 %v3027
        %v3029 = vand.u32 %v673, 4294901760
        %v3030 = vsub.f32 %v673, %v3029
        %v3031 = vand.u32 %v3030, 4294901760
        %v3032 = vsub.f32 %v3030, %v3031
        %v3033 = vand.u32 %v3032, 4294901760
        %3034 = vmatpush.msra.mxu0 %v3033
        %v3035 = vand.u32 %v672, 4294901760
        %v3036 = vsub.f32 %v672, %v3035
        %v3037 = vand.u32 %v3036, 4294901760
        %v3038 = vsub.f32 %v3036, %v3037
        %v3039 = vand.u32 %v3038, 4294901760
        %3040 = vmatpush.msra.mxu0 %v3039
        %v3041 = vand.u32 %v671, 4294901760
        %v3042 = vsub.f32 %v671, %v3041
        %v3043 = vand.u32 %v3042, 4294901760
        %v3044 = vsub.f32 %v3042, %v3043
        %v3045 = vand.u32 %v3044, 4294901760
        %3046 = vmatpush.msra.mxu0 %v3045
        %v3047 = vand.u32 %v670, 4294901760
        %v3048 = vsub.f32 %v670, %v3047
        %v3049 = vand.u32 %v3048, 4294901760
        %v3050 = vsub.f32 %v3048, %v3049
        %v3051 = vand.u32 %v3050, 4294901760
        %3052 = vmatpush.msra.mxu0 %v3051
        %v3053 = vand.u32 %v669, 4294901760
        %v3054 = vsub.f32 %v669, %v3053
        %v3055 = vand.u32 %v3054, 4294901760
        %v3056 = vsub.f32 %v3054, %v3055
        %v3057 = vand.u32 %v3056, 4294901760
        %3058 = vmatpush.msra.mxu0 %v3057
        %v3059 = vand.u32 %v668, 4294901760
        %v3060 = vsub.f32 %v668, %v3059
        %v3061 = vand.u32 %v3060, 4294901760
        %v3062 = vsub.f32 %v3060, %v3061
        %v3063 = vand.u32 %v3062, 4294901760
        %3064 = vmatpush.msra.mxu0 %v3063
        %v3065 = vand.u32 %v667, 4294901760
        %v3066 = vsub.f32 %v667, %v3065
        %v3067 = vand.u32 %v3066, 4294901760
        %v3068 = vsub.f32 %v3066, %v3067
        %v3069 = vand.u32 %v3068, 4294901760
        %3070 = vmatpush.msra.mxu0 %v3069
        %v3071 = vand.u32 %v666, 4294901760
        %v3072 = vsub.f32 %v666, %v3071
        %v3073 = vand.u32 %v3072, 4294901760
        %v3074 = vsub.f32 %v3072, %v3073
        %v3075 = vand.u32 %v3074, 4294901760
        %3076 = vmatpush.msra.mxu0 %v3075
        %v3077 = vand.u32 %v719, 4294901760
        %3078 = vmatmul.f32.gmra.mxu0 %v3077
        %v3079 = vpop.f32.mrf.mxu0
        %v3080 = vadd.f32 %v2955, %v3079
        %v3081 = vand.u32 %v727, 4294901760
        %3082 = vmatmul.f32.gmra.mxu0 %v3081
        %v3083 = vpop.f32.mrf.mxu0
        %v3084 = vadd.f32 %v2963, %v3083
        %v3085 = vand.u32 %v735, 4294901760
        %3086 = vmatmul.f32.gmra.mxu0 %v3085
        %v3087 = vpop.f32.mrf.mxu0
        %v3088 = vadd.f32 %v2971, %v3087
        %v3089 = vand.u32 %v743, 4294901760
        %3090 = vmatmul.f32.gmra.mxu0 %v3089
        %v3091 = vpop.f32.mrf.mxu0
        %v3092 = vadd.f32 %v2979, %v3091
        %3093 = vdwg.mxu0
        %v3094 = vand.u32 %v681, 4294901760
        %v3095 = vsub.f32 %v681, %v3094
        %3096 = vmatpush.msra.mxu0 %v3095
        %v3097 = vand.u32 %v680, 4294901760
        %v3098 = vsub.f32 %v680, %v3097
        %3099 = vmatpush.msra.mxu0 %v3098
        %v3100 = vand.u32 %v679, 4294901760
        %v3101 = vsub.f32 %v679, %v3100
        %3102 = vmatpush.msra.mxu0 %v3101
        %v3103 = vand.u32 %v678, 4294901760
        %v3104 = vsub.f32 %v678, %v3103
        %3105 = vmatpush.msra.mxu0 %v3104
        %v3106 = vand.u32 %v677, 4294901760
        %v3107 = vsub.f32 %v677, %v3106
        %3108 = vmatpush.msra.mxu0 %v3107
        %v3109 = vand.u32 %v676, 4294901760
        %v3110 = vsub.f32 %v676, %v3109
        %3111 = vmatpush.msra.mxu0 %v3110
        %v3112 = vand.u32 %v675, 4294901760
        %v3113 = vsub.f32 %v675, %v3112
        %3114 = vmatpush.msra.mxu0 %v3113
        %v3115 = vand.u32 %v674, 4294901760
        %v3116 = vsub.f32 %v674, %v3115
        %3117 = vmatpush.msra.mxu0 %v3116
        %v3118 = vand.u32 %v673, 4294901760
        %v3119 = vsub.f32 %v673, %v3118
        %3120 = vmatpush.msra.mxu0 %v3119
        %v3121 = vand.u32 %v672, 4294901760
        %v3122 = vsub.f32 %v672, %v3121
        %3123 = vmatpush.msra.mxu0 %v3122
        %v3124 = vand.u32 %v671, 4294901760
        %v3125 = vsub.f32 %v671, %v3124
        %3126 = vmatpush.msra.mxu0 %v3125
        %v3127 = vand.u32 %v670, 4294901760
        %v3128 = vsub.f32 %v670, %v3127
        %3129 = vmatpush.msra.mxu0 %v3128
        %v3130 = vand.u32 %v669, 4294901760
        %v3131 = vsub.f32 %v669, %v3130
        %3132 = vmatpush.msra.mxu0 %v3131
        %v3133 = vand.u32 %v668, 4294901760
        %v3134 = vsub.f32 %v668, %v3133
        %3135 = vmatpush.msra.mxu0 %v3134
        %v3136 = vand.u32 %v667, 4294901760
        %v3137 = vsub.f32 %v667, %v3136
        %3138 = vmatpush.msra.mxu0 %v3137
        %v3139 = vand.u32 %v666, 4294901760
        %v3140 = vsub.f32 %v666, %v3139
        %3141 = vmatpush.msra.mxu0 %v3140
        %v3142 = vand.u32 %v719, 4294901760
        %v3143 = vsub.f32 %v719, %v3142
        %3144 = vmatmul.f32.gmra.mxu0 %v3143
        %v3145 = vpop.f32.mrf.mxu0
        %v3146 = vadd.f32 %v3080, %v3145
        %v3147 = vand.u32 %v727, 4294901760
        %v3148 = vsub.f32 %v727, %v3147
        %3149 = vmatmul.f32.gmra.mxu0 %v3148
        %v3150 = vpop.f32.mrf.mxu0
        %v3151 = vadd.f32 %v3084, %v3150
        %v3152 = vand.u32 %v735, 4294901760
        %v3153 = vsub.f32 %v735, %v3152
        %3154 = vmatmul.f32.gmra.mxu0 %v3153
        %v3155 = vpop.f32.mrf.mxu0
        %v3156 = vadd.f32 %v3088, %v3155
        %v3157 = vand.u32 %v743, 4294901760
        %v3158 = vsub.f32 %v743, %v3157
        %3159 = vmatmul.f32.gmra.mxu0 %v3158
        %v3160 = vpop.f32.mrf.mxu0
        %v3161 = vadd.f32 %v3092, %v3160
        %3162 = vdwg.mxu0
        %v3163 = vand.u32 %v681, 4294901760
        %3164 = vmatpush.msra.mxu0 %v3163
        %v3165 = vand.u32 %v680, 4294901760
        %3166 = vmatpush.msra.mxu0 %v3165
        %v3167 = vand.u32 %v679, 4294901760
        %3168 = vmatpush.msra.mxu0 %v3167
        %v3169 = vand.u32 %v678, 4294901760
        %3170 = vmatpush.msra.mxu0 %v3169
        %v3171 = vand.u32 %v677, 4294901760
        %3172 = vmatpush.msra.mxu0 %v3171
        %v3173 = vand.u32 %v676, 4294901760
        %3174 = vmatpush.msra.mxu0 %v3173
        %v3175 = vand.u32 %v675, 4294901760
        %3176 = vmatpush.msra.mxu0 %v3175
        %v3177 = vand.u32 %v674, 4294901760
        %3178 = vmatpush.msra.mxu0 %v3177
        %v3179 = vand.u32 %v673, 4294901760
        %3180 = vmatpush.msra.mxu0 %v3179
        %v3181 = vand.u32 %v672, 4294901760
        %3182 = vmatpush.msra.mxu0 %v3181
        %v3183 = vand.u32 %v671, 4294901760
        %3184 = vmatpush.msra.mxu0 %v3183
        %v3185 = vand.u32 %v670, 4294901760
        %3186 = vmatpush.msra.mxu0 %v3185
        %v3187 = vand.u32 %v669, 4294901760
        %3188 = vmatpush.msra.mxu0 %v3187
        %v3189 = vand.u32 %v668, 4294901760
        %3190 = vmatpush.msra.mxu0 %v3189
        %v3191 = vand.u32 %v667, 4294901760
        %3192 = vmatpush.msra.mxu0 %v3191
        %v3193 = vand.u32 %v666, 4294901760
        %3194 = vmatpush.msra.mxu0 %v3193
        %v3195 = vand.u32 %v719, 4294901760
        %v3196 = vsub.f32 %v719, %v3195
        %v3197 = vand.u32 %v3196, 4294901760
        %3198 = vmatmul.f32.gmra.mxu0 %v3197
        %v3199 = vpop.f32.mrf.mxu0
        %v3200 = vadd.f32 %v3146, %v3199
        %v3201 = vand.u32 %v727, 4294901760
        %v3202 = vsub.f32 %v727, %v3201
        %v3203 = vand.u32 %v3202, 4294901760
        %3204 = vmatmul.f32.gmra.mxu0 %v3203
        %v3205 = vpop.f32.mrf.mxu0
        %v3206 = vadd.f32 %v3151, %v3205
        %v3207 = vand.u32 %v735, 4294901760
        %v3208 = vsub.f32 %v735, %v3207
        %v3209 = vand.u32 %v3208, 4294901760
        %3210 = vmatmul.f32.gmra.mxu0 %v3209
        %v3211 = vpop.f32.mrf.mxu0
        %v3212 = vadd.f32 %v3156, %v3211
        %v3213 = vand.u32 %v743, 4294901760
        %v3214 = vsub.f32 %v743, %v3213
        %v3215 = vand.u32 %v3214, 4294901760
        %3216 = vmatmul.f32.gmra.mxu0 %v3215
        %v3217 = vpop.f32.mrf.mxu0
        %v3218 = vadd.f32 %v3161, %v3217
        %3219 = vdwg.mxu0
        %v3220 = vand.u32 %v681, 4294901760
        %v3221 = vsub.f32 %v681, %v3220
        %v3222 = vand.u32 %v3221, 4294901760
        %3223 = vmatpush.msra.mxu0 %v3222
        %v3224 = vand.u32 %v680, 4294901760
        %v3225 = vsub.f32 %v680, %v3224
        %v3226 = vand.u32 %v3225, 4294901760
        %3227 = vmatpush.msra.mxu0 %v3226
        %v3228 = vand.u32 %v679, 4294901760
        %v3229 = vsub.f32 %v679, %v3228
        %v3230 = vand.u32 %v3229, 4294901760
        %3231 = vmatpush.msra.mxu0 %v3230
        %v3232 = vand.u32 %v678, 4294901760
        %v3233 = vsub.f32 %v678, %v3232
        %v3234 = vand.u32 %v3233, 4294901760
        %3235 = vmatpush.msra.mxu0 %v3234
        %v3236 = vand.u32 %v677, 4294901760
        %v3237 = vsub.f32 %v677, %v3236
        %v3238 = vand.u32 %v3237, 4294901760
        %3239 = vmatpush.msra.mxu0 %v3238
        %v3240 = vand.u32 %v676, 4294901760
        %v3241 = vsub.f32 %v676, %v3240
        %v3242 = vand.u32 %v3241, 4294901760
        %3243 = vmatpush.msra.mxu0 %v3242
        %v3244 = vand.u32 %v675, 4294901760
        %v3245 = vsub.f32 %v675, %v3244
        %v3246 = vand.u32 %v3245, 4294901760
        %3247 = vmatpush.msra.mxu0 %v3246
        %v3248 = vand.u32 %v674, 4294901760
        %v3249 = vsub.f32 %v674, %v3248
        %v3250 = vand.u32 %v3249, 4294901760
        %3251 = vmatpush.msra.mxu0 %v3250
        %v3252 = vand.u32 %v673, 4294901760
        %v3253 = vsub.f32 %v673, %v3252
        %v3254 = vand.u32 %v3253, 4294901760
        %3255 = vmatpush.msra.mxu0 %v3254
        %v3256 = vand.u32 %v672, 4294901760
        %v3257 = vsub.f32 %v672, %v3256
        %v3258 = vand.u32 %v3257, 4294901760
        %3259 = vmatpush.msra.mxu0 %v3258
        %v3260 = vand.u32 %v671, 4294901760
        %v3261 = vsub.f32 %v671, %v3260
        %v3262 = vand.u32 %v3261, 4294901760
        %3263 = vmatpush.msra.mxu0 %v3262
        %v3264 = vand.u32 %v670, 4294901760
        %v3265 = vsub.f32 %v670, %v3264
        %v3266 = vand.u32 %v3265, 4294901760
        %3267 = vmatpush.msra.mxu0 %v3266
        %v3268 = vand.u32 %v669, 4294901760
        %v3269 = vsub.f32 %v669, %v3268
        %v3270 = vand.u32 %v3269, 4294901760
        %3271 = vmatpush.msra.mxu0 %v3270
        %v3272 = vand.u32 %v668, 4294901760
        %v3273 = vsub.f32 %v668, %v3272
        %v3274 = vand.u32 %v3273, 4294901760
        %3275 = vmatpush.msra.mxu0 %v3274
        %v3276 = vand.u32 %v667, 4294901760
        %v3277 = vsub.f32 %v667, %v3276
        %v3278 = vand.u32 %v3277, 4294901760
        %3279 = vmatpush.msra.mxu0 %v3278
        %v3280 = vand.u32 %v666, 4294901760
        %v3281 = vsub.f32 %v666, %v3280
        %v3282 = vand.u32 %v3281, 4294901760
        %3283 = vmatpush.msra.mxu0 %v3282
        %v3284 = vand.u32 %v719, 4294901760
        %3285 = vmatmul.f32.gmra.mxu0 %v3284
        %v3286 = vpop.f32.mrf.mxu0
        %v3287 = vadd.f32 %v3200, %v3286
        %v3288 = vand.u32 %v727, 4294901760
        %3289 = vmatmul.f32.gmra.mxu0 %v3288
        %v3290 = vpop.f32.mrf.mxu0
        %v3291 = vadd.f32 %v3206, %v3290
        %v3292 = vand.u32 %v735, 4294901760
        %3293 = vmatmul.f32.gmra.mxu0 %v3292
        %v3294 = vpop.f32.mrf.mxu0
        %v3295 = vadd.f32 %v3212, %v3294
        %v3296 = vand.u32 %v743, 4294901760
        %3297 = vmatmul.f32.gmra.mxu0 %v3296
        %v3298 = vpop.f32.mrf.mxu0
        %v3299 = vadd.f32 %v3218, %v3298
        %3300 = vdwg.mxu0
        %v3301 = vand.u32 %v681, 4294901760
        %3302 = vmatpush.msra.mxu0 %v3301
        %v3303 = vand.u32 %v680, 4294901760
        %3304 = vmatpush.msra.mxu0 %v3303
        %v3305 = vand.u32 %v679, 4294901760
        %3306 = vmatpush.msra.mxu0 %v3305
        %v3307 = vand.u32 %v678, 4294901760
        %3308 = vmatpush.msra.mxu0 %v3307
        %v3309 = vand.u32 %v677, 4294901760
        %3310 = vmatpush.msra.mxu0 %v3309
        %v3311 = vand.u32 %v676, 4294901760
        %3312 = vmatpush.msra.mxu0 %v3311
        %v3313 = vand.u32 %v675, 4294901760
        %3314 = vmatpush.msra.mxu0 %v3313
        %v3315 = vand.u32 %v674, 4294901760
        %3316 = vmatpush.msra.mxu0 %v3315
        %v3317 = vand.u32 %v673, 4294901760
        %3318 = vmatpush.msra.mxu0 %v3317
        %v3319 = vand.u32 %v672, 4294901760
        %3320 = vmatpush.msra.mxu0 %v3319
        %v3321 = vand.u32 %v671, 4294901760
        %3322 = vmatpush.msra.mxu0 %v3321
        %v3323 = vand.u32 %v670, 4294901760
        %3324 = vmatpush.msra.mxu0 %v3323
        %v3325 = vand.u32 %v669, 4294901760
        %3326 = vmatpush.msra.mxu0 %v3325
        %v3327 = vand.u32 %v668, 4294901760
        %3328 = vmatpush.msra.mxu0 %v3327
        %v3329 = vand.u32 %v667, 4294901760
        %3330 = vmatpush.msra.mxu0 %v3329
        %v3331 = vand.u32 %v666, 4294901760
        %3332 = vmatpush.msra.mxu0 %v3331
        %v3333 = vand.u32 %v719, 4294901760
        %3334 = vmatmul.f32.gmra.mxu0 %v3333
        %v3335 = vpop.f32.mrf.mxu0
        %v3336 = vadd.f32 %v3287, %v3335
        %v3337 = vand.u32 %v727, 4294901760
        %3338 = vmatmul.f32.gmra.mxu0 %v3337
        %v3339 = vpop.f32.mrf.mxu0
        %v3340 = vadd.f32 %v3291, %v3339
        %v3341 = vand.u32 %v735, 4294901760
        %3342 = vmatmul.f32.gmra.mxu0 %v3341
        %v3343 = vpop.f32.mrf.mxu0
        %v3344 = vadd.f32 %v3295, %v3343
        %v3345 = vand.u32 %v743, 4294901760
        %3346 = vmatmul.f32.gmra.mxu0 %v3345
        %v3347 = vpop.f32.mrf.mxu0
        %v3348 = vadd.f32 %v3299, %v3347
        %3349 = vdwg.mxu0
        %v3350 = vand.u32 %v697, 4294901760
        %3351 = vmatpush.msra.mxu0 %v3350
        %v3352 = vand.u32 %v696, 4294901760
        %3353 = vmatpush.msra.mxu0 %v3352
        %v3354 = vand.u32 %v695, 4294901760
        %3355 = vmatpush.msra.mxu0 %v3354
        %v3356 = vand.u32 %v694, 4294901760
        %3357 = vmatpush.msra.mxu0 %v3356
        %v3358 = vand.u32 %v693, 4294901760
        %3359 = vmatpush.msra.mxu0 %v3358
        %v3360 = vand.u32 %v692, 4294901760
        %3361 = vmatpush.msra.mxu0 %v3360
        %v3362 = vand.u32 %v691, 4294901760
        %3363 = vmatpush.msra.mxu0 %v3362
        %v3364 = vand.u32 %v690, 4294901760
        %3365 = vmatpush.msra.mxu0 %v3364
        %v3366 = vand.u32 %v689, 4294901760
        %3367 = vmatpush.msra.mxu0 %v3366
        %v3368 = vand.u32 %v688, 4294901760
        %3369 = vmatpush.msra.mxu0 %v3368
        %v3370 = vand.u32 %v687, 4294901760
        %3371 = vmatpush.msra.mxu0 %v3370
        %v3372 = vand.u32 %v686, 4294901760
        %3373 = vmatpush.msra.mxu0 %v3372
        %v3374 = vand.u32 %v685, 4294901760
        %3375 = vmatpush.msra.mxu0 %v3374
        %v3376 = vand.u32 %v684, 4294901760
        %3377 = vmatpush.msra.mxu0 %v3376
        %v3378 = vand.u32 %v683, 4294901760
        %3379 = vmatpush.msra.mxu0 %v3378
        %v3380 = vand.u32 %v682, 4294901760
        %3381 = vmatpush.msra.mxu0 %v3380
        %v3382 = vand.u32 %v720, 4294901760
        %v3383 = vsub.f32 %v720, %v3382
        %v3384 = vand.u32 %v3383, 4294901760
        %v3385 = vsub.f32 %v3383, %v3384
        %v3386 = vand.u32 %v3385, 4294901760
        %3387 = vmatmul.f32.gmra.mxu0 %v3386
        %v3388 = vpop.f32.mrf.mxu0
        %v3389 = vadd.f32 %v3336, %v3388
        %v3390 = vand.u32 %v728, 4294901760
        %v3391 = vsub.f32 %v728, %v3390
        %v3392 = vand.u32 %v3391, 4294901760
        %v3393 = vsub.f32 %v3391, %v3392
        %v3394 = vand.u32 %v3393, 4294901760
        %3395 = vmatmul.f32.gmra.mxu0 %v3394
        %v3396 = vpop.f32.mrf.mxu0
        %v3397 = vadd.f32 %v3340, %v3396
        %v3398 = vand.u32 %v736, 4294901760
        %v3399 = vsub.f32 %v736, %v3398
        %v3400 = vand.u32 %v3399, 4294901760
        %v3401 = vsub.f32 %v3399, %v3400
        %v3402 = vand.u32 %v3401, 4294901760
        %3403 = vmatmul.f32.gmra.mxu0 %v3402
        %v3404 = vpop.f32.mrf.mxu0
        %v3405 = vadd.f32 %v3344, %v3404
        %v3406 = vand.u32 %v744, 4294901760
        %v3407 = vsub.f32 %v744, %v3406
        %v3408 = vand.u32 %v3407, 4294901760
        %v3409 = vsub.f32 %v3407, %v3408
        %v3410 = vand.u32 %v3409, 4294901760
        %3411 = vmatmul.f32.gmra.mxu0 %v3410
        %v3412 = vpop.f32.mrf.mxu0
        %v3413 = vadd.f32 %v3348, %v3412
        %3414 = vdwg.mxu0
        %v3415 = vand.u32 %v697, 4294901760
        %v3416 = vsub.f32 %v697, %v3415
        %v3417 = vand.u32 %v3416, 4294901760
        %v3418 = vsub.f32 %v3416, %v3417
        %v3419 = vand.u32 %v3418, 4294901760
        %3420 = vmatpush.msra.mxu0 %v3419
        %v3421 = vand.u32 %v696, 4294901760
        %v3422 = vsub.f32 %v696, %v3421
        %v3423 = vand.u32 %v3422, 4294901760
        %v3424 = vsub.f32 %v3422, %v3423
        %v3425 = vand.u32 %v3424, 4294901760
        %3426 = vmatpush.msra.mxu0 %v3425
        %v3427 = vand.u32 %v695, 4294901760
        %v3428 = vsub.f32 %v695, %v3427
        %v3429 = vand.u32 %v3428, 4294901760
        %v3430 = vsub.f32 %v3428, %v3429
        %v3431 = vand.u32 %v3430, 4294901760
        %3432 = vmatpush.msra.mxu0 %v3431
        %v3433 = vand.u32 %v694, 4294901760
        %v3434 = vsub.f32 %v694, %v3433
        %v3435 = vand.u32 %v3434, 4294901760
        %v3436 = vsub.f32 %v3434, %v3435
        %v3437 = vand.u32 %v3436, 4294901760
        %3438 = vmatpush.msra.mxu0 %v3437
        %v3439 = vand.u32 %v693, 4294901760
        %v3440 = vsub.f32 %v693, %v3439
        %v3441 = vand.u32 %v3440, 4294901760
        %v3442 = vsub.f32 %v3440, %v3441
        %v3443 = vand.u32 %v3442, 4294901760
        %3444 = vmatpush.msra.mxu0 %v3443
        %v3445 = vand.u32 %v692, 4294901760
        %v3446 = vsub.f32 %v692, %v3445
        %v3447 = vand.u32 %v3446, 4294901760
        %v3448 = vsub.f32 %v3446, %v3447
        %v3449 = vand.u32 %v3448, 4294901760
        %3450 = vmatpush.msra.mxu0 %v3449
        %v3451 = vand.u32 %v691, 4294901760
        %v3452 = vsub.f32 %v691, %v3451
        %v3453 = vand.u32 %v3452, 4294901760
        %v3454 = vsub.f32 %v3452, %v3453
        %v3455 = vand.u32 %v3454, 4294901760
        %3456 = vmatpush.msra.mxu0 %v3455
        %v3457 = vand.u32 %v690, 4294901760
        %v3458 = vsub.f32 %v690, %v3457
        %v3459 = vand.u32 %v3458, 4294901760
        %v3460 = vsub.f32 %v3458, %v3459
        %v3461 = vand.u32 %v3460, 4294901760
        %3462 = vmatpush.msra.mxu0 %v3461
        %v3463 = vand.u32 %v689, 4294901760
        %v3464 = vsub.f32 %v689, %v3463
        %v3465 = vand.u32 %v3464, 4294901760
        %v3466 = vsub.f32 %v3464, %v3465
        %v3467 = vand.u32 %v3466, 4294901760
        %3468 = vmatpush.msra.mxu0 %v3467
        %v3469 = vand.u32 %v688, 4294901760
        %v3470 = vsub.f32 %v688, %v3469
        %v3471 = vand.u32 %v3470, 4294901760
        %v3472 = vsub.f32 %v3470, %v3471
        %v3473 = vand.u32 %v3472, 4294901760
        %3474 = vmatpush.msra.mxu0 %v3473
        %v3475 = vand.u32 %v687, 4294901760
        %v3476 = vsub.f32 %v687, %v3475
        %v3477 = vand.u32 %v3476, 4294901760
        %v3478 = vsub.f32 %v3476, %v3477
        %v3479 = vand.u32 %v3478, 4294901760
        %3480 = vmatpush.msra.mxu0 %v3479
        %v3481 = vand.u32 %v686, 4294901760
        %v3482 = vsub.f32 %v686, %v3481
        %v3483 = vand.u32 %v3482, 4294901760
        %v3484 = vsub.f32 %v3482, %v3483
        %v3485 = vand.u32 %v3484, 4294901760
        %3486 = vmatpush.msra.mxu0 %v3485
        %v3487 = vand.u32 %v685, 4294901760
        %v3488 = vsub.f32 %v685, %v3487
        %v3489 = vand.u32 %v3488, 4294901760
        %v3490 = vsub.f32 %v3488, %v3489
        %v3491 = vand.u32 %v3490, 4294901760
        %3492 = vmatpush.msra.mxu0 %v3491
        %v3493 = vand.u32 %v684, 4294901760
        %v3494 = vsub.f32 %v684, %v3493
        %v3495 = vand.u32 %v3494, 4294901760
        %v3496 = vsub.f32 %v3494, %v3495
        %v3497 = vand.u32 %v3496, 4294901760
        %3498 = vmatpush.msra.mxu0 %v3497
        %v3499 = vand.u32 %v683, 4294901760
        %v3500 = vsub.f32 %v683, %v3499
        %v3501 = vand.u32 %v3500, 4294901760
        %v3502 = vsub.f32 %v3500, %v3501
        %v3503 = vand.u32 %v3502, 4294901760
        %3504 = vmatpush.msra.mxu0 %v3503
        %v3505 = vand.u32 %v682, 4294901760
        %v3506 = vsub.f32 %v682, %v3505
        %v3507 = vand.u32 %v3506, 4294901760
        %v3508 = vsub.f32 %v3506, %v3507
        %v3509 = vand.u32 %v3508, 4294901760
        %3510 = vmatpush.msra.mxu0 %v3509
        %v3511 = vand.u32 %v720, 4294901760
        %3512 = vmatmul.f32.gmra.mxu0 %v3511
        %v3513 = vpop.f32.mrf.mxu0
        %v3514 = vadd.f32 %v3389, %v3513
        %v3515 = vand.u32 %v728, 4294901760
        %3516 = vmatmul.f32.gmra.mxu0 %v3515
        %v3517 = vpop.f32.mrf.mxu0
        %v3518 = vadd.f32 %v3397, %v3517
        %v3519 = vand.u32 %v736, 4294901760
        %3520 = vmatmul.f32.gmra.mxu0 %v3519
        %v3521 = vpop.f32.mrf.mxu0
        %v3522 = vadd.f32 %v3405, %v3521
        %v3523 = vand.u32 %v744, 4294901760
        %3524 = vmatmul.f32.gmra.mxu0 %v3523
        %v3525 = vpop.f32.mrf.mxu0
        %v3526 = vadd.f32 %v3413, %v3525
        %3527 = vdwg.mxu0
        %v3528 = vand.u32 %v697, 4294901760
        %v3529 = vsub.f32 %v697, %v3528
        %3530 = vmatpush.msra.mxu0 %v3529
        %v3531 = vand.u32 %v696, 4294901760
        %v3532 = vsub.f32 %v696, %v3531
        %3533 = vmatpush.msra.mxu0 %v3532
        %v3534 = vand.u32 %v695, 4294901760
        %v3535 = vsub.f32 %v695, %v3534
        %3536 = vmatpush.msra.mxu0 %v3535
        %v3537 = vand.u32 %v694, 4294901760
        %v3538 = vsub.f32 %v694, %v3537
        %3539 = vmatpush.msra.mxu0 %v3538
        %v3540 = vand.u32 %v693, 4294901760
        %v3541 = vsub.f32 %v693, %v3540
        %3542 = vmatpush.msra.mxu0 %v3541
        %v3543 = vand.u32 %v692, 4294901760
        %v3544 = vsub.f32 %v692, %v3543
        %3545 = vmatpush.msra.mxu0 %v3544
        %v3546 = vand.u32 %v691, 4294901760
        %v3547 = vsub.f32 %v691, %v3546
        %3548 = vmatpush.msra.mxu0 %v3547
        %v3549 = vand.u32 %v690, 4294901760
        %v3550 = vsub.f32 %v690, %v3549
        %3551 = vmatpush.msra.mxu0 %v3550
        %v3552 = vand.u32 %v689, 4294901760
        %v3553 = vsub.f32 %v689, %v3552
        %3554 = vmatpush.msra.mxu0 %v3553
        %v3555 = vand.u32 %v688, 4294901760
        %v3556 = vsub.f32 %v688, %v3555
        %3557 = vmatpush.msra.mxu0 %v3556
        %v3558 = vand.u32 %v687, 4294901760
        %v3559 = vsub.f32 %v687, %v3558
        %3560 = vmatpush.msra.mxu0 %v3559
        %v3561 = vand.u32 %v686, 4294901760
        %v3562 = vsub.f32 %v686, %v3561
        %3563 = vmatpush.msra.mxu0 %v3562
        %v3564 = vand.u32 %v685, 4294901760
        %v3565 = vsub.f32 %v685, %v3564
        %3566 = vmatpush.msra.mxu0 %v3565
        %v3567 = vand.u32 %v684, 4294901760
        %v3568 = vsub.f32 %v684, %v3567
        %3569 = vmatpush.msra.mxu0 %v3568
        %v3570 = vand.u32 %v683, 4294901760
        %v3571 = vsub.f32 %v683, %v3570
        %3572 = vmatpush.msra.mxu0 %v3571
        %v3573 = vand.u32 %v682, 4294901760
        %v3574 = vsub.f32 %v682, %v3573
        %3575 = vmatpush.msra.mxu0 %v3574
        %v3576 = vand.u32 %v720, 4294901760
        %v3577 = vsub.f32 %v720, %v3576
        %3578 = vmatmul.f32.gmra.mxu0 %v3577
        %v3579 = vpop.f32.mrf.mxu0
        %v3580 = vadd.f32 %v3514, %v3579
        %v3581 = vand.u32 %v728, 4294901760
        %v3582 = vsub.f32 %v728, %v3581
        %3583 = vmatmul.f32.gmra.mxu0 %v3582
        %v3584 = vpop.f32.mrf.mxu0
        %v3585 = vadd.f32 %v3518, %v3584
        %v3586 = vand.u32 %v736, 4294901760
        %v3587 = vsub.f32 %v736, %v3586
        %3588 = vmatmul.f32.gmra.mxu0 %v3587
        %v3589 = vpop.f32.mrf.mxu0
        %v3590 = vadd.f32 %v3522, %v3589
        %v3591 = vand.u32 %v744, 4294901760
        %v3592 = vsub.f32 %v744, %v3591
        %3593 = vmatmul.f32.gmra.mxu0 %v3592
        %v3594 = vpop.f32.mrf.mxu0
        %v3595 = vadd.f32 %v3526, %v3594
        %3596 = vdwg.mxu0
        %v3597 = vand.u32 %v697, 4294901760
        %3598 = vmatpush.msra.mxu0 %v3597
        %v3599 = vand.u32 %v696, 4294901760
        %3600 = vmatpush.msra.mxu0 %v3599
        %v3601 = vand.u32 %v695, 4294901760
        %3602 = vmatpush.msra.mxu0 %v3601
        %v3603 = vand.u32 %v694, 4294901760
        %3604 = vmatpush.msra.mxu0 %v3603
        %v3605 = vand.u32 %v693, 4294901760
        %3606 = vmatpush.msra.mxu0 %v3605
        %v3607 = vand.u32 %v692, 4294901760
        %3608 = vmatpush.msra.mxu0 %v3607
        %v3609 = vand.u32 %v691, 4294901760
        %3610 = vmatpush.msra.mxu0 %v3609
        %v3611 = vand.u32 %v690, 4294901760
        %3612 = vmatpush.msra.mxu0 %v3611
        %v3613 = vand.u32 %v689, 4294901760
        %3614 = vmatpush.msra.mxu0 %v3613
        %v3615 = vand.u32 %v688, 4294901760
        %3616 = vmatpush.msra.mxu0 %v3615
        %v3617 = vand.u32 %v687, 4294901760
        %3618 = vmatpush.msra.mxu0 %v3617
        %v3619 = vand.u32 %v686, 4294901760
        %3620 = vmatpush.msra.mxu0 %v3619
        %v3621 = vand.u32 %v685, 4294901760
        %3622 = vmatpush.msra.mxu0 %v3621
        %v3623 = vand.u32 %v684, 4294901760
        %3624 = vmatpush.msra.mxu0 %v3623
        %v3625 = vand.u32 %v683, 4294901760
        %3626 = vmatpush.msra.mxu0 %v3625
        %v3627 = vand.u32 %v682, 4294901760
        %3628 = vmatpush.msra.mxu0 %v3627
        %v3629 = vand.u32 %v720, 4294901760
        %v3630 = vsub.f32 %v720, %v3629
        %v3631 = vand.u32 %v3630, 4294901760
        %3632 = vmatmul.f32.gmra.mxu0 %v3631
        %v3633 = vpop.f32.mrf.mxu0
        %v3634 = vadd.f32 %v3580, %v3633
        %v3635 = vand.u32 %v728, 4294901760
        %v3636 = vsub.f32 %v728, %v3635
        %v3637 = vand.u32 %v3636, 4294901760
        %3638 = vmatmul.f32.gmra.mxu0 %v3637
        %v3639 = vpop.f32.mrf.mxu0
        %v3640 = vadd.f32 %v3585, %v3639
        %v3641 = vand.u32 %v736, 4294901760
        %v3642 = vsub.f32 %v736, %v3641
        %v3643 = vand.u32 %v3642, 4294901760
        %3644 = vmatmul.f32.gmra.mxu0 %v3643
        %v3645 = vpop.f32.mrf.mxu0
        %v3646 = vadd.f32 %v3590, %v3645
        %v3647 = vand.u32 %v744, 4294901760
        %v3648 = vsub.f32 %v744, %v3647
        %v3649 = vand.u32 %v3648, 4294901760
        %3650 = vmatmul.f32.gmra.mxu0 %v3649
        %v3651 = vpop.f32.mrf.mxu0
        %v3652 = vadd.f32 %v3595, %v3651
        %3653 = vdwg.mxu0
        %v3654 = vand.u32 %v697, 4294901760
        %v3655 = vsub.f32 %v697, %v3654
        %v3656 = vand.u32 %v3655, 4294901760
        %3657 = vmatpush.msra.mxu0 %v3656
        %v3658 = vand.u32 %v696, 4294901760
        %v3659 = vsub.f32 %v696, %v3658
        %v3660 = vand.u32 %v3659, 4294901760
        %3661 = vmatpush.msra.mxu0 %v3660
        %v3662 = vand.u32 %v695, 4294901760
        %v3663 = vsub.f32 %v695, %v3662
        %v3664 = vand.u32 %v3663, 4294901760
        %3665 = vmatpush.msra.mxu0 %v3664
        %v3666 = vand.u32 %v694, 4294901760
        %v3667 = vsub.f32 %v694, %v3666
        %v3668 = vand.u32 %v3667, 4294901760
        %3669 = vmatpush.msra.mxu0 %v3668
        %v3670 = vand.u32 %v693, 4294901760
        %v3671 = vsub.f32 %v693, %v3670
        %v3672 = vand.u32 %v3671, 4294901760
        %3673 = vmatpush.msra.mxu0 %v3672
        %v3674 = vand.u32 %v692, 4294901760
        %v3675 = vsub.f32 %v692, %v3674
        %v3676 = vand.u32 %v3675, 4294901760
        %3677 = vmatpush.msra.mxu0 %v3676
        %v3678 = vand.u32 %v691, 4294901760
        %v3679 = vsub.f32 %v691, %v3678
        %v3680 = vand.u32 %v3679, 4294901760
        %3681 = vmatpush.msra.mxu0 %v3680
        %v3682 = vand.u32 %v690, 4294901760
        %v3683 = vsub.f32 %v690, %v3682
        %v3684 = vand.u32 %v3683, 4294901760
        %3685 = vmatpush.msra.mxu0 %v3684
        %v3686 = vand.u32 %v689, 4294901760
        %v3687 = vsub.f32 %v689, %v3686
        %v3688 = vand.u32 %v3687, 4294901760
        %3689 = vmatpush.msra.mxu0 %v3688
        %v3690 = vand.u32 %v688, 4294901760
        %v3691 = vsub.f32 %v688, %v3690
        %v3692 = vand.u32 %v3691, 4294901760
        %3693 = vmatpush.msra.mxu0 %v3692
        %v3694 = vand.u32 %v687, 4294901760
        %v3695 = vsub.f32 %v687, %v3694
        %v3696 = vand.u32 %v3695, 4294901760
        %3697 = vmatpush.msra.mxu0 %v3696
        %v3698 = vand.u32 %v686, 4294901760
        %v3699 = vsub.f32 %v686, %v3698
        %v3700 = vand.u32 %v3699, 4294901760
        %3701 = vmatpush.msra.mxu0 %v3700
        %v3702 = vand.u32 %v685, 4294901760
        %v3703 = vsub.f32 %v685, %v3702
        %v3704 = vand.u32 %v3703, 4294901760
        %3705 = vmatpush.msra.mxu0 %v3704
        %v3706 = vand.u32 %v684, 4294901760
        %v3707 = vsub.f32 %v684, %v3706
        %v3708 = vand.u32 %v3707, 4294901760
        %3709 = vmatpush.msra.mxu0 %v3708
        %v3710 = vand.u32 %v683, 4294901760
        %v3711 = vsub.f32 %v683, %v3710
        %v3712 = vand.u32 %v3711, 4294901760
        %3713 = vmatpush.msra.mxu0 %v3712
        %v3714 = vand.u32 %v682, 4294901760
        %v3715 = vsub.f32 %v682, %v3714
        %v3716 = vand.u32 %v3715, 4294901760
        %3717 = vmatpush.msra.mxu0 %v3716
        %v3718 = vand.u32 %v720, 4294901760
        %3719 = vmatmul.f32.gmra.mxu0 %v3718
        %v3720 = vpop.f32.mrf.mxu0
        %v3721 = vadd.f32 %v3634, %v3720
        %v3722 = vand.u32 %v728, 4294901760
        %3723 = vmatmul.f32.gmra.mxu0 %v3722
        %v3724 = vpop.f32.mrf.mxu0
        %v3725 = vadd.f32 %v3640, %v3724
        %v3726 = vand.u32 %v736, 4294901760
        %3727 = vmatmul.f32.gmra.mxu0 %v3726
        %v3728 = vpop.f32.mrf.mxu0
        %v3729 = vadd.f32 %v3646, %v3728
        %v3730 = vand.u32 %v744, 4294901760
        %3731 = vmatmul.f32.gmra.mxu0 %v3730
        %v3732 = vpop.f32.mrf.mxu0
        %v3733 = vadd.f32 %v3652, %v3732
        %3734 = vdwg.mxu0
        %v3735 = vand.u32 %v697, 4294901760
        %3736 = vmatpush.msra.mxu0 %v3735
        %v3737 = vand.u32 %v696, 4294901760
        %3738 = vmatpush.msra.mxu0 %v3737
        %v3739 = vand.u32 %v695, 4294901760
        %3740 = vmatpush.msra.mxu0 %v3739
        %v3741 = vand.u32 %v694, 4294901760
        %3742 = vmatpush.msra.mxu0 %v3741
        %v3743 = vand.u32 %v693, 4294901760
        %3744 = vmatpush.msra.mxu0 %v3743
        %v3745 = vand.u32 %v692, 4294901760
        %3746 = vmatpush.msra.mxu0 %v3745
        %v3747 = vand.u32 %v691, 4294901760
        %3748 = vmatpush.msra.mxu0 %v3747
        %v3749 = vand.u32 %v690, 4294901760
        %3750 = vmatpush.msra.mxu0 %v3749
        %v3751 = vand.u32 %v689, 4294901760
        %3752 = vmatpush.msra.mxu0 %v3751
        %v3753 = vand.u32 %v688, 4294901760
        %3754 = vmatpush.msra.mxu0 %v3753
        %v3755 = vand.u32 %v687, 4294901760
        %3756 = vmatpush.msra.mxu0 %v3755
        %v3757 = vand.u32 %v686, 4294901760
        %3758 = vmatpush.msra.mxu0 %v3757
        %v3759 = vand.u32 %v685, 4294901760
        %3760 = vmatpush.msra.mxu0 %v3759
        %v3761 = vand.u32 %v684, 4294901760
        %3762 = vmatpush.msra.mxu0 %v3761
        %v3763 = vand.u32 %v683, 4294901760
        %3764 = vmatpush.msra.mxu0 %v3763
        %v3765 = vand.u32 %v682, 4294901760
        %3766 = vmatpush.msra.mxu0 %v3765
        %v3767 = vand.u32 %v720, 4294901760
        %3768 = vmatmul.f32.gmra.mxu0 %v3767
        %v3769 = vpop.f32.mrf.mxu0
        %v3770 = vadd.f32 %v3721, %v3769
        %v3771 = vand.u32 %v728, 4294901760
        %3772 = vmatmul.f32.gmra.mxu0 %v3771
        %v3773 = vpop.f32.mrf.mxu0
        %v3774 = vadd.f32 %v3725, %v3773
        %v3775 = vand.u32 %v736, 4294901760
        %3776 = vmatmul.f32.gmra.mxu0 %v3775
        %v3777 = vpop.f32.mrf.mxu0
        %v3778 = vadd.f32 %v3729, %v3777
        %v3779 = vand.u32 %v744, 4294901760
        %3780 = vmatmul.f32.gmra.mxu0 %v3779
        %v3781 = vpop.f32.mrf.mxu0
        %v3782 = vadd.f32 %v3733, %v3781
        %3783 = vdwg.mxu0
        %v3784 = vand.u32 %v713, 4294901760
        %3785 = vmatpush.msra.mxu0 %v3784
        %v3786 = vand.u32 %v712, 4294901760
        %3787 = vmatpush.msra.mxu0 %v3786
        %v3788 = vand.u32 %v711, 4294901760
        %3789 = vmatpush.msra.mxu0 %v3788
        %v3790 = vand.u32 %v710, 4294901760
        %3791 = vmatpush.msra.mxu0 %v3790
        %v3792 = vand.u32 %v709, 4294901760
        %3793 = vmatpush.msra.mxu0 %v3792
        %v3794 = vand.u32 %v708, 4294901760
        %3795 = vmatpush.msra.mxu0 %v3794
        %v3796 = vand.u32 %v707, 4294901760
        %3797 = vmatpush.msra.mxu0 %v3796
        %v3798 = vand.u32 %v706, 4294901760
        %3799 = vmatpush.msra.mxu0 %v3798
        %v3800 = vand.u32 %v705, 4294901760
        %3801 = vmatpush.msra.mxu0 %v3800
        %v3802 = vand.u32 %v704, 4294901760
        %3803 = vmatpush.msra.mxu0 %v3802
        %v3804 = vand.u32 %v703, 4294901760
        %3805 = vmatpush.msra.mxu0 %v3804
        %v3806 = vand.u32 %v702, 4294901760
        %3807 = vmatpush.msra.mxu0 %v3806
        %v3808 = vand.u32 %v701, 4294901760
        %3809 = vmatpush.msra.mxu0 %v3808
        %v3810 = vand.u32 %v700, 4294901760
        %3811 = vmatpush.msra.mxu0 %v3810
        %v3812 = vand.u32 %v699, 4294901760
        %3813 = vmatpush.msra.mxu0 %v3812
        %v3814 = vand.u32 %v698, 4294901760
        %3815 = vmatpush.msra.mxu0 %v3814
        %v3816 = vand.u32 %v721, 4294901760
        %v3817 = vsub.f32 %v721, %v3816
        %v3818 = vand.u32 %v3817, 4294901760
        %v3819 = vsub.f32 %v3817, %v3818
        %v3820 = vand.u32 %v3819, 4294901760
        %3821 = vmatmul.f32.gmra.mxu0 %v3820
        %v3822 = vpop.f32.mrf.mxu0
        %v3823 = vadd.f32 %v3770, %v3822
        %v3824 = vand.u32 %v729, 4294901760
        %v3825 = vsub.f32 %v729, %v3824
        %v3826 = vand.u32 %v3825, 4294901760
        %v3827 = vsub.f32 %v3825, %v3826
        %v3828 = vand.u32 %v3827, 4294901760
        %3829 = vmatmul.f32.gmra.mxu0 %v3828
        %v3830 = vpop.f32.mrf.mxu0
        %v3831 = vadd.f32 %v3774, %v3830
        %v3832 = vand.u32 %v737, 4294901760
        %v3833 = vsub.f32 %v737, %v3832
        %v3834 = vand.u32 %v3833, 4294901760
        %v3835 = vsub.f32 %v3833, %v3834
        %v3836 = vand.u32 %v3835, 4294901760
        %3837 = vmatmul.f32.gmra.mxu0 %v3836
        %v3838 = vpop.f32.mrf.mxu0
        %v3839 = vadd.f32 %v3778, %v3838
        %v3840 = vand.u32 %v745, 4294901760
        %v3841 = vsub.f32 %v745, %v3840
        %v3842 = vand.u32 %v3841, 4294901760
        %v3843 = vsub.f32 %v3841, %v3842
        %v3844 = vand.u32 %v3843, 4294901760
        %3845 = vmatmul.f32.gmra.mxu0 %v3844
        %v3846 = vpop.f32.mrf.mxu0
        %v3847 = vadd.f32 %v3782, %v3846
        %3848 = vdwg.mxu0
        %v3849 = vand.u32 %v713, 4294901760
        %v3850 = vsub.f32 %v713, %v3849
        %v3851 = vand.u32 %v3850, 4294901760
        %v3852 = vsub.f32 %v3850, %v3851
        %v3853 = vand.u32 %v3852, 4294901760
        %3854 = vmatpush.msra.mxu0 %v3853
        %v3855 = vand.u32 %v712, 4294901760
        %v3856 = vsub.f32 %v712, %v3855
        %v3857 = vand.u32 %v3856, 4294901760
        %v3858 = vsub.f32 %v3856, %v3857
        %v3859 = vand.u32 %v3858, 4294901760
        %3860 = vmatpush.msra.mxu0 %v3859
        %v3861 = vand.u32 %v711, 4294901760
        %v3862 = vsub.f32 %v711, %v3861
        %v3863 = vand.u32 %v3862, 4294901760
        %v3864 = vsub.f32 %v3862, %v3863
        %v3865 = vand.u32 %v3864, 4294901760
        %3866 = vmatpush.msra.mxu0 %v3865
        %v3867 = vand.u32 %v710, 4294901760
        %v3868 = vsub.f32 %v710, %v3867
        %v3869 = vand.u32 %v3868, 4294901760
        %v3870 = vsub.f32 %v3868, %v3869
        %v3871 = vand.u32 %v3870, 4294901760
        %3872 = vmatpush.msra.mxu0 %v3871
        %v3873 = vand.u32 %v709, 4294901760
        %v3874 = vsub.f32 %v709, %v3873
        %v3875 = vand.u32 %v3874, 4294901760
        %v3876 = vsub.f32 %v3874, %v3875
        %v3877 = vand.u32 %v3876, 4294901760
        %3878 = vmatpush.msra.mxu0 %v3877
        %v3879 = vand.u32 %v708, 4294901760
        %v3880 = vsub.f32 %v708, %v3879
        %v3881 = vand.u32 %v3880, 4294901760
        %v3882 = vsub.f32 %v3880, %v3881
        %v3883 = vand.u32 %v3882, 4294901760
        %3884 = vmatpush.msra.mxu0 %v3883
        %v3885 = vand.u32 %v707, 4294901760
        %v3886 = vsub.f32 %v707, %v3885
        %v3887 = vand.u32 %v3886, 4294901760
        %v3888 = vsub.f32 %v3886, %v3887
        %v3889 = vand.u32 %v3888, 4294901760
        %3890 = vmatpush.msra.mxu0 %v3889
        %v3891 = vand.u32 %v706, 4294901760
        %v3892 = vsub.f32 %v706, %v3891
        %v3893 = vand.u32 %v3892, 4294901760
        %v3894 = vsub.f32 %v3892, %v3893
        %v3895 = vand.u32 %v3894, 4294901760
        %3896 = vmatpush.msra.mxu0 %v3895
        %v3897 = vand.u32 %v705, 4294901760
        %v3898 = vsub.f32 %v705, %v3897
        %v3899 = vand.u32 %v3898, 4294901760
        %v3900 = vsub.f32 %v3898, %v3899
        %v3901 = vand.u32 %v3900, 4294901760
        %3902 = vmatpush.msra.mxu0 %v3901
        %v3903 = vand.u32 %v704, 4294901760
        %v3904 = vsub.f32 %v704, %v3903
        %v3905 = vand.u32 %v3904, 4294901760
        %v3906 = vsub.f32 %v3904, %v3905
        %v3907 = vand.u32 %v3906, 4294901760
        %3908 = vmatpush.msra.mxu0 %v3907
        %v3909 = vand.u32 %v703, 4294901760
        %v3910 = vsub.f32 %v703, %v3909
        %v3911 = vand.u32 %v3910, 4294901760
        %v3912 = vsub.f32 %v3910, %v3911
        %v3913 = vand.u32 %v3912, 4294901760
        %3914 = vmatpush.msra.mxu0 %v3913
        %v3915 = vand.u32 %v702, 4294901760
        %v3916 = vsub.f32 %v702, %v3915
        %v3917 = vand.u32 %v3916, 4294901760
        %v3918 = vsub.f32 %v3916, %v3917
        %v3919 = vand.u32 %v3918, 4294901760
        %3920 = vmatpush.msra.mxu0 %v3919
        %v3921 = vand.u32 %v701, 4294901760
        %v3922 = vsub.f32 %v701, %v3921
        %v3923 = vand.u32 %v3922, 4294901760
        %v3924 = vsub.f32 %v3922, %v3923
        %v3925 = vand.u32 %v3924, 4294901760
        %3926 = vmatpush.msra.mxu0 %v3925
        %v3927 = vand.u32 %v700, 4294901760
        %v3928 = vsub.f32 %v700, %v3927
        %v3929 = vand.u32 %v3928, 4294901760
        %v3930 = vsub.f32 %v3928, %v3929
        %v3931 = vand.u32 %v3930, 4294901760
        %3932 = vmatpush.msra.mxu0 %v3931
        %v3933 = vand.u32 %v699, 4294901760
        %v3934 = vsub.f32 %v699, %v3933
        %v3935 = vand.u32 %v3934, 4294901760
        %v3936 = vsub.f32 %v3934, %v3935
        %v3937 = vand.u32 %v3936, 4294901760
        %3938 = vmatpush.msra.mxu0 %v3937
        %v3939 = vand.u32 %v698, 4294901760
        %v3940 = vsub.f32 %v698, %v3939
        %v3941 = vand.u32 %v3940, 4294901760
        %v3942 = vsub.f32 %v3940, %v3941
        %v3943 = vand.u32 %v3942, 4294901760
        %3944 = vmatpush.msra.mxu0 %v3943
        %v3945 = vand.u32 %v721, 4294901760
        %3946 = vmatmul.f32.gmra.mxu0 %v3945
        %v3947 = vpop.f32.mrf.mxu0
        %v3948 = vadd.f32 %v3823, %v3947
        %v3949 = vand.u32 %v729, 4294901760
        %3950 = vmatmul.f32.gmra.mxu0 %v3949
        %v3951 = vpop.f32.mrf.mxu0
        %v3952 = vadd.f32 %v3831, %v3951
        %v3953 = vand.u32 %v737, 4294901760
        %3954 = vmatmul.f32.gmra.mxu0 %v3953
        %v3955 = vpop.f32.mrf.mxu0
        %v3956 = vadd.f32 %v3839, %v3955
        %v3957 = vand.u32 %v745, 4294901760
        %3958 = vmatmul.f32.gmra.mxu0 %v3957
        %v3959 = vpop.f32.mrf.mxu0
        %v3960 = vadd.f32 %v3847, %v3959
        %3961 = vdwg.mxu0
        %v3962 = vand.u32 %v713, 4294901760
        %v3963 = vsub.f32 %v713, %v3962
        %3964 = vmatpush.msra.mxu0 %v3963
        %v3965 = vand.u32 %v712, 4294901760
        %v3966 = vsub.f32 %v712, %v3965
        %3967 = vmatpush.msra.mxu0 %v3966
        %v3968 = vand.u32 %v711, 4294901760
        %v3969 = vsub.f32 %v711, %v3968
        %3970 = vmatpush.msra.mxu0 %v3969
        %v3971 = vand.u32 %v710, 4294901760
        %v3972 = vsub.f32 %v710, %v3971
        %3973 = vmatpush.msra.mxu0 %v3972
        %v3974 = vand.u32 %v709, 4294901760
        %v3975 = vsub.f32 %v709, %v3974
        %3976 = vmatpush.msra.mxu0 %v3975
        %v3977 = vand.u32 %v708, 4294901760
        %v3978 = vsub.f32 %v708, %v3977
        %3979 = vmatpush.msra.mxu0 %v3978
        %v3980 = vand.u32 %v707, 4294901760
        %v3981 = vsub.f32 %v707, %v3980
        %3982 = vmatpush.msra.mxu0 %v3981
        %v3983 = vand.u32 %v706, 4294901760
        %v3984 = vsub.f32 %v706, %v3983
        %3985 = vmatpush.msra.mxu0 %v3984
        %v3986 = vand.u32 %v705, 4294901760
        %v3987 = vsub.f32 %v705, %v3986
        %3988 = vmatpush.msra.mxu0 %v3987
        %v3989 = vand.u32 %v704, 4294901760
        %v3990 = vsub.f32 %v704, %v3989
        %3991 = vmatpush.msra.mxu0 %v3990
        %v3992 = vand.u32 %v703, 4294901760
        %v3993 = vsub.f32 %v703, %v3992
        %3994 = vmatpush.msra.mxu0 %v3993
        %v3995 = vand.u32 %v702, 4294901760
        %v3996 = vsub.f32 %v702, %v3995
        %3997 = vmatpush.msra.mxu0 %v3996
        %v3998 = vand.u32 %v701, 4294901760
        %v3999 = vsub.f32 %v701, %v3998
        %4000 = vmatpush.msra.mxu0 %v3999
        %v4001 = vand.u32 %v700, 4294901760
        %v4002 = vsub.f32 %v700, %v4001
        %4003 = vmatpush.msra.mxu0 %v4002
        %v4004 = vand.u32 %v699, 4294901760
        %v4005 = vsub.f32 %v699, %v4004
        %4006 = vmatpush.msra.mxu0 %v4005
        %v4007 = vand.u32 %v698, 4294901760
        %v4008 = vsub.f32 %v698, %v4007
        %4009 = vmatpush.msra.mxu0 %v4008
        %v4010 = vand.u32 %v721, 4294901760
        %v4011 = vsub.f32 %v721, %v4010
        %4012 = vmatmul.f32.gmra.mxu0 %v4011
        %v4013 = vpop.f32.mrf.mxu0
        %v4014 = vadd.f32 %v3948, %v4013
        %v4015 = vand.u32 %v729, 4294901760
        %v4016 = vsub.f32 %v729, %v4015
        %4017 = vmatmul.f32.gmra.mxu0 %v4016
        %v4018 = vpop.f32.mrf.mxu0
        %v4019 = vadd.f32 %v3952, %v4018
        %v4020 = vand.u32 %v737, 4294901760
        %v4021 = vsub.f32 %v737, %v4020
        %4022 = vmatmul.f32.gmra.mxu0 %v4021
        %v4023 = vpop.f32.mrf.mxu0
        %v4024 = vadd.f32 %v3956, %v4023
        %v4025 = vand.u32 %v745, 4294901760
        %v4026 = vsub.f32 %v745, %v4025
        %4027 = vmatmul.f32.gmra.mxu0 %v4026
        %v4028 = vpop.f32.mrf.mxu0
        %v4029 = vadd.f32 %v3960, %v4028
        %4030 = vdwg.mxu0
        %v4031 = vand.u32 %v713, 4294901760
        %4032 = vmatpush.msra.mxu0 %v4031
        %v4033 = vand.u32 %v712, 4294901760
        %4034 = vmatpush.msra.mxu0 %v4033
        %v4035 = vand.u32 %v711, 4294901760
        %4036 = vmatpush.msra.mxu0 %v4035
        %v4037 = vand.u32 %v710, 4294901760
        %4038 = vmatpush.msra.mxu0 %v4037
        %v4039 = vand.u32 %v709, 4294901760
        %4040 = vmatpush.msra.mxu0 %v4039
        %v4041 = vand.u32 %v708, 4294901760
        %4042 = vmatpush.msra.mxu0 %v4041
        %v4043 = vand.u32 %v707, 4294901760
        %4044 = vmatpush.msra.mxu0 %v4043
        %v4045 = vand.u32 %v706, 4294901760
        %4046 = vmatpush.msra.mxu0 %v4045
        %v4047 = vand.u32 %v705, 4294901760
        %4048 = vmatpush.msra.mxu0 %v4047
        %v4049 = vand.u32 %v704, 4294901760
        %4050 = vmatpush.msra.mxu0 %v4049
        %v4051 = vand.u32 %v703, 4294901760
        %4052 = vmatpush.msra.mxu0 %v4051
        %v4053 = vand.u32 %v702, 4294901760
        %4054 = vmatpush.msra.mxu0 %v4053
        %v4055 = vand.u32 %v701, 4294901760
        %4056 = vmatpush.msra.mxu0 %v4055
        %v4057 = vand.u32 %v700, 4294901760
        %4058 = vmatpush.msra.mxu0 %v4057
        %v4059 = vand.u32 %v699, 4294901760
        %4060 = vmatpush.msra.mxu0 %v4059
        %v4061 = vand.u32 %v698, 4294901760
        %4062 = vmatpush.msra.mxu0 %v4061
        %v4063 = vand.u32 %v721, 4294901760
        %v4064 = vsub.f32 %v721, %v4063
        %v4065 = vand.u32 %v4064, 4294901760
        %4066 = vmatmul.f32.gmra.mxu0 %v4065
        %v4067 = vpop.f32.mrf.mxu0
        %v4068 = vadd.f32 %v4014, %v4067
        %v4069 = vand.u32 %v729, 4294901760
        %v4070 = vsub.f32 %v729, %v4069
        %v4071 = vand.u32 %v4070, 4294901760
        %4072 = vmatmul.f32.gmra.mxu0 %v4071
        %v4073 = vpop.f32.mrf.mxu0
        %v4074 = vadd.f32 %v4019, %v4073
        %v4075 = vand.u32 %v737, 4294901760
        %v4076 = vsub.f32 %v737, %v4075
        %v4077 = vand.u32 %v4076, 4294901760
        %4078 = vmatmul.f32.gmra.mxu0 %v4077
        %v4079 = vpop.f32.mrf.mxu0
        %v4080 = vadd.f32 %v4024, %v4079
        %v4081 = vand.u32 %v745, 4294901760
        %v4082 = vsub.f32 %v745, %v4081
        %v4083 = vand.u32 %v4082, 4294901760
        %4084 = vmatmul.f32.gmra.mxu0 %v4083
        %v4085 = vpop.f32.mrf.mxu0
        %v4086 = vadd.f32 %v4029, %v4085
        %4087 = vdwg.mxu0
        %v4088 = vand.u32 %v713, 4294901760
        %v4089 = vsub.f32 %v713, %v4088
        %v4090 = vand.u32 %v4089, 4294901760
        %4091 = vmatpush.msra.mxu0 %v4090
        %v4092 = vand.u32 %v712, 4294901760
        %v4093 = vsub.f32 %v712, %v4092
        %v4094 = vand.u32 %v4093, 4294901760
        %4095 = vmatpush.msra.mxu0 %v4094
        %v4096 = vand.u32 %v711, 4294901760
        %v4097 = vsub.f32 %v711, %v4096
        %v4098 = vand.u32 %v4097, 4294901760
        %4099 = vmatpush.msra.mxu0 %v4098
        %v4100 = vand.u32 %v710, 4294901760
        %v4101 = vsub.f32 %v710, %v4100
        %v4102 = vand.u32 %v4101, 4294901760
        %4103 = vmatpush.msra.mxu0 %v4102
        %v4104 = vand.u32 %v709, 4294901760
        %v4105 = vsub.f32 %v709, %v4104
        %v4106 = vand.u32 %v4105, 4294901760
        %4107 = vmatpush.msra.mxu0 %v4106
        %v4108 = vand.u32 %v708, 4294901760
        %v4109 = vsub.f32 %v708, %v4108
        %v4110 = vand.u32 %v4109, 4294901760
        %4111 = vmatpush.msra.mxu0 %v4110
        %v4112 = vand.u32 %v707, 4294901760
        %v4113 = vsub.f32 %v707, %v4112
        %v4114 = vand.u32 %v4113, 4294901760
        %4115 = vmatpush.msra.mxu0 %v4114
        %v4116 = vand.u32 %v706, 4294901760
        %v4117 = vsub.f32 %v706, %v4116
        %v4118 = vand.u32 %v4117, 4294901760
        %4119 = vmatpush.msra.mxu0 %v4118
        %v4120 = vand.u32 %v705, 4294901760
        %v4121 = vsub.f32 %v705, %v4120
        %v4122 = vand.u32 %v4121, 4294901760
        %4123 = vmatpush.msra.mxu0 %v4122
        %v4124 = vand.u32 %v704, 4294901760
        %v4125 = vsub.f32 %v704, %v4124
        %v4126 = vand.u32 %v4125, 4294901760
        %4127 = vmatpush.msra.mxu0 %v4126
        %v4128 = vand.u32 %v703, 4294901760
        %v4129 = vsub.f32 %v703, %v4128
        %v4130 = vand.u32 %v4129, 4294901760
        %4131 = vmatpush.msra.mxu0 %v4130
        %v4132 = vand.u32 %v702, 4294901760
        %v4133 = vsub.f32 %v702, %v4132
        %v4134 = vand.u32 %v4133, 4294901760
        %4135 = vmatpush.msra.mxu0 %v4134
        %v4136 = vand.u32 %v701, 4294901760
        %v4137 = vsub.f32 %v701, %v4136
        %v4138 = vand.u32 %v4137, 4294901760
        %4139 = vmatpush.msra.mxu0 %v4138
        %v4140 = vand.u32 %v700, 4294901760
        %v4141 = vsub.f32 %v700, %v4140
        %v4142 = vand.u32 %v4141, 4294901760
        %4143 = vmatpush.msra.mxu0 %v4142
        %v4144 = vand.u32 %v699, 4294901760
        %v4145 = vsub.f32 %v699, %v4144
        %v4146 = vand.u32 %v4145, 4294901760
        %4147 = vmatpush.msra.mxu0 %v4146
        %v4148 = vand.u32 %v698, 4294901760
        %v4149 = vsub.f32 %v698, %v4148
        %v4150 = vand.u32 %v4149, 4294901760
        %4151 = vmatpush.msra.mxu0 %v4150
        %v4152 = vand.u32 %v721, 4294901760
        %4153 = vmatmul.f32.gmra.mxu0 %v4152
        %v4154 = vpop.f32.mrf.mxu0
        %v4155 = vadd.f32 %v4068, %v4154
        %v4156 = vand.u32 %v729, 4294901760
        %4157 = vmatmul.f32.gmra.mxu0 %v4156
        %v4158 = vpop.f32.mrf.mxu0
        %v4159 = vadd.f32 %v4074, %v4158
        %v4160 = vand.u32 %v737, 4294901760
        %4161 = vmatmul.f32.gmra.mxu0 %v4160
        %v4162 = vpop.f32.mrf.mxu0
        %v4163 = vadd.f32 %v4080, %v4162
        %v4164 = vand.u32 %v745, 4294901760
        %4165 = vmatmul.f32.gmra.mxu0 %v4164
        %v4166 = vpop.f32.mrf.mxu0
        %v4167 = vadd.f32 %v4086, %v4166
        %4168 = vdwg.mxu0
        %v4169 = vand.u32 %v713, 4294901760
        %4170 = vmatpush.msra.mxu0 %v4169
        %v4171 = vand.u32 %v712, 4294901760
        %4172 = vmatpush.msra.mxu0 %v4171
        %v4173 = vand.u32 %v711, 4294901760
        %4174 = vmatpush.msra.mxu0 %v4173
        %v4175 = vand.u32 %v710, 4294901760
        %4176 = vmatpush.msra.mxu0 %v4175
        %v4177 = vand.u32 %v709, 4294901760
        %4178 = vmatpush.msra.mxu0 %v4177
        %v4179 = vand.u32 %v708, 4294901760
        %4180 = vmatpush.msra.mxu0 %v4179
        %v4181 = vand.u32 %v707, 4294901760
        %4182 = vmatpush.msra.mxu0 %v4181
        %v4183 = vand.u32 %v706, 4294901760
        %4184 = vmatpush.msra.mxu0 %v4183
        %v4185 = vand.u32 %v705, 4294901760
        %4186 = vmatpush.msra.mxu0 %v4185
        %v4187 = vand.u32 %v704, 4294901760
        %4188 = vmatpush.msra.mxu0 %v4187
        %v4189 = vand.u32 %v703, 4294901760
        %4190 = vmatpush.msra.mxu0 %v4189
        %v4191 = vand.u32 %v702, 4294901760
        %4192 = vmatpush.msra.mxu0 %v4191
        %v4193 = vand.u32 %v701, 4294901760
        %4194 = vmatpush.msra.mxu0 %v4193
        %v4195 = vand.u32 %v700, 4294901760
        %4196 = vmatpush.msra.mxu0 %v4195
        %v4197 = vand.u32 %v699, 4294901760
        %4198 = vmatpush.msra.mxu0 %v4197
        %v4199 = vand.u32 %v698, 4294901760
        %4200 = vmatpush.msra.mxu0 %v4199
        %v4201 = vand.u32 %v721, 4294901760
        %4202 = vmatmul.f32.gmra.mxu0 %v4201
        %v4203 = vpop.f32.mrf.mxu0
        %v4204 = vadd.f32 %v4155, %v4203
        %v4205 = vand.u32 %v729, 4294901760
        %4206 = vmatmul.f32.gmra.mxu0 %v4205
        %v4207 = vpop.f32.mrf.mxu0
        %v4208 = vadd.f32 %v4159, %v4207
        %v4209 = vand.u32 %v737, 4294901760
        %4210 = vmatmul.f32.gmra.mxu0 %v4209
        %v4211 = vpop.f32.mrf.mxu0
        %v4212 = vadd.f32 %v4163, %v4211
        %v4213 = vand.u32 %v745, 4294901760
        %4214 = vmatmul.f32.gmra.mxu0 %v4213
        %v4215 = vpop.f32.mrf.mxu0
        %v4216 = vadd.f32 %v4167, %v4215
        %4217 = vdwg.mxu0
        %vm4218 = vcmask 130048
        %4219 = vst.msk [vmem:[%s198] sm:$0xff] %vm4218, %v4204
        %4220 = vst.msk [vmem:[%s198 + $0x8] sm:$0xff] %vm4218, %v4208
        %4221 = vst.msk [vmem:[%s198 + $0x10] sm:$0xff] %vm4218, %v4212
        %4222 = vst.msk [vmem:[%s198 + $0x18] sm:$0xff] %vm4218, %v4216
        %p4223 = scmp.lt.s32.totalorder %s21, 1
        %s4224 = scalar_select %p4223, %s21, 1
        %p4225 = scmp.lt.s32.totalorder %s22, 0
        %s4226 = scalar_select %p4225, %s22, 0
        %s4227 = smul.addr %s4224, 4
        %s4228 = sadd.s32 %s4226, %s4227
        %s4229 = smul.addr %s4228, 8
        %s4230 = scalar_lea.vmem %s2, %s4229
        // Predicated region
        $region37: #{tpu_custom_call.1} parent=27 // pred_check
          %p4231 = pneg %p98
        $region38: #{tpu_custom_call.1} parent=27 // pred_check_branch
          %4233 = sbr.rel (%p4231) target = $region40
        $region39: #{tpu_custom_call.1} parent=27 // pred_region
          _
        $region40: #{tpu_custom_call.1} parent=27 // pred_fallthru
          _
      $region28: #{tpu_custom_call.1} parent=5 // pred_fallthru
        _
      %p4234 = scmp.le.s32.totalorder 2, %s12
      // Predicated region
      $region41: #{tpu_custom_call.1} parent=5 // pred_check
        %p4235 = pneg %p4234
      $region42: #{tpu_custom_call.1} parent=5 // pred_check_branch
        %4237 = sbr.rel (%p4235) target = $region44
      $region43: #{tpu_custom_call.1} parent=5 // pred_region
        %s4238 = ssub.s32 %s12, 2
        // Predicated region
        $region45: #{tpu_custom_call.1} parent=43 // pred_check
          %p4239 = pneg %p104
        $region46: #{tpu_custom_call.1} parent=43 // pred_check_branch
          %4241 = sbr.rel (%p4239) target = $region48
        $region47: #{tpu_custom_call.1} parent=43 // pred_region
          %p4242 = scmp.lt.s32.totalorder %s23, 1
          %s4243 = scalar_select %p4242, %s23, 1
          %p4244 = scmp.lt.s32.totalorder %s24, 0
          %s4245 = scalar_select %p4244, %s24, 0
          %s4246 = smul.addr %s4243, 4
          %s4247 = sadd.s32 %s4245, %s4246
          %s4248 = smul.addr %s4247, 8
          %s4249 = scalar_lea.vmem %s2, %s4248
        $region48: #{tpu_custom_call.1} parent=43 // pred_fallthru
          _
      $region44: #{tpu_custom_call.1} parent=5 // pred_fallthru
        _
    $region6: #{tpu_custom_call.1} parent=1 // loop_footer
      %s16 = sadd.s32 1, %s12
    $region7: #{tpu_custom_call.1} parent=1 // loop_footer_branch
      %11 = sbr.rel target = $region3
    $region8: #{tpu_custom_call.1} parent=1 // loop_exit
      _
    %4250 = vsyncpa [#allocation3], 1
    %s4251 = scalar_lea.sflag [#allocation3], 1
    %4252 = vsyncpa %s4251, 1
    %4253 = vsyncpa [#allocation5], 1

</llo_original>
